<compile_context>
chip_gen: v6e
topology: v6e:2x2x1
jax: 0.10.0
libtpu: 0.0.40
codegen_flags: <defaults>
</compile_context>

<pallas_src>
import functools

import jax
import jax.numpy as jnp
from jax.experimental import pallas as pl
from jax.experimental.pallas import tpu as pltpu


LANE = 128


def _round_up(x, m):
    return ((x + m - 1) // m) * m


# ---------------------------------------------------------------------------
# Fused Pallas kernel: conv(3x3, SAME) + bias + ReLU + global-avg-pool + linear
# ---------------------------------------------------------------------------

def _fused_featclassifier_kernel(xp_ref, wconv_ref, bconv_ref, wcls_ref, bcls_ref,
                                 logits_ref, feat_ref, *, H, W, K, inv_hw):
    """One grid step processes one image.

    xp_ref:     (H+K-1, W+K-1, Cin)   bf16  'SAME'-padded NHWC image (batch squeezed)
    wconv_ref:  (K*K, Cin, Cout_p)    bf16  conv weights, tap-major (dh*K + dw)
    bconv_ref:  (1, Cout_p)           f32
    wcls_ref:   (Cout_p, nattr_p)     f32
    bcls_ref:   (1, nattr_p)          f32
    logits_ref: (1, nattr_p)          f32 out
    feat_ref:   (1, Cout_p)           f32 out
    """
    cin = wconv_ref.shape[1]
    cout_p = wconv_ref.shape[-1]

    # Conv as K*K shifted matmuls accumulated in f32 (im2col never materialized in HBM).
    acc = jnp.zeros((H * W, cout_p), jnp.float32)
    for dh in range(K):
        for dw in range(K):
            tap = xp_ref[dh:dh + H, dw:dw + W, :]              # (H, W, Cin) bf16
            tap2d = tap.reshape(H * W, cin)                    # lane dim unchanged
            acc = acc + jnp.dot(tap2d, wconv_ref[dh * K + dw],
                                preferred_element_type=jnp.float32)

    # Bias + ReLU epilogue in f32 (safe on v5e: no bf16 VPU there).
    fm = jnp.maximum(acc + bconv_ref[...], 0.0)                # (H*W, Cout_p)

    # AdaptiveAvgPool2d(1): sum * (1/(H*W)); inverse is a trace-time constant.
    feat = jnp.sum(fm, axis=0, keepdims=True) * inv_hw         # (1, Cout_p)

    # Linear classifier head (tiny, f32).
    logits = jnp.dot(feat, wcls_ref[...],
                     preferred_element_type=jnp.float32) + bcls_ref[...]

    feat_ref[...] = feat.astype(feat_ref.dtype)
    logits_ref[...] = logits.astype(logits_ref.dtype)


# ---------------------------------------------------------------------------
# Wrapper (glue: layout transposes, weight repack, lane padding, pallas_call)
# ---------------------------------------------------------------------------

@jax.jit
def _feat_classifier_impl(x_nchw, conv_w, conv_b, cls_w, cls_b):
    N, Cin, H, W = x_nchw.shape
    Cout, _, K, _ = conv_w.shape
    nattr = cls_w.shape[0]                       # torch Linear weight: (out, in)
    pad = K // 2                                 # 'SAME' for odd K (as in reference conv)

    Cout_p = _round_up(Cout, LANE)
    nattr_p = _round_up(nattr, LANE)
    Hp, Wp = H + 2 * pad, W + 2 * pad

    # Layout glue (one-time XLA ops, cheap relative to the removed HBM round-trips):
    #   NCHW -> NHWC, bf16 matmul operand, 'SAME' zero padding.
    xp = jnp.pad(jnp.transpose(x_nchw, (0, 2, 3, 1)).astype(jnp.bfloat16),
                 ((0, 0), (pad, pad), (pad, pad), (0, 0)))
    #   (Cout,Cin,K,K) -> (K*K, Cin, Cout_p) matching tap order dh*K+dw, lane-padded.
    w_conv = jnp.transpose(conv_w, (2, 3, 1, 0)).reshape(K * K, Cin, Cout)
    w_conv = jnp.pad(w_conv, ((0, 0), (0, 0), (0, Cout_p - Cout))).astype(jnp.bfloat16)
    b_conv = jnp.pad(conv_b, (0, Cout_p - Cout)).reshape(1, Cout_p).astype(jnp.float32)
    w_cls = jnp.pad(cls_w.T, ((0, Cout_p - Cout), (0, nattr_p - nattr))).astype(jnp.float32)
    b_cls = jnp.pad(cls_b, (0, nattr_p - nattr)).reshape(1, nattr_p).astype(jnp.float32)

    kernel = functools.partial(_fused_featclassifier_kernel,
                               H=H, W=W, K=K, inv_hw=1.0 / float(H * W))

    logits_p, feat_p = pl.pallas_call(
        kernel,
        out_shape=(
            jax.ShapeDtypeStruct((N, 1, nattr_p), jnp.float32),
            jax.ShapeDtypeStruct((N, 1, Cout_p), jnp.float32),
        ),
        grid=(N,),
        in_specs=[
            # Per-image padded block, pipelined over the batch grid axis.
            pl.BlockSpec((None, Hp, Wp, Cin), lambda n: (n, 0, 0, 0)),
            # Weights/biases: constant index maps -> fetched once, resident in VMEM.
            pl.BlockSpec((K * K, Cin, Cout_p), lambda n: (0, 0, 0)),
            pl.BlockSpec((1, Cout_p), lambda n: (0, 0)),
            pl.BlockSpec((Cout_p, nattr_p), lambda n: (0, 0)),
            pl.BlockSpec((1, nattr_p), lambda n: (0, 0)),
        ],
        out_specs=(
            pl.BlockSpec((None, 1, nattr_p), lambda n: (n, 0, 0)),
            pl.BlockSpec((None, 1, Cout_p), lambda n: (n, 0, 0)),
        ),
        compiler_params=pltpu.CompilerParams(
            dimension_semantics=("parallel",),     # batch axis -> megacore on v7x
            vmem_limit_bytes=32 * 1024 * 1024,     # within v7x 64 MiB physical VMEM
        ),
    )(xp, w_conv, b_conv, w_cls, b_cls)

    # Strip lane padding.
    logits = logits_p[:, 0, :nattr]
    feat = feat_p[:, 0, :Cout]
    return logits, feat


def feat_classifier_forward(x_nchw, params, label=None):
    """FeatClassifier.forward: returns (logits, feat)."""
    # `label` is unused by this classifier variant (as in the reference wrapper).
    return _feat_classifier_impl(x_nchw, params["conv_w"], params["conv_b"],
                                 params["cls_w"], params["cls_b"])


# ---------------------------------------------------------------------------
# Deterministic parameter init + smoke test
# ---------------------------------------------------------------------------

def init_params(key, cin, cout, k, nattr):
    k1, k2, k3, k4 = jax.random.split(key, 4)
    conv_scale = (2.0 / (cin * k * k)) ** 0.5
    cls_scale = (1.0 / cout) ** 0.5
    return {
        "conv_w": jax.random.normal(k1, (cout, cin, k, k), jnp.float32) * conv_scale,
        "conv_b": jax.random.normal(k2, (cout,), jnp.float32) * 0.01,
        "cls_w": jax.random.normal(k3, (nattr, cout), jnp.float32) * cls_scale,
        "cls_b": jax.random.normal(k4, (nattr,), jnp.float32) * 0.01,
    }


if __name__ == "__main__":
    N, Cin, H, W = 2, 4, 16, 16
    Cout, K, NATTR = 32, 3, 8

    key = jax.random.PRNGKey(0)
    kx, kp = jax.random.split(key)
    x = jax.random.normal(kx, (N, Cin, H, W), jnp.float32)         # NCHW like PyTorch
    params = init_params(kp, Cin, Cout, K, NATTR)

    logits, feat = feat_classifier_forward(x, params)
    jax.block_until_ready((logits, feat))

    # Pure-JAX reference. The kernel casts the conv operands to bf16 (f32 accumulation),
    # so the reference uses the same bf16-rounded operands with full-precision math.
    x_nhwc = jnp.transpose(x, (0, 2, 3, 1)).astype(jnp.bfloat16).astype(jnp.float32)
    w_hwio = jnp.transpose(params["conv_w"], (2, 3, 1, 0)).astype(
        jnp.bfloat16).astype(jnp.float32)
    ref_fm = jax.lax.conv_general_dilated(
        x_nhwc, w_hwio, (1, 1), "SAME",
        dimension_numbers=("NHWC", "HWIO", "NHWC"),
        precision=jax.lax.Precision.HIGHEST) + params["conv_b"]
    ref_fm = jnp.maximum(ref_fm, 0.0)
    ref_feat = ref_fm.mean(axis=(1, 2))
    ref_logits = jnp.dot(ref_feat, params["cls_w"].T,
                         precision=jax.lax.Precision.HIGHEST) + params["cls_b"]

    assert logits.shape == (N, NATTR) and feat.shape == (N, Cout)
    assert jnp.allclose(feat, ref_feat, atol=1e-2, rtol=1e-2)
    assert jnp.allclose(logits, ref_logits, atol=1e-2, rtol=1e-2)

    print("KERNEL_OK")
</pallas_src>

<mosaic_0001>
module attributes {stable_mosaic.version = 11 : i64} {
  func.func @_fused_featclassifier_kernel(%arg0: i32, %arg1: memref<1x18x18x4xbf16, #tpu.memory_space<vmem>>, %arg2: memref<9x4x128xbf16, #tpu.memory_space<vmem>>, %arg3: memref<1x128xf32, #tpu.memory_space<vmem>>, %arg4: memref<128x128xf32, #tpu.memory_space<vmem>>, %arg5: memref<1x128xf32, #tpu.memory_space<vmem>>, %arg6: memref<1x1x128xf32, #tpu.memory_space<vmem>>, %arg7: memref<1x1x128xf32, #tpu.memory_space<vmem>>) attributes {dimension_semantics = [#tpu.dimension_semantics<parallel>], iteration_bounds = array<i64: 2>, scalar_prefetch = 0 : i64, scratch_operands = 0 : i64, tpu.core_type = #tpu.core_type<tc>, window_params = [{transform_indices = @transform_0, window_bounds = array<i64: 1, 18, 18, 4>}, {pipeline_mode = #tpu.pipeline_mode<synchronous>, transform_indices = @transform_1, window_bounds = array<i64: 9, 4, 128>}, {pipeline_mode = #tpu.pipeline_mode<synchronous>, transform_indices = @transform_2, window_bounds = array<i64: 1, 128>}, {pipeline_mode = #tpu.pipeline_mode<synchronous>, transform_indices = @transform_3, window_bounds = array<i64: 128, 128>}, {pipeline_mode = #tpu.pipeline_mode<synchronous>, transform_indices = @transform_4, window_bounds = array<i64: 1, 128>}, {transform_indices = @transform_5, window_bounds = array<i64: 1, 1, 128>}, {transform_indices = @transform_6, window_bounds = array<i64: 1, 1, 128>}]} {
    %cst = arith.constant 0.000000e+00 : f32
    %0 = vector.broadcast %cst : f32 to vector<256x128xf32>
    %c0 = arith.constant 0 : index
    %c0_0 = arith.constant 0 : index
    %c0_1 = arith.constant 0 : index
    %c0_2 = arith.constant 0 : index
    %1 = vector.load %arg1[%c0, %c0_0, %c0_1, %c0_2] : memref<1x18x18x4xbf16, #tpu.memory_space<vmem>>, vector<1x16x16x4xbf16>
    %2 = vector.shape_cast %1 : vector<1x16x16x4xbf16> to vector<16x16x4xbf16>
    %3 = vector.shape_cast %2 : vector<16x16x4xbf16> to vector<256x4xbf16>
    %c0_3 = arith.constant 0 : index
    %c0_4 = arith.constant 0 : index
    %c0_5 = arith.constant 0 : index
    %4 = vector.load %arg2[%c0_3, %c0_4, %c0_5] : memref<9x4x128xbf16, #tpu.memory_space<vmem>>, vector<1x4x128xbf16>
    %5 = vector.shape_cast %4 : vector<1x4x128xbf16> to vector<4x128xbf16>
    %cst_6 = arith.constant dense<0.000000e+00> : vector<256x128xf32>
    %6 = tpu.matmul %3, %5, %cst_6 {dimension_numbers = #tpu.dot_dimension_numbers<[1], [0], [0], [1], [0, 0, 1, 1], [], []>} : vector<256x4xbf16>, vector<4x128xbf16>, vector<256x128xf32> -> vector<256x128xf32>
    %7 = arith.addf %0, %6 : vector<256x128xf32>
    %c0_7 = arith.constant 0 : index
    %c0_8 = arith.constant 0 : index
    %c1 = arith.constant 1 : index
    %c0_9 = arith.constant 0 : index
    %8 = vector.load %arg1[%c0_7, %c0_8, %c1, %c0_9] : memref<1x18x18x4xbf16, #tpu.memory_space<vmem>>, vector<1x16x16x4xbf16>
    %9 = vector.shape_cast %8 : vector<1x16x16x4xbf16> to vector<16x16x4xbf16>
    %10 = vector.shape_cast %9 : vector<16x16x4xbf16> to vector<256x4xbf16>
    %c1_10 = arith.constant 1 : index
    %c0_11 = arith.constant 0 : index
    %c0_12 = arith.constant 0 : index
    %11 = vector.load %arg2[%c1_10, %c0_11, %c0_12] : memref<9x4x128xbf16, #tpu.memory_space<vmem>>, vector<1x4x128xbf16>
    %12 = vector.shape_cast %11 : vector<1x4x128xbf16> to vector<4x128xbf16>
    %cst_13 = arith.constant dense<0.000000e+00> : vector<256x128xf32>
    %13 = tpu.matmul %10, %12, %cst_13 {dimension_numbers = #tpu.dot_dimension_numbers<[1], [0], [0], [1], [0, 0, 1, 1], [], []>} : vector<256x4xbf16>, vector<4x128xbf16>, vector<256x128xf32> -> vector<256x128xf32>
    %14 = arith.addf %7, %13 : vector<256x128xf32>
    %c0_14 = arith.constant 0 : index
    %c0_15 = arith.constant 0 : index
    %c2 = arith.constant 2 : index
    %c0_16 = arith.constant 0 : index
    %15 = vector.load %arg1[%c0_14, %c0_15, %c2, %c0_16] : memref<1x18x18x4xbf16, #tpu.memory_space<vmem>>, vector<1x16x16x4xbf16>
    %16 = vector.shape_cast %15 : vector<1x16x16x4xbf16> to vector<16x16x4xbf16>
    %17 = vector.shape_cast %16 : vector<16x16x4xbf16> to vector<256x4xbf16>
    %c2_17 = arith.constant 2 : index
    %c0_18 = arith.constant 0 : index
    %c0_19 = arith.constant 0 : index
    %18 = vector.load %arg2[%c2_17, %c0_18, %c0_19] : memref<9x4x128xbf16, #tpu.memory_space<vmem>>, vector<1x4x128xbf16>
    %19 = vector.shape_cast %18 : vector<1x4x128xbf16> to vector<4x128xbf16>
    %cst_20 = arith.constant dense<0.000000e+00> : vector<256x128xf32>
    %20 = tpu.matmul %17, %19, %cst_20 {dimension_numbers = #tpu.dot_dimension_numbers<[1], [0], [0], [1], [0, 0, 1, 1], [], []>} : vector<256x4xbf16>, vector<4x128xbf16>, vector<256x128xf32> -> vector<256x128xf32>
    %21 = arith.addf %14, %20 : vector<256x128xf32>
    %c0_21 = arith.constant 0 : index
    %c1_22 = arith.constant 1 : index
    %c0_23 = arith.constant 0 : index
    %c0_24 = arith.constant 0 : index
    %22 = vector.load %arg1[%c0_21, %c1_22, %c0_23, %c0_24] : memref<1x18x18x4xbf16, #tpu.memory_space<vmem>>, vector<1x16x16x4xbf16>
    %23 = vector.shape_cast %22 : vector<1x16x16x4xbf16> to vector<16x16x4xbf16>
    %24 = vector.shape_cast %23 : vector<16x16x4xbf16> to vector<256x4xbf16>
    %c3 = arith.constant 3 : index
    %c0_25 = arith.constant 0 : index
    %c0_26 = arith.constant 0 : index
    %25 = vector.load %arg2[%c3, %c0_25, %c0_26] : memref<9x4x128xbf16, #tpu.memory_space<vmem>>, vector<1x4x128xbf16>
    %26 = vector.shape_cast %25 : vector<1x4x128xbf16> to vector<4x128xbf16>
    %cst_27 = arith.constant dense<0.000000e+00> : vector<256x128xf32>
    %27 = tpu.matmul %24, %26, %cst_27 {dimension_numbers = #tpu.dot_dimension_numbers<[1], [0], [0], [1], [0, 0, 1, 1], [], []>} : vector<256x4xbf16>, vector<4x128xbf16>, vector<256x128xf32> -> vector<256x128xf32>
    %28 = arith.addf %21, %27 : vector<256x128xf32>
    %c0_28 = arith.constant 0 : index
    %c1_29 = arith.constant 1 : index
    %c1_30 = arith.constant 1 : index
    %c0_31 = arith.constant 0 : index
    %29 = vector.load %arg1[%c0_28, %c1_29, %c1_30, %c0_31] : memref<1x18x18x4xbf16, #tpu.memory_space<vmem>>, vector<1x16x16x4xbf16>
    %30 = vector.shape_cast %29 : vector<1x16x16x4xbf16> to vector<16x16x4xbf16>
    %31 = vector.shape_cast %30 : vector<16x16x4xbf16> to vector<256x4xbf16>
    %c4 = arith.constant 4 : index
    %c0_32 = arith.constant 0 : index
    %c0_33 = arith.constant 0 : index
    %32 = vector.load %arg2[%c4, %c0_32, %c0_33] : memref<9x4x128xbf16, #tpu.memory_space<vmem>>, vector<1x4x128xbf16>
    %33 = vector.shape_cast %32 : vector<1x4x128xbf16> to vector<4x128xbf16>
    %cst_34 = arith.constant dense<0.000000e+00> : vector<256x128xf32>
    %34 = tpu.matmul %31, %33, %cst_34 {dimension_numbers = #tpu.dot_dimension_numbers<[1], [0], [0], [1], [0, 0, 1, 1], [], []>} : vector<256x4xbf16>, vector<4x128xbf16>, vector<256x128xf32> -> vector<256x128xf32>
    %35 = arith.addf %28, %34 : vector<256x128xf32>
    %c0_35 = arith.constant 0 : index
    %c1_36 = arith.constant 1 : index
    %c2_37 = arith.constant 2 : index
    %c0_38 = arith.constant 0 : index
    %36 = vector.load %arg1[%c0_35, %c1_36, %c2_37, %c0_38] : memref<1x18x18x4xbf16, #tpu.memory_space<vmem>>, vector<1x16x16x4xbf16>
    %37 = vector.shape_cast %36 : vector<1x16x16x4xbf16> to vector<16x16x4xbf16>
    %38 = vector.shape_cast %37 : vector<16x16x4xbf16> to vector<256x4xbf16>
    %c5 = arith.constant 5 : index
    %c0_39 = arith.constant 0 : index
    %c0_40 = arith.constant 0 : index
    %39 = vector.load %arg2[%c5, %c0_39, %c0_40] : memref<9x4x128xbf16, #tpu.memory_space<vmem>>, vector<1x4x128xbf16>
    %40 = vector.shape_cast %39 : vector<1x4x128xbf16> to vector<4x128xbf16>
    %cst_41 = arith.constant dense<0.000000e+00> : vector<256x128xf32>
    %41 = tpu.matmul %38, %40, %cst_41 {dimension_numbers = #tpu.dot_dimension_numbers<[1], [0], [0], [1], [0, 0, 1, 1], [], []>} : vector<256x4xbf16>, vector<4x128xbf16>, vector<256x128xf32> -> vector<256x128xf32>
    %42 = arith.addf %35, %41 : vector<256x128xf32>
    %c0_42 = arith.constant 0 : index
    %c2_43 = arith.constant 2 : index
    %c0_44 = arith.constant 0 : index
    %c0_45 = arith.constant 0 : index
    %43 = vector.load %arg1[%c0_42, %c2_43, %c0_44, %c0_45] : memref<1x18x18x4xbf16, #tpu.memory_space<vmem>>, vector<1x16x16x4xbf16>
    %44 = vector.shape_cast %43 : vector<1x16x16x4xbf16> to vector<16x16x4xbf16>
    %45 = vector.shape_cast %44 : vector<16x16x4xbf16> to vector<256x4xbf16>
    %c6 = arith.constant 6 : index
    %c0_46 = arith.constant 0 : index
    %c0_47 = arith.constant 0 : index
    %46 = vector.load %arg2[%c6, %c0_46, %c0_47] : memref<9x4x128xbf16, #tpu.memory_space<vmem>>, vector<1x4x128xbf16>
    %47 = vector.shape_cast %46 : vector<1x4x128xbf16> to vector<4x128xbf16>
    %cst_48 = arith.constant dense<0.000000e+00> : vector<256x128xf32>
    %48 = tpu.matmul %45, %47, %cst_48 {dimension_numbers = #tpu.dot_dimension_numbers<[1], [0], [0], [1], [0, 0, 1, 1], [], []>} : vector<256x4xbf16>, vector<4x128xbf16>, vector<256x128xf32> -> vector<256x128xf32>
    %49 = arith.addf %42, %48 : vector<256x128xf32>
    %c0_49 = arith.constant 0 : index
    %c2_50 = arith.constant 2 : index
    %c1_51 = arith.constant 1 : index
    %c0_52 = arith.constant 0 : index
    %50 = vector.load %arg1[%c0_49, %c2_50, %c1_51, %c0_52] : memref<1x18x18x4xbf16, #tpu.memory_space<vmem>>, vector<1x16x16x4xbf16>
    %51 = vector.shape_cast %50 : vector<1x16x16x4xbf16> to vector<16x16x4xbf16>
    %52 = vector.shape_cast %51 : vector<16x16x4xbf16> to vector<256x4xbf16>
    %c7 = arith.constant 7 : index
    %c0_53 = arith.constant 0 : index
    %c0_54 = arith.constant 0 : index
    %53 = vector.load %arg2[%c7, %c0_53, %c0_54] : memref<9x4x128xbf16, #tpu.memory_space<vmem>>, vector<1x4x128xbf16>
    %54 = vector.shape_cast %53 : vector<1x4x128xbf16> to vector<4x128xbf16>
    %cst_55 = arith.constant dense<0.000000e+00> : vector<256x128xf32>
    %55 = tpu.matmul %52, %54, %cst_55 {dimension_numbers = #tpu.dot_dimension_numbers<[1], [0], [0], [1], [0, 0, 1, 1], [], []>} : vector<256x4xbf16>, vector<4x128xbf16>, vector<256x128xf32> -> vector<256x128xf32>
    %56 = arith.addf %49, %55 : vector<256x128xf32>
    %c0_56 = arith.constant 0 : index
    %c2_57 = arith.constant 2 : index
    %c2_58 = arith.constant 2 : index
    %c0_59 = arith.constant 0 : index
    %57 = vector.load %arg1[%c0_56, %c2_57, %c2_58, %c0_59] : memref<1x18x18x4xbf16, #tpu.memory_space<vmem>>, vector<1x16x16x4xbf16>
    %58 = vector.shape_cast %57 : vector<1x16x16x4xbf16> to vector<16x16x4xbf16>
    %59 = vector.shape_cast %58 : vector<16x16x4xbf16> to vector<256x4xbf16>
    %c8 = arith.constant 8 : index
    %c0_60 = arith.constant 0 : index
    %c0_61 = arith.constant 0 : index
    %60 = vector.load %arg2[%c8, %c0_60, %c0_61] : memref<9x4x128xbf16, #tpu.memory_space<vmem>>, vector<1x4x128xbf16>
    %61 = vector.shape_cast %60 : vector<1x4x128xbf16> to vector<4x128xbf16>
    %cst_62 = arith.constant dense<0.000000e+00> : vector<256x128xf32>
    %62 = tpu.matmul %59, %61, %cst_62 {dimension_numbers = #tpu.dot_dimension_numbers<[1], [0], [0], [1], [0, 0, 1, 1], [], []>} : vector<256x4xbf16>, vector<4x128xbf16>, vector<256x128xf32> -> vector<256x128xf32>
    %63 = arith.addf %56, %62 : vector<256x128xf32>
    %c0_63 = arith.constant 0 : index
    %c0_64 = arith.constant 0 : index
    %64 = vector.load %arg3[%c0_63, %c0_64] : memref<1x128xf32, #tpu.memory_space<vmem>>, vector<1x128xf32>
    %65 = vector.broadcast %64 : vector<1x128xf32> to vector<256x128xf32>
    %66 = arith.addf %63, %65 : vector<256x128xf32>
    %cst_65 = arith.constant 0.000000e+00 : f32
    %67 = vector.broadcast %cst_65 : f32 to vector<256x128xf32>
    %68 = arith.maximumf %66, %67 : vector<256x128xf32>
    %cst_66 = arith.constant dense<0.000000e+00> : vector<128xf32>
    %69 = vector.multi_reduction <add>, %68, %cst_66 [0] : vector<256x128xf32> to vector<128xf32>
    %70 = vector.shape_cast %69 : vector<128xf32> to vector<1x128xf32>
    %cst_67 = arith.constant 3.906250e-03 : f32
    %71 = vector.broadcast %cst_67 : f32 to vector<1x128xf32>
    %72 = arith.mulf %70, %71 : vector<1x128xf32>
    %c0_68 = arith.constant 0 : index
    %c0_69 = arith.constant 0 : index
    %73 = vector.load %arg4[%c0_68, %c0_69] : memref<128x128xf32, #tpu.memory_space<vmem>>, vector<128x128xf32>
    %cst_70 = arith.constant dense<0.000000e+00> : vector<1x128xf32>
    %74 = tpu.matmul %72, %73, %cst_70 {dimension_numbers = #tpu.dot_dimension_numbers<[1], [0], [0], [1], [0, 0, 1, 1], [], []>} : vector<1x128xf32>, vector<128x128xf32>, vector<1x128xf32> -> vector<1x128xf32>
    %c0_71 = arith.constant 0 : index
    %c0_72 = arith.constant 0 : index
    %75 = vector.load %arg5[%c0_71, %c0_72] : memref<1x128xf32, #tpu.memory_space<vmem>>, vector<1x128xf32>
    %76 = arith.addf %74, %75 : vector<1x128xf32>
    %c0_73 = arith.constant 0 : index
    %c0_74 = arith.constant 0 : index
    %c0_75 = arith.constant 0 : index
    %77 = vector.load %arg7[%c0_73, %c0_74, %c0_75] : memref<1x1x128xf32, #tpu.memory_space<vmem>>, vector<1x1x128xf32>
    %78 = vector.shape_cast %77 : vector<1x1x128xf32> to vector<1x128xf32>
    %79 = vector.shape_cast %72 : vector<1x128xf32> to vector<1x1x128xf32>
    tpu.vector_store %arg7[%c0_73, %c0_74, %c0_75], %79 {strides = array<i32>} : memref<1x1x128xf32, #tpu.memory_space<vmem>>, vector<1x1x128xf32>,
    %c0_76 = arith.constant 0 : index
    %c0_77 = arith.constant 0 : index
    %c0_78 = arith.constant 0 : index
    %80 = vector.load %arg6[%c0_76, %c0_77, %c0_78] : memref<1x1x128xf32, #tpu.memory_space<vmem>>, vector<1x1x128xf32>
    %81 = vector.shape_cast %80 : vector<1x1x128xf32> to vector<1x128xf32>
    %82 = vector.shape_cast %76 : vector<1x128xf32> to vector<1x1x128xf32>
    tpu.vector_store %arg6[%c0_76, %c0_77, %c0_78], %82 {strides = array<i32>} : memref<1x1x128xf32, #tpu.memory_space<vmem>>, vector<1x1x128xf32>,
    return
  }
  func.func @transform_0(%arg0: i32) -> (i32, i32, i32, i32) {
    %c0_i32 = arith.constant 0 : i32
    %c0_i32_0 = arith.constant 0 : i32
    %c0_i32_1 = arith.constant 0 : i32
    %c0_i32_2 = arith.constant 0 : i32
    return %arg0, %c0_i32, %c0_i32_0, %c0_i32_1 : i32, i32, i32, i32
  }
  func.func @transform_1(%arg0: i32) -> (i32, i32, i32) {
    %c0_i32 = arith.constant 0 : i32
    %c0_i32_0 = arith.constant 0 : i32
    %c0_i32_1 = arith.constant 0 : i32
    %c0_i32_2 = arith.constant 0 : i32
    return %c0_i32, %c0_i32_0, %c0_i32_1 : i32, i32, i32
  }
  func.func @transform_2(%arg0: i32) -> (i32, i32) {
    %c0_i32 = arith.constant 0 : i32
    %c0_i32_0 = arith.constant 0 : i32
    %c0_i32_1 = arith.constant 0 : i32
    return %c0_i32, %c0_i32_0 : i32, i32
  }
  func.func @transform_3(%arg0: i32) -> (i32, i32) {
    %c0_i32 = arith.constant 0 : i32
    %c0_i32_0 = arith.constant 0 : i32
    %c0_i32_1 = arith.constant 0 : i32
    return %c0_i32, %c0_i32_0 : i32, i32
  }
  func.func @transform_4(%arg0: i32) -> (i32, i32) {
    %c0_i32 = arith.constant 0 : i32
    %c0_i32_0 = arith.constant 0 : i32
    %c0_i32_1 = arith.constant 0 : i32
    return %c0_i32, %c0_i32_0 : i32, i32
  }
  func.func @transform_5(%arg0: i32) -> (i32, i32, i32) {
    %c0_i32 = arith.constant 0 : i32
    %c0_i32_0 = arith.constant 0 : i32
    %c0_i32_1 = arith.constant 0 : i32
    return %arg0, %c0_i32, %c0_i32_0 : i32, i32, i32
  }
  func.func @transform_6(%arg0: i32) -> (i32, i32, i32) {
    %c0_i32 = arith.constant 0 : i32
    %c0_i32_0 = arith.constant 0 : i32
    %c0_i32_1 = arith.constant 0 : i32
    return %arg0, %c0_i32, %c0_i32_0 : i32, i32, i32
  }
}

</mosaic_0001>

<llo_original>
// kernel: _feat_classifier_impl.1
$region0: #{_feat_classifier_impl.1}
  #allocation0 [shape = 'u32[]', space=smem, size = 0x4, offset = 0x4, fixed_abs, tag = 'smem constant byte address 0x4 - core index']
  #allocation1 [shape = 'u32[144,128]{1,0:T(1,128)}', space=vmem, size = 0x12000, scoped, tag = 'internal scratch']
  %s0 = inlined_call_operand.vmem [shape: bf16[2,18,18,4], index: 0, kind: input, shape index: {}]
  %s1 = inlined_call_operand.vmem [shape: bf16[9,4,128], index: 1, kind: input, shape index: {}]
  %s2 = inlined_call_operand.vmem [shape: f32[1,128], index: 2, kind: input, shape index: {}]
  %s3 = inlined_call_operand.vmem [shape: f32[128,128], index: 3, kind: input, shape index: {}]
  %s4 = inlined_call_operand.vmem [shape: f32[1,128], index: 4, kind: input, shape index: {}]
  %s5 = inlined_call_operand.hbm [shape: f32[2,1,128], index: 5, kind: output, shape index: {0}]
  %s6 = inlined_call_operand.hbm [shape: f32[2,1,128], index: 6, kind: output, shape index: {1}]
  %7 = xla_tuple %s5, %s6
  %s8 = sld [smem:[#allocation0]]
  $region61: #{_feat_classifier_impl.1} parent=0
    _
  %s10 = ssub.s32 1, %s8
  %s11 = scalar_select 0, %s10, %s8
  $region1: #{_feat_classifier_impl.1} parent=0
    #allocation2 [shape = 'u8[1024]{0}', space=vmem, size = 0x400, scoped, tag = 'output window, operand 0']
    #allocation3 [shape = 's32[2]{0}', space=sflag, size = 0x8, scoped, tag = 'scoped memory for _feat_classifier_impl.1']
    #allocation4 [shape = 'u8[1024]{0}', space=vmem, size = 0x400, scoped, tag = 'output window, operand 1']
    #allocation5 [shape = 's32[2]{0}', space=sflag, size = 0x8, scoped, tag = 'scoped memory for _feat_classifier_impl.1']
    %12 = vsyncpa [#allocation3], 0
    %s13 = scalar_lea.sflag [#allocation3], 1
    %14 = vsyncpa %s13, 0
    %15 = vsyncpa [#allocation5], 0
    %s16 = scalar_lea.sflag [#allocation5], 1
    %17 = vsyncpa %s16, 0
    loop: start=0, step=1, limit=4
    $region2: #{_feat_classifier_impl.1} parent=1 // loop_pre_header
      _
    $region3: #{_feat_classifier_impl.1} parent=1 // loop_header
      %s19 = sphi 0, %s23
      %p20 = scmp.ge.s32.totalorder %s19, 4
      %s29 = sphi 0, %s31
      %s32 = sphi 0, %s29
      %s33 = sphi 0, %s32
      %s49 = sphi 0, %s33
      %s53 = sphi 0, %s53
      %s55 = sphi 0, %s53
      %s56 = sphi 0, %s55
      %s70 = sphi 0, %s56
      %s74 = sphi 0, %s74
      %s76 = sphi 0, %s74
      %s77 = sphi 0, %s76
      %s91 = sphi 0, %s77
      %s95 = sphi 0, %s95
      %s97 = sphi 0, %s95
      %s98 = sphi 0, %s97
      %s112 = sphi 0, %s98
      %s116 = sphi 0, %s116
      %s118 = sphi 0, %s116
      %s119 = sphi 0, %s118
      %s133 = sphi 0, %s119
      %s139 = sphi 0, %s141
      %s142 = sphi 0, %s139
      %s143 = sphi 0, %s142
      %s159 = sphi 0, %s143
      %s165 = sphi 0, %s167
      %s168 = sphi 0, %s165
      %s169 = sphi 0, %s168
      %s185 = sphi 0, %s169
    $region4: #{_feat_classifier_impl.1} parent=1 // loop_header_branch
      %22 = sbr.rel (%p20) target = $region8
    $region5: #{_feat_classifier_impl.1} parent=1 // loop_body
      %s24 = ssub.s32 %s19, 1
      %s25 = ssub.s32 %s19, 2
      %s26 = sadd.s32 %s19, 1
      %s27 = ssub.s32 %s19, %s26
      %p28 = scmp.eq.s32.totalorder %s27, 0
      %s30 = sadd.s32 %s29, 1
      %s31 = scalar_select %p28, %s29, %s30
      %p34 = pneg %p28
      %p35 = scmp.eq.s32.totalorder %s19, 1
      %p36 = por %p34, %p35
      %p37 = scmp.ne.s32.totalorder %s29, %s32
      %p38 = scmp.eq.s32.totalorder %s19, 0
      %p39 = por %p37, %p38
      %p40 = scmp.ne.s32.totalorder %s29, %s32
      %p41 = scmp.eq.s32.totalorder %s24, 1
      %p42 = por %p40, %p41
      %p43 = scmp.ne.s32.totalorder %s32, %s33
      %p44 = scmp.eq.s32.totalorder %s24, 0
      %p45 = por %p43, %p44
      %p46 = scmp.ne.s32.totalorder %s32, %s33
      %p47 = scmp.eq.s32.totalorder %s25, 1
      %p48 = por %p46, %p47
      %p50 = scmp.ne.s32.totalorder %s33, %s49
      %p51 = scmp.eq.s32.totalorder %s25, 0
      %p52 = por %p50, %p51
      %s54 = sadd.s32 %s53, 1
      %p57 = scmp.eq.s32.totalorder %s19, 1
      %p58 = scmp.ne.s32.totalorder %s53, %s55
      %p59 = scmp.eq.s32.totalorder %s19, 0
      %p60 = por %p58, %p59
      %p61 = scmp.ne.s32.totalorder %s53, %s55
      %p62 = scmp.eq.s32.totalorder %s24, 1
      %p63 = por %p61, %p62
      %p64 = scmp.ne.s32.totalorder %s55, %s56
      %p65 = scmp.eq.s32.totalorder %s24, 0
      %p66 = por %p64, %p65
      %p67 = scmp.ne.s32.totalorder %s55, %s56
      %p68 = scmp.eq.s32.totalorder %s25, 1
      %p69 = por %p67, %p68
      %p71 = scmp.ne.s32.totalorder %s56, %s70
      %p72 = scmp.eq.s32.totalorder %s25, 0
      %p73 = por %p71, %p72
      %s75 = sadd.s32 %s74, 1
      %p78 = scmp.eq.s32.totalorder %s19, 1
      %p79 = scmp.ne.s32.totalorder %s74, %s76
      %p80 = scmp.eq.s32.totalorder %s19, 0
      %p81 = por %p79, %p80
      %p82 = scmp.ne.s32.totalorder %s74, %s76
      %p83 = scmp.eq.s32.totalorder %s24, 1
      %p84 = por %p82, %p83
      %p85 = scmp.ne.s32.totalorder %s76, %s77
      %p86 = scmp.eq.s32.totalorder %s24, 0
      %p87 = por %p85, %p86
      %p88 = scmp.ne.s32.totalorder %s76, %s77
      %p89 = scmp.eq.s32.totalorder %s25, 1
      %p90 = por %p88, %p89
      %p92 = scmp.ne.s32.totalorder %s77, %s91
      %p93 = scmp.eq.s32.totalorder %s25, 0
      %p94 = por %p92, %p93
      %s96 = sadd.s32 %s95, 1
      %p99 = scmp.eq.s32.totalorder %s19, 1
      %p100 = scmp.ne.s32.totalorder %s95, %s97
      %p101 = scmp.eq.s32.totalorder %s19, 0
      %p102 = por %p100, %p101
      %p103 = scmp.ne.s32.totalorder %s95, %s97
      %p104 = scmp.eq.s32.totalorder %s24, 1
      %p105 = por %p103, %p104
      %p106 = scmp.ne.s32.totalorder %s97, %s98
      %p107 = scmp.eq.s32.totalorder %s24, 0
      %p108 = por %p106, %p107
      %p109 = scmp.ne.s32.totalorder %s97, %s98
      %p110 = scmp.eq.s32.totalorder %s25, 1
      %p111 = por %p109, %p110
      %p113 = scmp.ne.s32.totalorder %s98, %s112
      %p114 = scmp.eq.s32.totalorder %s25, 0
      %p115 = por %p113, %p114
      %s117 = sadd.s32 %s116, 1
      %p120 = scmp.eq.s32.totalorder %s19, 1
      %p121 = scmp.ne.s32.totalorder %s116, %s118
      %p122 = scmp.eq.s32.totalorder %s19, 0
      %p123 = por %p121, %p122
      %p124 = scmp.ne.s32.totalorder %s116, %s118
      %p125 = scmp.eq.s32.totalorder %s24, 1
      %p126 = por %p124, %p125
      %p127 = scmp.ne.s32.totalorder %s118, %s119
      %p128 = scmp.eq.s32.totalorder %s24, 0
      %p129 = por %p127, %p128
      %p130 = scmp.ne.s32.totalorder %s118, %s119
      %p131 = scmp.eq.s32.totalorder %s25, 1
      %p132 = por %p130, %p131
      %p134 = scmp.ne.s32.totalorder %s119, %s133
      %p135 = scmp.eq.s32.totalorder %s25, 0
      %p136 = por %p134, %p135
      %s137 = ssub.s32 %s19, %s26
      %p138 = scmp.eq.s32.totalorder %s137, 0
      %s140 = sadd.s32 %s139, 1
      %s141 = scalar_select %p138, %s139, %s140
      %p144 = pneg %p138
      %p145 = scmp.eq.s32.totalorder %s19, 1
      %p146 = por %p144, %p145
      %p147 = scmp.ne.s32.totalorder %s139, %s142
      %p148 = scmp.eq.s32.totalorder %s19, 0
      %p149 = por %p147, %p148
      %p150 = scmp.ne.s32.totalorder %s139, %s142
      %p151 = scmp.eq.s32.totalorder %s24, 1
      %p152 = por %p150, %p151
      %p153 = scmp.ne.s32.totalorder %s142, %s143
      %p154 = scmp.eq.s32.totalorder %s24, 0
      %p155 = por %p153, %p154
      %p156 = scmp.ne.s32.totalorder %s142, %s143
      %p157 = scmp.eq.s32.totalorder %s25, 1
      %p158 = por %p156, %p157
      %p160 = scmp.ne.s32.totalorder %s143, %s159
      %p161 = scmp.eq.s32.totalorder %s25, 0
      %p162 = por %p160, %p161
      %s163 = ssub.s32 %s19, %s26
      %p164 = scmp.eq.s32.totalorder %s163, 0
      %s166 = sadd.s32 %s165, 1
      %s167 = scalar_select %p164, %s165, %s166
      %p170 = pneg %p164
      %p171 = scmp.eq.s32.totalorder %s19, 1
      %p172 = por %p170, %p171
      %p173 = scmp.ne.s32.totalorder %s165, %s168
      %p174 = scmp.eq.s32.totalorder %s19, 0
      %p175 = por %p173, %p174
      %p176 = scmp.ne.s32.totalorder %s165, %s168
      %p177 = scmp.eq.s32.totalorder %s24, 1
      %p178 = por %p176, %p177
      %p179 = scmp.ne.s32.totalorder %s168, %s169
      %p180 = scmp.eq.s32.totalorder %s24, 0
      %p181 = por %p179, %p180
      %p182 = scmp.ne.s32.totalorder %s168, %s169
      %p183 = scmp.eq.s32.totalorder %s25, 1
      %p184 = por %p182, %p183
      %p186 = scmp.ne.s32.totalorder %s169, %s185
      %p187 = scmp.eq.s32.totalorder %s25, 0
      %p188 = por %p186, %p187
      %p189 = scmp.le.s32.totalorder 1, %s19
      %p190 = scmp.lt.s32.totalorder %s19, 3
      %p191 = pnand %p189, %p190
      %p192 = pneg %p191
      // Predicated region
      $region9: #{_feat_classifier_impl.1} parent=5 // pred_check
        _
      $region10: #{_feat_classifier_impl.1} parent=5 // pred_check_branch
        %194 = sbr.rel (%p191) target = $region12
      $region11: #{_feat_classifier_impl.1} parent=5 // pred_region
        %s195 = ssub.s32 %s19, 1
        // Predicated region
        $region13: #{_feat_classifier_impl.1} parent=11 // pred_check
          %p196 = pneg %p66
        $region14: #{_feat_classifier_impl.1} parent=11 // pred_check_branch
          %198 = sbr.rel (%p196) target = $region16
        $region15: #{_feat_classifier_impl.1} parent=11 // pred_region
          _
        $region16: #{_feat_classifier_impl.1} parent=11 // pred_fallthru
          _
        // Predicated region
        $region17: #{_feat_classifier_impl.1} parent=11 // pred_check
          %p199 = pneg %p87
        $region18: #{_feat_classifier_impl.1} parent=11 // pred_check_branch
          %201 = sbr.rel (%p199) target = $region20
        $region19: #{_feat_classifier_impl.1} parent=11 // pred_region
          _
        $region20: #{_feat_classifier_impl.1} parent=11 // pred_fallthru
          _
        // Predicated region
        $region21: #{_feat_classifier_impl.1} parent=11 // pred_check
          %p202 = pneg %p108
        $region22: #{_feat_classifier_impl.1} parent=11 // pred_check_branch
          %204 = sbr.rel (%p202) target = $region24
        $region23: #{_feat_classifier_impl.1} parent=11 // pred_region
          _
        $region24: #{_feat_classifier_impl.1} parent=11 // pred_fallthru
          _
        // Predicated region
        $region25: #{_feat_classifier_impl.1} parent=11 // pred_check
          %p205 = pneg %p129
        $region26: #{_feat_classifier_impl.1} parent=11 // pred_check_branch
          %207 = sbr.rel (%p205) target = $region28
        $region27: #{_feat_classifier_impl.1} parent=11 // pred_region
          _
        $region28: #{_feat_classifier_impl.1} parent=11 // pred_fallthru
          _
      $region12: #{_feat_classifier_impl.1} parent=5 // pred_fallthru
        _
      %p208 = scmp.lt.s32.totalorder %s19, 2
      // Predicated region
      $region29: #{_feat_classifier_impl.1} parent=5 // pred_check
        %p209 = pneg %p208
      $region30: #{_feat_classifier_impl.1} parent=5 // pred_check_branch
        %211 = sbr.rel (%p209) target = $region32
      $region31: #{_feat_classifier_impl.1} parent=5 // pred_region
        // Predicated region
        $region33: #{_feat_classifier_impl.1} parent=31 // pred_check
          %p212 = pneg %p39
        $region34: #{_feat_classifier_impl.1} parent=31 // pred_check_branch
          %214 = sbr.rel (%p212) target = $region36
        $region35: #{_feat_classifier_impl.1} parent=31 // pred_region
          %p215 = scmp.lt.s32.totalorder %s19, 1
          %s216 = scalar_select %p215, %s19, 1
          %s217 = smul.addr %s216, 54
          %s218 = smul.addr %s217, 4
          %s219 = scalar_lea.vmem %s0, %s218
        $region36: #{_feat_classifier_impl.1} parent=31 // pred_fallthru
          _
      $region32: #{_feat_classifier_impl.1} parent=5 // pred_fallthru
        _
      %p220 = scmp.le.s32.totalorder 1, %s19
      %p221 = scmp.lt.s32.totalorder %s19, 3
      %p222 = pnand %p220, %p221
      %p223 = pneg %p222
      // Predicated region
      $region37: #{_feat_classifier_impl.1} parent=5 // pred_check
        _
      $region38: #{_feat_classifier_impl.1} parent=5 // pred_check_branch
        %225 = sbr.rel (%p222) target = $region40
      $region39: #{_feat_classifier_impl.1} parent=5 // pred_region
        %s226 = ssub.s32 %s19, 1
        %p227 = scmp.lt.s32.totalorder %s24, 1
        %s228 = scalar_select %p227, %s24, 1
        %s229 = smul.addr %s228, 54
        %s230 = smul.addr %s229, 4
        %s231 = scalar_lea.vmem %s0, %s230
        %p232 = pneg %p45
        %p233 = pneg %p42
        %p234 = pneg %p66
        %p235 = pneg %p63
        %p236 = pneg %p87
        %p237 = pneg %p84
        %p238 = pneg %p108
        %p239 = pneg %p105
        %p240 = pneg %p129
        %p241 = pneg %p126
        %p242 = pneg %p155
        %p243 = pneg %p152
        %s244 = sand.u32 %s142, 1
        %s245 = scalar_lea.sflag [#allocation3], %s244
        %s246 = sand.u32 %s142, 1
        %s247 = scalar_lea.vmem [#allocation2], %s246
        %p248 = pneg %p181
        %p249 = pneg %p178
        %s250 = sand.u32 %s168, 1
        %s251 = scalar_lea.sflag [#allocation5], %s250
        %s252 = sand.u32 %s168, 1
        %s253 = scalar_lea.vmem [#allocation4], %s252
        %p254 = scmp.lt.s32.totalorder %s24, 1
        %s255 = scalar_select %p254, %s24, 1
        %s256 = smul.addr %s255, 54
        %s257 = smul.addr %s256, 4
        %s258 = scalar_lea.vmem %s0, %s257
        %v260 = vld [vmem:[%s258] sm:$0xf]
        %v261 = vld [vmem:[%s258 + $0x4] sm:$0xf]
        %v262 = vld [vmem:[%s258 + $0xc] sm:$0xf]
        %v263 = vld [vmem:[%s258 + $0x10] sm:$0xf]
        %v264 = vld [vmem:[%s258 + $0x18] sm:$0xf]
        %v265 = vld [vmem:[%s258 + $0x1c] sm:$0xf]
        %v266 = vld [vmem:[%s258 + $0x24] sm:$0xf]
        %v267 = vld [vmem:[%s258 + $0x28] sm:$0xf]
        %v268 = vld [vmem:[%s258 + $0x30] sm:$0xf]
        %v269 = vld [vmem:[%s258 + $0x34] sm:$0xf]
        %v270 = vld [vmem:[%s258 + $0x3c] sm:$0xf]
        %v271 = vld [vmem:[%s258 + $0x40] sm:$0xf]
        %v272 = vld [vmem:[%s258 + $0x48] sm:$0xf]
        %v273 = vld [vmem:[%s258 + $0x4c] sm:$0xf]
        %v274 = vld [vmem:[%s258 + $0x54] sm:$0xf]
        %v275 = vld [vmem:[%s258 + $0x58] sm:$0xf]
        %v276 = vld [vmem:[%s258 + $0x60] sm:$0xf]
        %v277 = vld [vmem:[%s258 + $0x64] sm:$0xf]
        %v278 = vld [vmem:[%s258 + $0x6c] sm:$0xf]
        %v279 = vld [vmem:[%s258 + $0x70] sm:$0xf]
        %v280 = vld [vmem:[%s258 + $0x78] sm:$0xf]
        %v281 = vld [vmem:[%s258 + $0x7c] sm:$0xf]
        %v282 = vld [vmem:[%s258 + $0x84] sm:$0xf]
        %v283 = vld [vmem:[%s258 + $0x88] sm:$0xf]
        %v284 = vld [vmem:[%s258 + $0x90] sm:$0xf]
        %v285 = vld [vmem:[%s258 + $0x94] sm:$0xf]
        %v286 = vld [vmem:[%s258 + $0x9c] sm:$0xf]
        %v287 = vld [vmem:[%s258 + $0xa0] sm:$0xf]
        %v288 = vld [vmem:[%s258 + $0xa8] sm:$0xf]
        %v289 = vld [vmem:[%s258 + $0xac] sm:$0xf]
        %v290 = vld [vmem:[%s258 + $0xb4] sm:$0xf]
        %v291 = vld [vmem:[%s258 + $0xb8] sm:$0xf]
        %v292 = vld [vmem:[%s1] sm:$0x3]
        %v293 = vld [vmem:[%s258 + $0x8] sm:$0x1]
        %v294 = vld [vmem:[%s258 + $0x14] sm:$0x1]
        %v295 = vld [vmem:[%s258 + $0x20] sm:$0x1]
        %v296 = vld [vmem:[%s258 + $0x2c] sm:$0x1]
        %v297 = vld [vmem:[%s258 + $0x38] sm:$0x1]
        %v298 = vld [vmem:[%s258 + $0x44] sm:$0x1]
        %v299 = vld [vmem:[%s258 + $0x50] sm:$0x1]
        %v300 = vld [vmem:[%s258 + $0x5c] sm:$0x1]
        %v301 = vld [vmem:[%s258 + $0x68] sm:$0x1]
        %v302 = vld [vmem:[%s258 + $0x74] sm:$0x1]
        %v303 = vld [vmem:[%s258 + $0x80] sm:$0x1]
        %v304 = vld [vmem:[%s258 + $0x8c] sm:$0x1]
        %v305 = vld [vmem:[%s258 + $0x98] sm:$0x1]
        %v306 = vld [vmem:[%s258 + $0xa4] sm:$0x1]
        %v307 = vld [vmem:[%s258 + $0xb0] sm:$0x1]
        %v308 = vld [vmem:[%s258 + $0xbc] sm:$0x1]
        %vm309 = vsmask.f32 3328
        %vm310 = vsmask.f32 7440
        %vm311 = vmor %vm309, %vm310
        %v313 = vshrl.u32 %v260, 16
        %v315 = vrot.slane %v313, 4
        %v316 = vshll.u32 %v260, 16
        %v318 = vrot.slane %v316, 5
        %v319 = vor.u32 %v315, %v318
        %v320 = vrot.slane %v319, 4
        %v322 = vshll.u32 %v261, 16
        %v324 = vrot.slane %v322, 5
        %v325 = vsel %vm311, %v320, %v324
        %v326 = vshrl.u32 %v261, 16
        %v328 = vrot.slane %v326, 4
        %v329 = vor.u32 %v328, %v324
        %v330 = vrot.slane %v329, 4
        %v332 = vshll.u32 %v293, 16
        %v334 = vrot.slane %v332, 5
        %v335 = vsel %vm311, %v330, %v334
        %v337 = vshrl.u32 %v262, 16
        %v339 = vrot.slane %v337, 4
        %v340 = vshll.u32 %v262, 16
        %v342 = vrot.slane %v340, 5
        %v343 = vor.u32 %v339, %v342
        %v344 = vrot.slane %v343, 4
        %v346 = vshll.u32 %v263, 16
        %v348 = vrot.slane %v346, 5
        %v349 = vsel %vm311, %v344, %v348
        %v350 = vshrl.u32 %v263, 16
        %v352 = vrot.slane %v350, 4
        %v353 = vor.u32 %v352, %v348
        %v354 = vrot.slane %v353, 4
        %v356 = vshll.u32 %v294, 16
        %v358 = vrot.slane %v356, 5
        %v359 = vsel %vm311, %v354, %v358
        %v361 = vshrl.u32 %v264, 16
        %v363 = vrot.slane %v361, 4
        %v364 = vshll.u32 %v264, 16
        %v366 = vrot.slane %v364, 5
        %v367 = vor.u32 %v363, %v366
        %v368 = vrot.slane %v367, 4
        %v370 = vshll.u32 %v265, 16
        %v372 = vrot.slane %v370, 5
        %v373 = vsel %vm311, %v368, %v372
        %v374 = vshrl.u32 %v265, 16
        %v376 = vrot.slane %v374, 4
        %v377 = vor.u32 %v376, %v372
        %v378 = vrot.slane %v377, 4
        %v380 = vshll.u32 %v295, 16
        %v382 = vrot.slane %v380, 5
        %v383 = vsel %vm311, %v378, %v382
        %v385 = vshrl.u32 %v266, 16
        %v387 = vrot.slane %v385, 4
        %v388 = vshll.u32 %v266, 16
        %v390 = vrot.slane %v388, 5
        %v391 = vor.u32 %v387, %v390
        %v392 = vrot.slane %v391, 4
        %v394 = vshll.u32 %v267, 16
        %v396 = vrot.slane %v394, 5
        %v397 = vsel %vm311, %v392, %v396
        %v398 = vshrl.u32 %v267, 16
        %v400 = vrot.slane %v398, 4
        %v401 = vor.u32 %v400, %v396
        %v402 = vrot.slane %v401, 4
        %v404 = vshll.u32 %v296, 16
        %v406 = vrot.slane %v404, 5
        %v407 = vsel %vm311, %v402, %v406
        %v409 = vshrl.u32 %v268, 16
        %v411 = vrot.slane %v409, 4
        %v412 = vshll.u32 %v268, 16
        %v414 = vrot.slane %v412, 5
        %v415 = vor.u32 %v411, %v414
        %v416 = vrot.slane %v415, 4
        %v418 = vshll.u32 %v269, 16
        %v420 = vrot.slane %v418, 5
        %v421 = vsel %vm311, %v416, %v420
        %v422 = vshrl.u32 %v269, 16
        %v424 = vrot.slane %v422, 4
        %v425 = vor.u32 %v424, %v420
        %v426 = vrot.slane %v425, 4
        %v428 = vshll.u32 %v297, 16
        %v430 = vrot.slane %v428, 5
        %v431 = vsel %vm311, %v426, %v430
        %v433 = vshrl.u32 %v270, 16
        %v435 = vrot.slane %v433, 4
        %v436 = vshll.u32 %v270, 16
        %v438 = vrot.slane %v436, 5
        %v439 = vor.u32 %v435, %v438
        %v440 = vrot.slane %v439, 4
        %v442 = vshll.u32 %v271, 16
        %v444 = vrot.slane %v442, 5
        %v445 = vsel %vm311, %v440, %v444
        %v446 = vshrl.u32 %v271, 16
        %v448 = vrot.slane %v446, 4
        %v449 = vor.u32 %v448, %v444
        %v450 = vrot.slane %v449, 4
        %v452 = vshll.u32 %v298, 16
        %v454 = vrot.slane %v452, 5
        %v455 = vsel %vm311, %v450, %v454
        %v457 = vshrl.u32 %v272, 16
        %v459 = vrot.slane %v457, 4
        %v460 = vshll.u32 %v272, 16
        %v462 = vrot.slane %v460, 5
        %v463 = vor.u32 %v459, %v462
        %v464 = vrot.slane %v463, 4
        %v466 = vshll.u32 %v273, 16
        %v468 = vrot.slane %v466, 5
        %v469 = vsel %vm311, %v464, %v468
        %v470 = vshrl.u32 %v273, 16
        %v472 = vrot.slane %v470, 4
        %v473 = vor.u32 %v472, %v468
        %v474 = vrot.slane %v473, 4
        %v476 = vshll.u32 %v299, 16
        %v478 = vrot.slane %v476, 5
        %v479 = vsel %vm311, %v474, %v478
        %v481 = vshrl.u32 %v274, 16
        %v483 = vrot.slane %v481, 4
        %v484 = vshll.u32 %v274, 16
        %v486 = vrot.slane %v484, 5
        %v487 = vor.u32 %v483, %v486
        %v488 = vrot.slane %v487, 4
        %v490 = vshll.u32 %v275, 16
        %v492 = vrot.slane %v490, 5
        %v493 = vsel %vm311, %v488, %v492
        %v494 = vshrl.u32 %v275, 16
        %v496 = vrot.slane %v494, 4
        %v497 = vor.u32 %v496, %v492
        %v498 = vrot.slane %v497, 4
        %v500 = vshll.u32 %v300, 16
        %v502 = vrot.slane %v500, 5
        %v503 = vsel %vm311, %v498, %v502
        %v505 = vshrl.u32 %v276, 16
        %v507 = vrot.slane %v505, 4
        %v508 = vshll.u32 %v276, 16
        %v510 = vrot.slane %v508, 5
        %v511 = vor.u32 %v507, %v510
        %v512 = vrot.slane %v511, 4
        %v514 = vshll.u32 %v277, 16
        %v516 = vrot.slane %v514, 5
        %v517 = vsel %vm311, %v512, %v516
        %v518 = vshrl.u32 %v277, 16
        %v520 = vrot.slane %v518, 4
        %v521 = vor.u32 %v520, %v516
        %v522 = vrot.slane %v521, 4
        %v524 = vshll.u32 %v301, 16
        %v526 = vrot.slane %v524, 5
        %v527 = vsel %vm311, %v522, %v526
        %v529 = vshrl.u32 %v278, 16
        %v531 = vrot.slane %v529, 4
        %v532 = vshll.u32 %v278, 16
        %v534 = vrot.slane %v532, 5
        %v535 = vor.u32 %v531, %v534
        %v536 = vrot.slane %v535, 4
        %v538 = vshll.u32 %v279, 16
        %v540 = vrot.slane %v538, 5
        %v541 = vsel %vm311, %v536, %v540
        %v542 = vshrl.u32 %v279, 16
        %v544 = vrot.slane %v542, 4
        %v545 = vor.u32 %v544, %v540
        %v546 = vrot.slane %v545, 4
        %v548 = vshll.u32 %v302, 16
        %v550 = vrot.slane %v548, 5
        %v551 = vsel %vm311, %v546, %v550
        %v553 = vshrl.u32 %v280, 16
        %v555 = vrot.slane %v553, 4
        %v556 = vshll.u32 %v280, 16
        %v558 = vrot.slane %v556, 5
        %v559 = vor.u32 %v555, %v558
        %v560 = vrot.slane %v559, 4
        %v562 = vshll.u32 %v281, 16
        %v564 = vrot.slane %v562, 5
        %v565 = vsel %vm311, %v560, %v564
        %v566 = vshrl.u32 %v281, 16
        %v568 = vrot.slane %v566, 4
        %v569 = vor.u32 %v568, %v564
        %v570 = vrot.slane %v569, 4
        %v572 = vshll.u32 %v303, 16
        %v574 = vrot.slane %v572, 5
        %v575 = vsel %vm311, %v570, %v574
        %v577 = vshrl.u32 %v282, 16
        %v579 = vrot.slane %v577, 4
        %v580 = vshll.u32 %v282, 16
        %v582 = vrot.slane %v580, 5
        %v583 = vor.u32 %v579, %v582
        %v584 = vrot.slane %v583, 4
        %v586 = vshll.u32 %v283, 16
        %v588 = vrot.slane %v586, 5
        %v589 = vsel %vm311, %v584, %v588
        %v590 = vshrl.u32 %v283, 16
        %v592 = vrot.slane %v590, 4
        %v593 = vor.u32 %v592, %v588
        %v594 = vrot.slane %v593, 4
        %v596 = vshll.u32 %v304, 16
        %v598 = vrot.slane %v596, 5
        %v599 = vsel %vm311, %v594, %v598
        %v601 = vshrl.u32 %v284, 16
        %v603 = vrot.slane %v601, 4
        %v604 = vshll.u32 %v284, 16
        %v606 = vrot.slane %v604, 5
        %v607 = vor.u32 %v603, %v606
        %v608 = vrot.slane %v607, 4
        %v610 = vshll.u32 %v285, 16
        %v612 = vrot.slane %v610, 5
        %v613 = vsel %vm311, %v608, %v612
        %v614 = vshrl.u32 %v285, 16
        %v616 = vrot.slane %v614, 4
        %v617 = vor.u32 %v616, %v612
        %v618 = vrot.slane %v617, 4
        %v620 = vshll.u32 %v305, 16
        %v622 = vrot.slane %v620, 5
        %v623 = vsel %vm311, %v618, %v622
        %v625 = vshrl.u32 %v286, 16
        %v627 = vrot.slane %v625, 4
        %v628 = vshll.u32 %v286, 16
        %v630 = vrot.slane %v628, 5
        %v631 = vor.u32 %v627, %v630
        %v632 = vrot.slane %v631, 4
        %v634 = vshll.u32 %v287, 16
        %v636 = vrot.slane %v634, 5
        %v637 = vsel %vm311, %v632, %v636
        %v638 = vshrl.u32 %v287, 16
        %v640 = vrot.slane %v638, 4
        %v641 = vor.u32 %v640, %v636
        %v642 = vrot.slane %v641, 4
        %v644 = vshll.u32 %v306, 16
        %v646 = vrot.slane %v644, 5
        %v647 = vsel %vm311, %v642, %v646
        %v649 = vshrl.u32 %v288, 16
        %v651 = vrot.slane %v649, 4
        %v652 = vshll.u32 %v288, 16
        %v654 = vrot.slane %v652, 5
        %v655 = vor.u32 %v651, %v654
        %v656 = vrot.slane %v655, 4
        %v658 = vshll.u32 %v289, 16
        %v660 = vrot.slane %v658, 5
        %v661 = vsel %vm311, %v656, %v660
        %v662 = vshrl.u32 %v289, 16
        %v664 = vrot.slane %v662, 4
        %v665 = vor.u32 %v664, %v660
        %v666 = vrot.slane %v665, 4
        %v668 = vshll.u32 %v307, 16
        %v670 = vrot.slane %v668, 5
        %v671 = vsel %vm311, %v666, %v670
        %v673 = vshrl.u32 %v290, 16
        %v675 = vrot.slane %v673, 4
        %v676 = vshll.u32 %v290, 16
        %v678 = vrot.slane %v676, 5
        %v679 = vor.u32 %v675, %v678
        %v680 = vrot.slane %v679, 4
        %v682 = vshll.u32 %v291, 16
        %v684 = vrot.slane %v682, 5
        %v685 = vsel %vm311, %v680, %v684
        %v686 = vshrl.u32 %v291, 16
        %v688 = vrot.slane %v686, 4
        %v689 = vor.u32 %v688, %v684
        %v690 = vrot.slane %v689, 4
        %v692 = vshll.u32 %v308, 16
        %v694 = vrot.slane %v692, 5
        %v695 = vsel %vm311, %v690, %v694
        %s696 = scalar_lea.vmem %s1, 2
        %v697 = vld [vmem:[%s696] sm:$0x3]
        %v698 = vunpack.c.l.b16 %v325
        %v699 = vunpack.c.l.b16 %v335
        %v700 = vunpack.c.l.b16 %v349
        %v701 = vunpack.c.l.b16 %v359
        %v702 = vunpack.c.l.b16 %v373
        %v703 = vunpack.c.l.b16 %v383
        %v704 = vunpack.c.l.b16 %v397
        %v705 = vunpack.c.l.b16 %v407
        %v706 = vunpack.c.l.b16 %v421
        %v707 = vunpack.c.l.b16 %v431
        %v708 = vunpack.c.l.b16 %v445
        %v709 = vunpack.c.l.b16 %v455
        %v710 = vunpack.c.l.b16 %v469
        %v711 = vunpack.c.l.b16 %v479
        %v712 = vunpack.c.l.b16 %v493
        %v713 = vunpack.c.l.b16 %v503
        %v714 = vunpack.c.l.b16 %v517
        %v715 = vunpack.c.l.b16 %v527
        %v716 = vunpack.c.l.b16 %v541
        %v717 = vunpack.c.l.b16 %v551
        %v718 = vunpack.c.l.b16 %v565
        %v719 = vunpack.c.l.b16 %v575
        %v720 = vunpack.c.l.b16 %v589
        %v721 = vunpack.c.l.b16 %v599
        %v722 = vunpack.c.l.b16 %v613
        %v723 = vunpack.c.l.b16 %v623
        %v724 = vunpack.c.l.b16 %v637
        %v725 = vunpack.c.l.b16 %v647
        %v726 = vunpack.c.l.b16 %v661
        %v727 = vunpack.c.l.b16 %v671
        %v728 = vunpack.c.l.b16 %v685
        %v729 = vunpack.c.l.b16 %v695
        %v730 = vpack.c.b16 %v699, %v698
        %v731 = vpack.c.b16 %v701, %v700
        %v732 = vpack.c.b16 %v703, %v702
        %v733 = vpack.c.b16 %v705, %v704
        %v734 = vpack.c.b16 %v707, %v706
        %v735 = vpack.c.b16 %v709, %v708
        %v736 = vpack.c.b16 %v711, %v710
        %v737 = vpack.c.b16 %v713, %v712
        %v738 = vpack.c.b16 %v715, %v714
        %v739 = vpack.c.b16 %v717, %v716
        %v740 = vpack.c.b16 %v719, %v718
        %v741 = vpack.c.b16 %v721, %v720
        %v742 = vpack.c.b16 %v723, %v722
        %v743 = vpack.c.b16 %v725, %v724
        %v744 = vpack.c.b16 %v727, %v726
        %v745 = vpack.c.b16 %v729, %v728
        %vm746 = vcmask 31744
        %v748 = vsel %vm746, %v730, 0
        %v751 = vsel %vm746, %v731, 0
        %v754 = vsel %vm746, %v732, 0
        %v757 = vsel %vm746, %v733, 0
        %v760 = vsel %vm746, %v734, 0
        %v763 = vsel %vm746, %v735, 0
        %v766 = vsel %vm746, %v736, 0
        %v769 = vsel %vm746, %v737, 0
        %v772 = vsel %vm746, %v738, 0
        %v775 = vsel %vm746, %v739, 0
        %v778 = vsel %vm746, %v740, 0
        %v781 = vsel %vm746, %v741, 0
        %v784 = vsel %vm746, %v742, 0
        %v787 = vsel %vm746, %v743, 0
        %v790 = vsel %vm746, %v744, 0
        %v793 = vsel %vm746, %v745, 0
        %vm795 = vcmask 1041408
        %v797 = vsel %vm795, %v697, 0
        %799 = vmatprep.subr.bf16.mxu0 0
        %800 = vmatpush1.bf16.msra.mxu0 0
        %801 = vmatprep.subr.bf16.mxu0 0
        %802 = vmatpush1.bf16.msra.mxu0 0
        %803 = vmatprep.subr.bf16.mxu0 0
        %804 = vmatpush1.bf16.msra.mxu0 0
        %805 = vmatprep.subr.bf16.mxu0 0
        %806 = vmatpush1.bf16.msra.mxu0 0
        %807 = vmatprep.subr.bf16.mxu0 0
        %808 = vmatpush1.bf16.msra.mxu0 0
        %809 = vmatprep.subr.bf16.mxu0 0
        %810 = vmatpush1.bf16.msra.mxu0 0
        %811 = vmatprep.subr.bf16.mxu0 0
        %812 = vmatpush1.bf16.msra.mxu0 0
        %813 = vmatprep.subr.bf16.mxu0 0
        %814 = vmatpush1.bf16.msra.mxu0 %v797
        %815 = vmatprep.subr.bf16.mxu0 0
        %816 = vmatpush2.bf16.msra.mxu0 0
        %817 = vmatprep.subr.bf16.mxu0 0
        %818 = vmatpush2.bf16.msra.mxu0 0
        %819 = vmatprep.subr.bf16.mxu0 0
        %820 = vmatpush2.bf16.msra.mxu0 0
        %821 = vmatprep.subr.bf16.mxu0 0
        %822 = vmatpush2.bf16.msra.mxu0 0
        %823 = vmatprep.subr.bf16.mxu0 0
        %824 = vmatpush2.bf16.msra.mxu0 0
        %825 = vmatprep.subr.bf16.mxu0 0
        %826 = vmatpush2.bf16.msra.mxu0 0
        %827 = vmatprep.subr.bf16.mxu0 0
        %828 = vmatpush2.bf16.msra.mxu0 0
        %829 = vmatprep.subr.bf16.mxu0 0
        %830 = vmatpush2.bf16.msra.mxu0 0
        %831 = vmatprep.mubr.bf16.mxu0 0
        %832 = vmatmul.mubr.bf16.gmra.mxu0 %v748
        %v833 = vpop.f32.mrf.mxu0
        %v834 = vadd.f32 0.0, %v833
        %v835 = vpop.f32.mrf.mxu0
        %v836 = vpop.f32.mrf.mxu0
        %v837 = vadd.f32 0.0, %v836
        %v838 = vpop.f32.mrf.mxu0
        %839 = vmatprep.mubr.bf16.mxu0 0
        %840 = vmatmul.mubr.bf16.gmra.mxu0 %v751
        %v841 = vpop.f32.mrf.mxu0
        %v842 = vadd.f32 0.0, %v841
        %v843 = vpop.f32.mrf.mxu0
        %v844 = vpop.f32.mrf.mxu0
        %v845 = vadd.f32 0.0, %v844
        %v846 = vpop.f32.mrf.mxu0
        %847 = vmatprep.mubr.bf16.mxu0 0
        %848 = vmatmul.mubr.bf16.gmra.mxu0 %v754
        %v849 = vpop.f32.mrf.mxu0
        %v850 = vadd.f32 0.0, %v849
        %v851 = vpop.f32.mrf.mxu0
        %v852 = vpop.f32.mrf.mxu0
        %v853 = vadd.f32 0.0, %v852
        %v854 = vpop.f32.mrf.mxu0
        %855 = vmatprep.mubr.bf16.mxu0 0
        %856 = vmatmul.mubr.bf16.gmra.mxu0 %v757
        %v857 = vpop.f32.mrf.mxu0
        %v858 = vadd.f32 0.0, %v857
        %v859 = vpop.f32.mrf.mxu0
        %v860 = vpop.f32.mrf.mxu0
        %v861 = vadd.f32 0.0, %v860
        %v862 = vpop.f32.mrf.mxu0
        %863 = vmatprep.mubr.bf16.mxu0 0
        %864 = vmatmul.mubr.bf16.gmra.mxu0 %v760
        %v865 = vpop.f32.mrf.mxu0
        %v866 = vadd.f32 0.0, %v865
        %v867 = vpop.f32.mrf.mxu0
        %v868 = vpop.f32.mrf.mxu0
        %v869 = vadd.f32 0.0, %v868
        %v870 = vpop.f32.mrf.mxu0
        %871 = vmatprep.mubr.bf16.mxu0 0
        %872 = vmatmul.mubr.bf16.gmra.mxu0 %v763
        %v873 = vpop.f32.mrf.mxu0
        %v874 = vadd.f32 0.0, %v873
        %v875 = vpop.f32.mrf.mxu0
        %v876 = vpop.f32.mrf.mxu0
        %v877 = vadd.f32 0.0, %v876
        %v878 = vpop.f32.mrf.mxu0
        %879 = vmatprep.mubr.bf16.mxu0 0
        %880 = vmatmul.mubr.bf16.gmra.mxu0 %v766
        %v881 = vpop.f32.mrf.mxu0
        %v882 = vadd.f32 0.0, %v881
        %v883 = vpop.f32.mrf.mxu0
        %v884 = vpop.f32.mrf.mxu0
        %v885 = vadd.f32 0.0, %v884
        %v886 = vpop.f32.mrf.mxu0
        %887 = vmatprep.mubr.bf16.mxu0 0
        %888 = vmatmul.mubr.bf16.gmra.mxu0 %v769
        %v889 = vpop.f32.mrf.mxu0
        %v890 = vadd.f32 0.0, %v889
        %v891 = vpop.f32.mrf.mxu0
        %v892 = vpop.f32.mrf.mxu0
        %v893 = vadd.f32 0.0, %v892
        %v894 = vpop.f32.mrf.mxu0
        %895 = vmatprep.mubr.bf16.mxu0 0
        %896 = vmatmul.mubr.bf16.gmra.mxu0 %v772
        %v897 = vpop.f32.mrf.mxu0
        %v898 = vadd.f32 0.0, %v897
        %v899 = vpop.f32.mrf.mxu0
        %v900 = vpop.f32.mrf.mxu0
        %v901 = vadd.f32 0.0, %v900
        %v902 = vpop.f32.mrf.mxu0
        %903 = vmatprep.mubr.bf16.mxu0 0
        %904 = vmatmul.mubr.bf16.gmra.mxu0 %v775
        %v905 = vpop.f32.mrf.mxu0
        %v906 = vadd.f32 0.0, %v905
        %v907 = vpop.f32.mrf.mxu0
        %v908 = vpop.f32.mrf.mxu0
        %v909 = vadd.f32 0.0, %v908
        %v910 = vpop.f32.mrf.mxu0
        %911 = vmatprep.mubr.bf16.mxu0 0
        %912 = vmatmul.mubr.bf16.gmra.mxu0 %v778
        %v913 = vpop.f32.mrf.mxu0
        %v914 = vadd.f32 0.0, %v913
        %v915 = vpop.f32.mrf.mxu0
        %v916 = vpop.f32.mrf.mxu0
        %v917 = vadd.f32 0.0, %v916
        %v918 = vpop.f32.mrf.mxu0
        %919 = vmatprep.mubr.bf16.mxu0 0
        %920 = vmatmul.mubr.bf16.gmra.mxu0 %v781
        %v921 = vpop.f32.mrf.mxu0
        %v922 = vadd.f32 0.0, %v921
        %v923 = vpop.f32.mrf.mxu0
        %v924 = vpop.f32.mrf.mxu0
        %v925 = vadd.f32 0.0, %v924
        %v926 = vpop.f32.mrf.mxu0
        %927 = vmatprep.mubr.bf16.mxu0 0
        %928 = vmatmul.mubr.bf16.gmra.mxu0 %v784
        %v929 = vpop.f32.mrf.mxu0
        %v930 = vadd.f32 0.0, %v929
        %v931 = vpop.f32.mrf.mxu0
        %v932 = vpop.f32.mrf.mxu0
        %v933 = vadd.f32 0.0, %v932
        %v934 = vpop.f32.mrf.mxu0
        %935 = vmatprep.mubr.bf16.mxu0 0
        %936 = vmatmul.mubr.bf16.gmra.mxu0 %v787
        %v937 = vpop.f32.mrf.mxu0
        %v938 = vadd.f32 0.0, %v937
        %v939 = vpop.f32.mrf.mxu0
        %v940 = vpop.f32.mrf.mxu0
        %v941 = vadd.f32 0.0, %v940
        %v942 = vpop.f32.mrf.mxu0
        %943 = vmatprep.mubr.bf16.mxu0 0
        %944 = vmatmul.mubr.bf16.gmra.mxu0 %v790
        %v945 = vpop.f32.mrf.mxu0
        %v946 = vadd.f32 0.0, %v945
        %v947 = vpop.f32.mrf.mxu0
        %v948 = vpop.f32.mrf.mxu0
        %v949 = vadd.f32 0.0, %v948
        %v950 = vpop.f32.mrf.mxu0
        %951 = vmatprep.mubr.bf16.mxu0 0
        %952 = vmatmul.mubr.bf16.gmra.mxu0 %v793
        %v953 = vpop.f32.mrf.mxu0
        %v954 = vadd.f32 0.0, %v953
        %v955 = vpop.f32.mrf.mxu0
        %v956 = vpop.f32.mrf.mxu0
        %v957 = vadd.f32 0.0, %v956
        %v958 = vpop.f32.mrf.mxu0
        %959 = vdwg.mxu0
        %v992 = vunpack.c.l.b16 %v260
        %v993 = vunpack.c.l.b16 %v261
        %v994 = vunpack.c.l.b16 %v262
        %v995 = vunpack.c.l.b16 %v263
        %v996 = vunpack.c.l.b16 %v264
        %v997 = vunpack.c.l.b16 %v265
        %v998 = vunpack.c.l.b16 %v266
        %v999 = vunpack.c.l.b16 %v267
        %v1000 = vunpack.c.l.b16 %v268
        %v1001 = vunpack.c.l.b16 %v269
        %v1002 = vunpack.c.l.b16 %v270
        %v1003 = vunpack.c.l.b16 %v271
        %v1004 = vunpack.c.l.b16 %v272
        %v1005 = vunpack.c.l.b16 %v273
        %v1006 = vunpack.c.l.b16 %v274
        %v1007 = vunpack.c.l.b16 %v275
        %v1008 = vunpack.c.l.b16 %v276
        %v1009 = vunpack.c.l.b16 %v277
        %v1010 = vunpack.c.l.b16 %v278
        %v1011 = vunpack.c.l.b16 %v279
        %v1012 = vunpack.c.l.b16 %v280
        %v1013 = vunpack.c.l.b16 %v281
        %v1014 = vunpack.c.l.b16 %v282
        %v1015 = vunpack.c.l.b16 %v283
        %v1016 = vunpack.c.l.b16 %v284
        %v1017 = vunpack.c.l.b16 %v285
        %v1018 = vunpack.c.l.b16 %v286
        %v1019 = vunpack.c.l.b16 %v287
        %v1020 = vunpack.c.l.b16 %v288
        %v1021 = vunpack.c.l.b16 %v289
        %v1022 = vunpack.c.l.b16 %v290
        %v1023 = vunpack.c.l.b16 %v291
        %v1024 = vpack.c.b16 %v993, %v992
        %v1025 = vpack.c.b16 %v995, %v994
        %v1026 = vpack.c.b16 %v997, %v996
        %v1027 = vpack.c.b16 %v999, %v998
        %v1028 = vpack.c.b16 %v1001, %v1000
        %v1029 = vpack.c.b16 %v1003, %v1002
        %v1030 = vpack.c.b16 %v1005, %v1004
        %v1031 = vpack.c.b16 %v1007, %v1006
        %v1032 = vpack.c.b16 %v1009, %v1008
        %v1033 = vpack.c.b16 %v1011, %v1010
        %v1034 = vpack.c.b16 %v1013, %v1012
        %v1035 = vpack.c.b16 %v1015, %v1014
        %v1036 = vpack.c.b16 %v1017, %v1016
        %v1037 = vpack.c.b16 %v1019, %v1018
        %v1038 = vpack.c.b16 %v1021, %v1020
        %v1039 = vpack.c.b16 %v1023, %v1022
        %v1041 = vsel %vm746, %v1024, 0
        %v1044 = vsel %vm746, %v1025, 0
        %v1047 = vsel %vm746, %v1026, 0
        %v1050 = vsel %vm746, %v1027, 0
        %v1053 = vsel %vm746, %v1028, 0
        %v1056 = vsel %vm746, %v1029, 0
        %v1059 = vsel %vm746, %v1030, 0
        %v1062 = vsel %vm746, %v1031, 0
        %v1065 = vsel %vm746, %v1032, 0
        %v1068 = vsel %vm746, %v1033, 0
        %v1071 = vsel %vm746, %v1034, 0
        %v1074 = vsel %vm746, %v1035, 0
        %v1077 = vsel %vm746, %v1036, 0
        %v1080 = vsel %vm746, %v1037, 0
        %v1083 = vsel %vm746, %v1038, 0
        %v1086 = vsel %vm746, %v1039, 0
        %v1089 = vsel %vm795, %v292, 0
        %1091 = vmatprep.subr.bf16.mxu0 0
        %1092 = vmatpush1.bf16.msra.mxu0 0
        %1093 = vmatprep.subr.bf16.mxu0 0
        %1094 = vmatpush1.bf16.msra.mxu0 0
        %1095 = vmatprep.subr.bf16.mxu0 0
        %1096 = vmatpush1.bf16.msra.mxu0 0
        %1097 = vmatprep.subr.bf16.mxu0 0
        %1098 = vmatpush1.bf16.msra.mxu0 0
        %1099 = vmatprep.subr.bf16.mxu0 0
        %1100 = vmatpush1.bf16.msra.mxu0 0
        %1101 = vmatprep.subr.bf16.mxu0 0
        %1102 = vmatpush1.bf16.msra.mxu0 0
        %1103 = vmatprep.subr.bf16.mxu0 0
        %1104 = vmatpush1.bf16.msra.mxu0 0
        %1105 = vmatprep.subr.bf16.mxu0 0
        %1106 = vmatpush1.bf16.msra.mxu0 %v1089
        %1107 = vmatprep.subr.bf16.mxu0 0
        %1108 = vmatpush2.bf16.msra.mxu0 0
        %1109 = vmatprep.subr.bf16.mxu0 0
        %1110 = vmatpush2.bf16.msra.mxu0 0
        %1111 = vmatprep.subr.bf16.mxu0 0
        %1112 = vmatpush2.bf16.msra.mxu0 0
        %1113 = vmatprep.subr.bf16.mxu0 0
        %1114 = vmatpush2.bf16.msra.mxu0 0
        %1115 = vmatprep.subr.bf16.mxu0 0
        %1116 = vmatpush2.bf16.msra.mxu0 0
        %1117 = vmatprep.subr.bf16.mxu0 0
        %1118 = vmatpush2.bf16.msra.mxu0 0
        %1119 = vmatprep.subr.bf16.mxu0 0
        %1120 = vmatpush2.bf16.msra.mxu0 0
        %1121 = vmatprep.subr.bf16.mxu0 0
        %1122 = vmatpush2.bf16.msra.mxu0 0
        %1123 = vmatprep.mubr.bf16.mxu0 0
        %1124 = vmatmul.mubr.bf16.gmra.mxu0 %v1041
        %v1125 = vpop.f32.mrf.mxu0
        %v1126 = vadd.f32 %v834, %v1125
        %v1127 = vpop.f32.mrf.mxu0
        %v1128 = vpop.f32.mrf.mxu0
        %v1129 = vadd.f32 %v837, %v1128
        %v1130 = vpop.f32.mrf.mxu0
        %1131 = vmatprep.mubr.bf16.mxu0 0
        %1132 = vmatmul.mubr.bf16.gmra.mxu0 %v1044
        %v1133 = vpop.f32.mrf.mxu0
        %v1134 = vadd.f32 %v842, %v1133
        %v1135 = vpop.f32.mrf.mxu0
        %v1136 = vpop.f32.mrf.mxu0
        %v1137 = vadd.f32 %v845, %v1136
        %v1138 = vpop.f32.mrf.mxu0
        %1139 = vmatprep.mubr.bf16.mxu0 0
        %1140 = vmatmul.mubr.bf16.gmra.mxu0 %v1047
        %v1141 = vpop.f32.mrf.mxu0
        %v1142 = vadd.f32 %v850, %v1141
        %v1143 = vpop.f32.mrf.mxu0
        %v1144 = vpop.f32.mrf.mxu0
        %v1145 = vadd.f32 %v853, %v1144
        %v1146 = vpop.f32.mrf.mxu0
        %1147 = vmatprep.mubr.bf16.mxu0 0
        %1148 = vmatmul.mubr.bf16.gmra.mxu0 %v1050
        %v1149 = vpop.f32.mrf.mxu0
        %v1150 = vadd.f32 %v858, %v1149
        %v1151 = vpop.f32.mrf.mxu0
        %v1152 = vpop.f32.mrf.mxu0
        %v1153 = vadd.f32 %v861, %v1152
        %v1154 = vpop.f32.mrf.mxu0
        %1155 = vmatprep.mubr.bf16.mxu0 0
        %1156 = vmatmul.mubr.bf16.gmra.mxu0 %v1053
        %v1157 = vpop.f32.mrf.mxu0
        %v1158 = vadd.f32 %v866, %v1157
        %v1159 = vpop.f32.mrf.mxu0
        %v1160 = vpop.f32.mrf.mxu0
        %v1161 = vadd.f32 %v869, %v1160
        %v1162 = vpop.f32.mrf.mxu0
        %1163 = vmatprep.mubr.bf16.mxu0 0
        %1164 = vmatmul.mubr.bf16.gmra.mxu0 %v1056
        %v1165 = vpop.f32.mrf.mxu0
        %v1166 = vadd.f32 %v874, %v1165
        %v1167 = vpop.f32.mrf.mxu0
        %v1168 = vpop.f32.mrf.mxu0
        %v1169 = vadd.f32 %v877, %v1168
        %v1170 = vpop.f32.mrf.mxu0
        %1171 = vmatprep.mubr.bf16.mxu0 0
        %1172 = vmatmul.mubr.bf16.gmra.mxu0 %v1059
        %v1173 = vpop.f32.mrf.mxu0
        %v1174 = vadd.f32 %v882, %v1173
        %v1175 = vpop.f32.mrf.mxu0
        %v1176 = vpop.f32.mrf.mxu0
        %v1177 = vadd.f32 %v885, %v1176
        %v1178 = vpop.f32.mrf.mxu0
        %1179 = vmatprep.mubr.bf16.mxu0 0
        %1180 = vmatmul.mubr.bf16.gmra.mxu0 %v1062
        %v1181 = vpop.f32.mrf.mxu0
        %v1182 = vadd.f32 %v890, %v1181
        %v1183 = vpop.f32.mrf.mxu0
        %v1184 = vpop.f32.mrf.mxu0
        %v1185 = vadd.f32 %v893, %v1184
        %v1186 = vpop.f32.mrf.mxu0
        %1187 = vmatprep.mubr.bf16.mxu0 0
        %1188 = vmatmul.mubr.bf16.gmra.mxu0 %v1065
        %v1189 = vpop.f32.mrf.mxu0
        %v1190 = vadd.f32 %v898, %v1189
        %v1191 = vpop.f32.mrf.mxu0
        %v1192 = vpop.f32.mrf.mxu0
        %v1193 = vadd.f32 %v901, %v1192
        %v1194 = vpop.f32.mrf.mxu0
        %1195 = vmatprep.mubr.bf16.mxu0 0
        %1196 = vmatmul.mubr.bf16.gmra.mxu0 %v1068
        %v1197 = vpop.f32.mrf.mxu0
        %v1198 = vadd.f32 %v906, %v1197
        %v1199 = vpop.f32.mrf.mxu0
        %v1200 = vpop.f32.mrf.mxu0
        %v1201 = vadd.f32 %v909, %v1200
        %v1202 = vpop.f32.mrf.mxu0
        %1203 = vmatprep.mubr.bf16.mxu0 0
        %1204 = vmatmul.mubr.bf16.gmra.mxu0 %v1071
        %v1205 = vpop.f32.mrf.mxu0
        %v1206 = vadd.f32 %v914, %v1205
        %v1207 = vpop.f32.mrf.mxu0
        %v1208 = vpop.f32.mrf.mxu0
        %v1209 = vadd.f32 %v917, %v1208
        %v1210 = vpop.f32.mrf.mxu0
        %1211 = vmatprep.mubr.bf16.mxu0 0
        %1212 = vmatmul.mubr.bf16.gmra.mxu0 %v1074
        %v1213 = vpop.f32.mrf.mxu0
        %v1214 = vadd.f32 %v922, %v1213
        %v1215 = vpop.f32.mrf.mxu0
        %v1216 = vpop.f32.mrf.mxu0
        %v1217 = vadd.f32 %v925, %v1216
        %v1218 = vpop.f32.mrf.mxu0
        %1219 = vmatprep.mubr.bf16.mxu0 0
        %1220 = vmatmul.mubr.bf16.gmra.mxu0 %v1077
        %v1221 = vpop.f32.mrf.mxu0
        %v1222 = vadd.f32 %v930, %v1221
        %v1223 = vpop.f32.mrf.mxu0
        %v1224 = vpop.f32.mrf.mxu0
        %v1225 = vadd.f32 %v933, %v1224
        %v1226 = vpop.f32.mrf.mxu0
        %1227 = vmatprep.mubr.bf16.mxu0 0
        %1228 = vmatmul.mubr.bf16.gmra.mxu0 %v1080
        %v1229 = vpop.f32.mrf.mxu0
        %v1230 = vadd.f32 %v938, %v1229
        %v1231 = vpop.f32.mrf.mxu0
        %v1232 = vpop.f32.mrf.mxu0
        %v1233 = vadd.f32 %v941, %v1232
        %v1234 = vpop.f32.mrf.mxu0
        %1235 = vmatprep.mubr.bf16.mxu0 0
        %1236 = vmatmul.mubr.bf16.gmra.mxu0 %v1083
        %v1237 = vpop.f32.mrf.mxu0
        %v1238 = vadd.f32 %v946, %v1237
        %v1239 = vpop.f32.mrf.mxu0
        %v1240 = vpop.f32.mrf.mxu0
        %v1241 = vadd.f32 %v949, %v1240
        %v1242 = vpop.f32.mrf.mxu0
        %1243 = vmatprep.mubr.bf16.mxu0 0
        %1244 = vmatmul.mubr.bf16.gmra.mxu0 %v1086
        %v1245 = vpop.f32.mrf.mxu0
        %v1246 = vadd.f32 %v954, %v1245
        %v1247 = vpop.f32.mrf.mxu0
        %v1248 = vpop.f32.mrf.mxu0
        %v1249 = vadd.f32 %v957, %v1248
        %v1250 = vpop.f32.mrf.mxu0
        %1251 = vdwg.mxu0
        %v1252 = vld [vmem:[%s258] sm:$0xe]
        %v1253 = vld [vmem:[%s258 + $0xc] sm:$0xe]
        %v1254 = vld [vmem:[%s258 + $0x18] sm:$0xe]
        %v1255 = vld [vmem:[%s258 + $0x24] sm:$0xe]
        %v1256 = vld [vmem:[%s258 + $0x30] sm:$0xe]
        %v1257 = vld [vmem:[%s258 + $0x3c] sm:$0xe]
        %v1258 = vld [vmem:[%s258 + $0x48] sm:$0xe]
        %v1259 = vld [vmem:[%s258 + $0x54] sm:$0xe]
        %v1260 = vld [vmem:[%s258 + $0x60] sm:$0xe]
        %v1261 = vld [vmem:[%s258 + $0x6c] sm:$0xe]
        %v1262 = vld [vmem:[%s258 + $0x78] sm:$0xe]
        %v1263 = vld [vmem:[%s258 + $0x84] sm:$0xe]
        %v1264 = vld [vmem:[%s258 + $0x90] sm:$0xe]
        %v1265 = vld [vmem:[%s258 + $0x9c] sm:$0xe]
        %v1266 = vld [vmem:[%s258 + $0xa8] sm:$0xe]
        %v1267 = vld [vmem:[%s258 + $0xb4] sm:$0xe]
        %vm1300 = vcmask 1042432
        %vm1301 = vcmask 1046532
        %vm1302 = vmor %vm1300, %vm1301
        %v1303 = vrot.slane %v1252, 5
        %v1304 = vrot.slane %v1303, 4
        %v1305 = vrot.slane %v261, 5
        %v1306 = vsel %vm1302, %v1304, %v1305
        %v1307 = vrot.slane %v1305, 4
        %v1308 = vrot.slane %v293, 5
        %v1309 = vsel %vm1302, %v1307, %v1308
        %v1310 = vrot.slane %v1253, 5
        %v1311 = vrot.slane %v1310, 4
        %v1312 = vrot.slane %v263, 5
        %v1313 = vsel %vm1302, %v1311, %v1312
        %v1314 = vrot.slane %v1312, 4
        %v1315 = vrot.slane %v294, 5
        %v1316 = vsel %vm1302, %v1314, %v1315
        %v1317 = vrot.slane %v1254, 5
        %v1318 = vrot.slane %v1317, 4
        %v1319 = vrot.slane %v265, 5
        %v1320 = vsel %vm1302, %v1318, %v1319
        %v1321 = vrot.slane %v1319, 4
        %v1322 = vrot.slane %v295, 5
        %v1323 = vsel %vm1302, %v1321, %v1322
        %v1324 = vrot.slane %v1255, 5
        %v1325 = vrot.slane %v1324, 4
        %v1326 = vrot.slane %v267, 5
        %v1327 = vsel %vm1302, %v1325, %v1326
        %v1328 = vrot.slane %v1326, 4
        %v1329 = vrot.slane %v296, 5
        %v1330 = vsel %vm1302, %v1328, %v1329
        %v1331 = vrot.slane %v1256, 5
        %v1332 = vrot.slane %v1331, 4
        %v1333 = vrot.slane %v269, 5
        %v1334 = vsel %vm1302, %v1332, %v1333
        %v1335 = vrot.slane %v1333, 4
        %v1336 = vrot.slane %v297, 5
        %v1337 = vsel %vm1302, %v1335, %v1336
        %v1338 = vrot.slane %v1257, 5
        %v1339 = vrot.slane %v1338, 4
        %v1340 = vrot.slane %v271, 5
        %v1341 = vsel %vm1302, %v1339, %v1340
        %v1342 = vrot.slane %v1340, 4
        %v1343 = vrot.slane %v298, 5
        %v1344 = vsel %vm1302, %v1342, %v1343
        %v1345 = vrot.slane %v1258, 5
        %v1346 = vrot.slane %v1345, 4
        %v1347 = vrot.slane %v273, 5
        %v1348 = vsel %vm1302, %v1346, %v1347
        %v1349 = vrot.slane %v1347, 4
        %v1350 = vrot.slane %v299, 5
        %v1351 = vsel %vm1302, %v1349, %v1350
        %v1352 = vrot.slane %v1259, 5
        %v1353 = vrot.slane %v1352, 4
        %v1354 = vrot.slane %v275, 5
        %v1355 = vsel %vm1302, %v1353, %v1354
        %v1356 = vrot.slane %v1354, 4
        %v1357 = vrot.slane %v300, 5
        %v1358 = vsel %vm1302, %v1356, %v1357
        %v1359 = vrot.slane %v1260, 5
        %v1360 = vrot.slane %v1359, 4
        %v1361 = vrot.slane %v277, 5
        %v1362 = vsel %vm1302, %v1360, %v1361
        %v1363 = vrot.slane %v1361, 4
        %v1364 = vrot.slane %v301, 5
        %v1365 = vsel %vm1302, %v1363, %v1364
        %v1366 = vrot.slane %v1261, 5
        %v1367 = vrot.slane %v1366, 4
        %v1368 = vrot.slane %v279, 5
        %v1369 = vsel %vm1302, %v1367, %v1368
        %v1370 = vrot.slane %v1368, 4
        %v1371 = vrot.slane %v302, 5
        %v1372 = vsel %vm1302, %v1370, %v1371
        %v1373 = vrot.slane %v1262, 5
        %v1374 = vrot.slane %v1373, 4
        %v1375 = vrot.slane %v281, 5
        %v1376 = vsel %vm1302, %v1374, %v1375
        %v1377 = vrot.slane %v1375, 4
        %v1378 = vrot.slane %v303, 5
        %v1379 = vsel %vm1302, %v1377, %v1378
        %v1380 = vrot.slane %v1263, 5
        %v1381 = vrot.slane %v1380, 4
        %v1382 = vrot.slane %v283, 5
        %v1383 = vsel %vm1302, %v1381, %v1382
        %v1384 = vrot.slane %v1382, 4
        %v1385 = vrot.slane %v304, 5
        %v1386 = vsel %vm1302, %v1384, %v1385
        %v1387 = vrot.slane %v1264, 5
        %v1388 = vrot.slane %v1387, 4
        %v1389 = vrot.slane %v285, 5
        %v1390 = vsel %vm1302, %v1388, %v1389
        %v1391 = vrot.slane %v1389, 4
        %v1392 = vrot.slane %v305, 5
        %v1393 = vsel %vm1302, %v1391, %v1392
        %v1394 = vrot.slane %v1265, 5
        %v1395 = vrot.slane %v1394, 4
        %v1396 = vrot.slane %v287, 5
        %v1397 = vsel %vm1302, %v1395, %v1396
        %v1398 = vrot.slane %v1396, 4
        %v1399 = vrot.slane %v306, 5
        %v1400 = vsel %vm1302, %v1398, %v1399
        %v1401 = vrot.slane %v1266, 5
        %v1402 = vrot.slane %v1401, 4
        %v1403 = vrot.slane %v289, 5
        %v1404 = vsel %vm1302, %v1402, %v1403
        %v1405 = vrot.slane %v1403, 4
        %v1406 = vrot.slane %v307, 5
        %v1407 = vsel %vm1302, %v1405, %v1406
        %v1408 = vrot.slane %v1267, 5
        %v1409 = vrot.slane %v1408, 4
        %v1410 = vrot.slane %v291, 5
        %v1411 = vsel %vm1302, %v1409, %v1410
        %v1412 = vrot.slane %v1410, 4
        %v1413 = vrot.slane %v308, 5
        %v1414 = vsel %vm1302, %v1412, %v1413
        %s1415 = scalar_lea.vmem %s1, 4
        %v1416 = vld [vmem:[%s1415] sm:$0x3]
        %v1417 = vunpack.c.l.b16 %v1306
        %v1418 = vunpack.c.l.b16 %v1309
        %v1419 = vunpack.c.l.b16 %v1313
        %v1420 = vunpack.c.l.b16 %v1316
        %v1421 = vunpack.c.l.b16 %v1320
        %v1422 = vunpack.c.l.b16 %v1323
        %v1423 = vunpack.c.l.b16 %v1327
        %v1424 = vunpack.c.l.b16 %v1330
        %v1425 = vunpack.c.l.b16 %v1334
        %v1426 = vunpack.c.l.b16 %v1337
        %v1427 = vunpack.c.l.b16 %v1341
        %v1428 = vunpack.c.l.b16 %v1344
        %v1429 = vunpack.c.l.b16 %v1348
        %v1430 = vunpack.c.l.b16 %v1351
        %v1431 = vunpack.c.l.b16 %v1355
        %v1432 = vunpack.c.l.b16 %v1358
        %v1433 = vunpack.c.l.b16 %v1362
        %v1434 = vunpack.c.l.b16 %v1365
        %v1435 = vunpack.c.l.b16 %v1369
        %v1436 = vunpack.c.l.b16 %v1372
        %v1437 = vunpack.c.l.b16 %v1376
        %v1438 = vunpack.c.l.b16 %v1379
        %v1439 = vunpack.c.l.b16 %v1383
        %v1440 = vunpack.c.l.b16 %v1386
        %v1441 = vunpack.c.l.b16 %v1390
        %v1442 = vunpack.c.l.b16 %v1393
        %v1443 = vunpack.c.l.b16 %v1397
        %v1444 = vunpack.c.l.b16 %v1400
        %v1445 = vunpack.c.l.b16 %v1404
        %v1446 = vunpack.c.l.b16 %v1407
        %v1447 = vunpack.c.l.b16 %v1411
        %v1448 = vunpack.c.l.b16 %v1414
        %v1449 = vpack.c.b16 %v1418, %v1417
        %v1450 = vpack.c.b16 %v1420, %v1419
        %v1451 = vpack.c.b16 %v1422, %v1421
        %v1452 = vpack.c.b16 %v1424, %v1423
        %v1453 = vpack.c.b16 %v1426, %v1425
        %v1454 = vpack.c.b16 %v1428, %v1427
        %v1455 = vpack.c.b16 %v1430, %v1429
        %v1456 = vpack.c.b16 %v1432, %v1431
        %v1457 = vpack.c.b16 %v1434, %v1433
        %v1458 = vpack.c.b16 %v1436, %v1435
        %v1459 = vpack.c.b16 %v1438, %v1437
        %v1460 = vpack.c.b16 %v1440, %v1439
        %v1461 = vpack.c.b16 %v1442, %v1441
        %v1462 = vpack.c.b16 %v1444, %v1443
        %v1463 = vpack.c.b16 %v1446, %v1445
        %v1464 = vpack.c.b16 %v1448, %v1447
        %v1466 = vsel %vm746, %v1449, 0
        %v1469 = vsel %vm746, %v1450, 0
        %v1472 = vsel %vm746, %v1451, 0
        %v1475 = vsel %vm746, %v1452, 0
        %v1478 = vsel %vm746, %v1453, 0
        %v1481 = vsel %vm746, %v1454, 0
        %v1484 = vsel %vm746, %v1455, 0
        %v1487 = vsel %vm746, %v1456, 0
        %v1490 = vsel %vm746, %v1457, 0
        %v1493 = vsel %vm746, %v1458, 0
        %v1496 = vsel %vm746, %v1459, 0
        %v1499 = vsel %vm746, %v1460, 0
        %v1502 = vsel %vm746, %v1461, 0
        %v1505 = vsel %vm746, %v1462, 0
        %v1508 = vsel %vm746, %v1463, 0
        %v1511 = vsel %vm746, %v1464, 0
        %v1514 = vsel %vm795, %v1416, 0
        %1516 = vmatprep.subr.bf16.mxu0 0
        %1517 = vmatpush1.bf16.msra.mxu0 0
        %1518 = vmatprep.subr.bf16.mxu0 0
        %1519 = vmatpush1.bf16.msra.mxu0 0
        %1520 = vmatprep.subr.bf16.mxu0 0
        %1521 = vmatpush1.bf16.msra.mxu0 0
        %1522 = vmatprep.subr.bf16.mxu0 0
        %1523 = vmatpush1.bf16.msra.mxu0 0
        %1524 = vmatprep.subr.bf16.mxu0 0
        %1525 = vmatpush1.bf16.msra.mxu0 0
        %1526 = vmatprep.subr.bf16.mxu0 0
        %1527 = vmatpush1.bf16.msra.mxu0 0
        %1528 = vmatprep.subr.bf16.mxu0 0
        %1529 = vmatpush1.bf16.msra.mxu0 0
        %1530 = vmatprep.subr.bf16.mxu0 0
        %1531 = vmatpush1.bf16.msra.mxu0 %v1514
        %1532 = vmatprep.subr.bf16.mxu0 0
        %1533 = vmatpush2.bf16.msra.mxu0 0
        %1534 = vmatprep.subr.bf16.mxu0 0
        %1535 = vmatpush2.bf16.msra.mxu0 0
        %1536 = vmatprep.subr.bf16.mxu0 0
        %1537 = vmatpush2.bf16.msra.mxu0 0
        %1538 = vmatprep.subr.bf16.mxu0 0
        %1539 = vmatpush2.bf16.msra.mxu0 0
        %1540 = vmatprep.subr.bf16.mxu0 0
        %1541 = vmatpush2.bf16.msra.mxu0 0
        %1542 = vmatprep.subr.bf16.mxu0 0
        %1543 = vmatpush2.bf16.msra.mxu0 0
        %1544 = vmatprep.subr.bf16.mxu0 0
        %1545 = vmatpush2.bf16.msra.mxu0 0
        %1546 = vmatprep.subr.bf16.mxu0 0
        %1547 = vmatpush2.bf16.msra.mxu0 0
        %1548 = vmatprep.mubr.bf16.mxu0 0
        %1549 = vmatmul.mubr.bf16.gmra.mxu0 %v1466
        %v1550 = vpop.f32.mrf.mxu0
        %v1551 = vadd.f32 0.0, %v1550
        %v1552 = vpop.f32.mrf.mxu0
        %v1553 = vpop.f32.mrf.mxu0
        %v1554 = vadd.f32 0.0, %v1553
        %v1555 = vpop.f32.mrf.mxu0
        %1556 = vmatprep.mubr.bf16.mxu0 0
        %1557 = vmatmul.mubr.bf16.gmra.mxu0 %v1469
        %v1558 = vpop.f32.mrf.mxu0
        %v1559 = vadd.f32 0.0, %v1558
        %v1560 = vpop.f32.mrf.mxu0
        %v1561 = vpop.f32.mrf.mxu0
        %v1562 = vadd.f32 0.0, %v1561
        %v1563 = vpop.f32.mrf.mxu0
        %1564 = vmatprep.mubr.bf16.mxu0 0
        %1565 = vmatmul.mubr.bf16.gmra.mxu0 %v1472
        %v1566 = vpop.f32.mrf.mxu0
        %v1567 = vadd.f32 0.0, %v1566
        %v1568 = vpop.f32.mrf.mxu0
        %v1569 = vpop.f32.mrf.mxu0
        %v1570 = vadd.f32 0.0, %v1569
        %v1571 = vpop.f32.mrf.mxu0
        %1572 = vmatprep.mubr.bf16.mxu0 0
        %1573 = vmatmul.mubr.bf16.gmra.mxu0 %v1475
        %v1574 = vpop.f32.mrf.mxu0
        %v1575 = vadd.f32 0.0, %v1574
        %v1576 = vpop.f32.mrf.mxu0
        %v1577 = vpop.f32.mrf.mxu0
        %v1578 = vadd.f32 0.0, %v1577
        %v1579 = vpop.f32.mrf.mxu0
        %1580 = vmatprep.mubr.bf16.mxu0 0
        %1581 = vmatmul.mubr.bf16.gmra.mxu0 %v1478
        %v1582 = vpop.f32.mrf.mxu0
        %v1583 = vadd.f32 0.0, %v1582
        %v1584 = vpop.f32.mrf.mxu0
        %v1585 = vpop.f32.mrf.mxu0
        %v1586 = vadd.f32 0.0, %v1585
        %v1587 = vpop.f32.mrf.mxu0
        %1588 = vmatprep.mubr.bf16.mxu0 0
        %1589 = vmatmul.mubr.bf16.gmra.mxu0 %v1481
        %v1590 = vpop.f32.mrf.mxu0
        %v1591 = vadd.f32 0.0, %v1590
        %v1592 = vpop.f32.mrf.mxu0
        %v1593 = vpop.f32.mrf.mxu0
        %v1594 = vadd.f32 0.0, %v1593
        %v1595 = vpop.f32.mrf.mxu0
        %1596 = vmatprep.mubr.bf16.mxu0 0
        %1597 = vmatmul.mubr.bf16.gmra.mxu0 %v1484
        %v1598 = vpop.f32.mrf.mxu0
        %v1599 = vadd.f32 0.0, %v1598
        %v1600 = vpop.f32.mrf.mxu0
        %v1601 = vpop.f32.mrf.mxu0
        %v1602 = vadd.f32 0.0, %v1601
        %v1603 = vpop.f32.mrf.mxu0
        %1604 = vmatprep.mubr.bf16.mxu0 0
        %1605 = vmatmul.mubr.bf16.gmra.mxu0 %v1487
        %v1606 = vpop.f32.mrf.mxu0
        %v1607 = vadd.f32 0.0, %v1606
        %v1608 = vpop.f32.mrf.mxu0
        %v1609 = vpop.f32.mrf.mxu0
        %v1610 = vadd.f32 0.0, %v1609
        %v1611 = vpop.f32.mrf.mxu0
        %1612 = vmatprep.mubr.bf16.mxu0 0
        %1613 = vmatmul.mubr.bf16.gmra.mxu0 %v1490
        %v1614 = vpop.f32.mrf.mxu0
        %v1615 = vadd.f32 0.0, %v1614
        %v1616 = vpop.f32.mrf.mxu0
        %v1617 = vpop.f32.mrf.mxu0
        %v1618 = vadd.f32 0.0, %v1617
        %v1619 = vpop.f32.mrf.mxu0
        %1620 = vmatprep.mubr.bf16.mxu0 0
        %1621 = vmatmul.mubr.bf16.gmra.mxu0 %v1493
        %v1622 = vpop.f32.mrf.mxu0
        %v1623 = vadd.f32 0.0, %v1622
        %v1624 = vpop.f32.mrf.mxu0
        %v1625 = vpop.f32.mrf.mxu0
        %v1626 = vadd.f32 0.0, %v1625
        %v1627 = vpop.f32.mrf.mxu0
        %1628 = vmatprep.mubr.bf16.mxu0 0
        %1629 = vmatmul.mubr.bf16.gmra.mxu0 %v1496
        %v1630 = vpop.f32.mrf.mxu0
        %v1631 = vadd.f32 0.0, %v1630
        %v1632 = vpop.f32.mrf.mxu0
        %v1633 = vpop.f32.mrf.mxu0
        %v1634 = vadd.f32 0.0, %v1633
        %v1635 = vpop.f32.mrf.mxu0
        %1636 = vmatprep.mubr.bf16.mxu0 0
        %1637 = vmatmul.mubr.bf16.gmra.mxu0 %v1499
        %v1638 = vpop.f32.mrf.mxu0
        %v1639 = vadd.f32 0.0, %v1638
        %v1640 = vpop.f32.mrf.mxu0
        %v1641 = vpop.f32.mrf.mxu0
        %v1642 = vadd.f32 0.0, %v1641
        %v1643 = vpop.f32.mrf.mxu0
        %1644 = vmatprep.mubr.bf16.mxu0 0
        %1645 = vmatmul.mubr.bf16.gmra.mxu0 %v1502
        %v1646 = vpop.f32.mrf.mxu0
        %v1647 = vadd.f32 0.0, %v1646
        %v1648 = vpop.f32.mrf.mxu0
        %v1649 = vpop.f32.mrf.mxu0
        %v1650 = vadd.f32 0.0, %v1649
        %v1651 = vpop.f32.mrf.mxu0
        %1652 = vmatprep.mubr.bf16.mxu0 0
        %1653 = vmatmul.mubr.bf16.gmra.mxu0 %v1505
        %v1654 = vpop.f32.mrf.mxu0
        %v1655 = vadd.f32 0.0, %v1654
        %v1656 = vpop.f32.mrf.mxu0
        %v1657 = vpop.f32.mrf.mxu0
        %v1658 = vadd.f32 0.0, %v1657
        %v1659 = vpop.f32.mrf.mxu0
        %1660 = vmatprep.mubr.bf16.mxu0 0
        %1661 = vmatmul.mubr.bf16.gmra.mxu0 %v1508
        %v1662 = vpop.f32.mrf.mxu0
        %v1663 = vadd.f32 0.0, %v1662
        %v1664 = vpop.f32.mrf.mxu0
        %v1665 = vpop.f32.mrf.mxu0
        %v1666 = vadd.f32 0.0, %v1665
        %v1667 = vpop.f32.mrf.mxu0
        %1668 = vmatprep.mubr.bf16.mxu0 0
        %1669 = vmatmul.mubr.bf16.gmra.mxu0 %v1511
        %v1670 = vpop.f32.mrf.mxu0
        %v1671 = vadd.f32 0.0, %v1670
        %v1672 = vpop.f32.mrf.mxu0
        %v1673 = vpop.f32.mrf.mxu0
        %v1674 = vadd.f32 0.0, %v1673
        %v1675 = vpop.f32.mrf.mxu0
        %1676 = vdwg.mxu0
        %v1677 = vadd.f32 %v1126, %v1551
        %v1678 = vadd.f32 %v1129, %v1554
        %v1679 = vadd.f32 %v1134, %v1559
        %v1680 = vadd.f32 %v1137, %v1562
        %v1681 = vadd.f32 %v1142, %v1567
        %v1682 = vadd.f32 %v1145, %v1570
        %v1683 = vadd.f32 %v1150, %v1575
        %v1684 = vadd.f32 %v1153, %v1578
        %v1685 = vadd.f32 %v1158, %v1583
        %v1686 = vadd.f32 %v1161, %v1586
        %v1687 = vadd.f32 %v1166, %v1591
        %v1688 = vadd.f32 %v1169, %v1594
        %v1689 = vadd.f32 %v1174, %v1599
        %v1690 = vadd.f32 %v1177, %v1602
        %v1691 = vadd.f32 %v1182, %v1607
        %v1692 = vadd.f32 %v1185, %v1610
        %v1693 = vadd.f32 %v1190, %v1615
        %v1694 = vadd.f32 %v1193, %v1618
        %v1695 = vadd.f32 %v1198, %v1623
        %v1696 = vadd.f32 %v1201, %v1626
        %v1697 = vadd.f32 %v1206, %v1631
        %v1698 = vadd.f32 %v1209, %v1634
        %v1699 = vadd.f32 %v1214, %v1639
        %v1700 = vadd.f32 %v1217, %v1642
        %v1701 = vadd.f32 %v1222, %v1647
        %v1702 = vadd.f32 %v1225, %v1650
        %v1703 = vadd.f32 %v1230, %v1655
        %v1704 = vadd.f32 %v1233, %v1658
        %v1705 = vadd.f32 %v1238, %v1663
        %v1706 = vadd.f32 %v1241, %v1666
        %v1707 = vadd.f32 %v1246, %v1671
        %v1708 = vadd.f32 %v1249, %v1674
        %s1709 = scalar_lea.vmem %s258, 12
        %v1710 = vld [vmem:[%s1709] sm:$0xf]
        %v1711 = vld [vmem:[%s1709 + $0x4] sm:$0xf]
        %v1712 = vld [vmem:[%s1709 + $0xc] sm:$0xf]
        %v1713 = vld [vmem:[%s1709 + $0x10] sm:$0xf]
        %v1714 = vld [vmem:[%s1709 + $0x18] sm:$0xf]
        %v1715 = vld [vmem:[%s1709 + $0x1c] sm:$0xf]
        %v1716 = vld [vmem:[%s1709 + $0x24] sm:$0xf]
        %v1717 = vld [vmem:[%s1709 + $0x28] sm:$0xf]
        %v1718 = vld [vmem:[%s1709 + $0x30] sm:$0xf]
        %v1719 = vld [vmem:[%s1709 + $0x34] sm:$0xf]
        %v1720 = vld [vmem:[%s1709 + $0x3c] sm:$0xf]
        %v1721 = vld [vmem:[%s1709 + $0x40] sm:$0xf]
        %v1722 = vld [vmem:[%s1709 + $0x48] sm:$0xf]
        %v1723 = vld [vmem:[%s1709 + $0x4c] sm:$0xf]
        %v1724 = vld [vmem:[%s1709 + $0x54] sm:$0xf]
        %v1725 = vld [vmem:[%s1709 + $0x58] sm:$0xf]
        %v1726 = vld [vmem:[%s1709 + $0x60] sm:$0xf]
        %v1727 = vld [vmem:[%s1709 + $0x64] sm:$0xf]
        %v1728 = vld [vmem:[%s1709 + $0x6c] sm:$0xf]
        %v1729 = vld [vmem:[%s1709 + $0x70] sm:$0xf]
        %v1730 = vld [vmem:[%s1709 + $0x78] sm:$0xf]
        %v1731 = vld [vmem:[%s1709 + $0x7c] sm:$0xf]
        %v1732 = vld [vmem:[%s1709 + $0x84] sm:$0xf]
        %v1733 = vld [vmem:[%s1709 + $0x88] sm:$0xf]
        %v1734 = vld [vmem:[%s1709 + $0x90] sm:$0xf]
        %v1735 = vld [vmem:[%s1709 + $0x94] sm:$0xf]
        %v1736 = vld [vmem:[%s1709 + $0x9c] sm:$0xf]
        %v1737 = vld [vmem:[%s1709 + $0xa0] sm:$0xf]
        %v1738 = vld [vmem:[%s1709 + $0xa8] sm:$0xf]
        %v1739 = vld [vmem:[%s1709 + $0xac] sm:$0xf]
        %v1740 = vld [vmem:[%s1709 + $0xb4] sm:$0xf]
        %v1741 = vld [vmem:[%s1709 + $0xb8] sm:$0xf]
        %s1742 = scalar_lea.vmem %s1, 6
        %v1743 = vld [vmem:[%s1742] sm:$0x3]
        %v1776 = vunpack.c.l.b16 %v1710
        %v1777 = vunpack.c.l.b16 %v1711
        %v1778 = vunpack.c.l.b16 %v1712
        %v1779 = vunpack.c.l.b16 %v1713
        %v1780 = vunpack.c.l.b16 %v1714
        %v1781 = vunpack.c.l.b16 %v1715
        %v1782 = vunpack.c.l.b16 %v1716
        %v1783 = vunpack.c.l.b16 %v1717
        %v1784 = vunpack.c.l.b16 %v1718
        %v1785 = vunpack.c.l.b16 %v1719
        %v1786 = vunpack.c.l.b16 %v1720
        %v1787 = vunpack.c.l.b16 %v1721
        %v1788 = vunpack.c.l.b16 %v1722
        %v1789 = vunpack.c.l.b16 %v1723
        %v1790 = vunpack.c.l.b16 %v1724
        %v1791 = vunpack.c.l.b16 %v1725
        %v1792 = vunpack.c.l.b16 %v1726
        %v1793 = vunpack.c.l.b16 %v1727
        %v1794 = vunpack.c.l.b16 %v1728
        %v1795 = vunpack.c.l.b16 %v1729
        %v1796 = vunpack.c.l.b16 %v1730
        %v1797 = vunpack.c.l.b16 %v1731
        %v1798 = vunpack.c.l.b16 %v1732
        %v1799 = vunpack.c.l.b16 %v1733
        %v1800 = vunpack.c.l.b16 %v1734
        %v1801 = vunpack.c.l.b16 %v1735
        %v1802 = vunpack.c.l.b16 %v1736
        %v1803 = vunpack.c.l.b16 %v1737
        %v1804 = vunpack.c.l.b16 %v1738
        %v1805 = vunpack.c.l.b16 %v1739
        %v1806 = vunpack.c.l.b16 %v1740
        %v1807 = vunpack.c.l.b16 %v1741
        %v1808 = vpack.c.b16 %v1777, %v1776
        %v1809 = vpack.c.b16 %v1779, %v1778
        %v1810 = vpack.c.b16 %v1781, %v1780
        %v1811 = vpack.c.b16 %v1783, %v1782
        %v1812 = vpack.c.b16 %v1785, %v1784
        %v1813 = vpack.c.b16 %v1787, %v1786
        %v1814 = vpack.c.b16 %v1789, %v1788
        %v1815 = vpack.c.b16 %v1791, %v1790
        %v1816 = vpack.c.b16 %v1793, %v1792
        %v1817 = vpack.c.b16 %v1795, %v1794
        %v1818 = vpack.c.b16 %v1797, %v1796
        %v1819 = vpack.c.b16 %v1799, %v1798
        %v1820 = vpack.c.b16 %v1801, %v1800
        %v1821 = vpack.c.b16 %v1803, %v1802
        %v1822 = vpack.c.b16 %v1805, %v1804
        %v1823 = vpack.c.b16 %v1807, %v1806
        %v1825 = vsel %vm746, %v1808, 0
        %v1828 = vsel %vm746, %v1809, 0
        %v1831 = vsel %vm746, %v1810, 0
        %v1834 = vsel %vm746, %v1811, 0
        %v1837 = vsel %vm746, %v1812, 0
        %v1840 = vsel %vm746, %v1813, 0
        %v1843 = vsel %vm746, %v1814, 0
        %v1846 = vsel %vm746, %v1815, 0
        %v1849 = vsel %vm746, %v1816, 0
        %v1852 = vsel %vm746, %v1817, 0
        %v1855 = vsel %vm746, %v1818, 0
        %v1858 = vsel %vm746, %v1819, 0
        %v1861 = vsel %vm746, %v1820, 0
        %v1864 = vsel %vm746, %v1821, 0
        %v1867 = vsel %vm746, %v1822, 0
        %v1870 = vsel %vm746, %v1823, 0
        %v1873 = vsel %vm795, %v1743, 0
        %1875 = vmatprep.subr.bf16.mxu0 0
        %1876 = vmatpush1.bf16.msra.mxu0 0
        %1877 = vmatprep.subr.bf16.mxu0 0
        %1878 = vmatpush1.bf16.msra.mxu0 0
        %1879 = vmatprep.subr.bf16.mxu0 0
        %1880 = vmatpush1.bf16.msra.mxu0 0
        %1881 = vmatprep.subr.bf16.mxu0 0
        %1882 = vmatpush1.bf16.msra.mxu0 0
        %1883 = vmatprep.subr.bf16.mxu0 0
        %1884 = vmatpush1.bf16.msra.mxu0 0
        %1885 = vmatprep.subr.bf16.mxu0 0
        %1886 = vmatpush1.bf16.msra.mxu0 0
        %1887 = vmatprep.subr.bf16.mxu0 0
        %1888 = vmatpush1.bf16.msra.mxu0 0
        %1889 = vmatprep.subr.bf16.mxu0 0
        %1890 = vmatpush1.bf16.msra.mxu0 %v1873
        %1891 = vmatprep.subr.bf16.mxu0 0
        %1892 = vmatpush2.bf16.msra.mxu0 0
        %1893 = vmatprep.subr.bf16.mxu0 0
        %1894 = vmatpush2.bf16.msra.mxu0 0
        %1895 = vmatprep.subr.bf16.mxu0 0
        %1896 = vmatpush2.bf16.msra.mxu0 0
        %1897 = vmatprep.subr.bf16.mxu0 0
        %1898 = vmatpush2.bf16.msra.mxu0 0
        %1899 = vmatprep.subr.bf16.mxu0 0
        %1900 = vmatpush2.bf16.msra.mxu0 0
        %1901 = vmatprep.subr.bf16.mxu0 0
        %1902 = vmatpush2.bf16.msra.mxu0 0
        %1903 = vmatprep.subr.bf16.mxu0 0
        %1904 = vmatpush2.bf16.msra.mxu0 0
        %1905 = vmatprep.subr.bf16.mxu0 0
        %1906 = vmatpush2.bf16.msra.mxu0 0
        %1907 = vmatprep.mubr.bf16.mxu0 0
        %1908 = vmatmul.mubr.bf16.gmra.mxu0 %v1825
        %v1909 = vpop.f32.mrf.mxu0
        %v1910 = vadd.f32 0.0, %v1909
        %v1911 = vpop.f32.mrf.mxu0
        %v1912 = vpop.f32.mrf.mxu0
        %v1913 = vadd.f32 0.0, %v1912
        %v1914 = vpop.f32.mrf.mxu0
        %1915 = vmatprep.mubr.bf16.mxu0 0
        %1916 = vmatmul.mubr.bf16.gmra.mxu0 %v1828
        %v1917 = vpop.f32.mrf.mxu0
        %v1918 = vadd.f32 0.0, %v1917
        %v1919 = vpop.f32.mrf.mxu0
        %v1920 = vpop.f32.mrf.mxu0
        %v1921 = vadd.f32 0.0, %v1920
        %v1922 = vpop.f32.mrf.mxu0
        %1923 = vmatprep.mubr.bf16.mxu0 0
        %1924 = vmatmul.mubr.bf16.gmra.mxu0 %v1831
        %v1925 = vpop.f32.mrf.mxu0
        %v1926 = vadd.f32 0.0, %v1925
        %v1927 = vpop.f32.mrf.mxu0
        %v1928 = vpop.f32.mrf.mxu0
        %v1929 = vadd.f32 0.0, %v1928
        %v1930 = vpop.f32.mrf.mxu0
        %1931 = vmatprep.mubr.bf16.mxu0 0
        %1932 = vmatmul.mubr.bf16.gmra.mxu0 %v1834
        %v1933 = vpop.f32.mrf.mxu0
        %v1934 = vadd.f32 0.0, %v1933
        %v1935 = vpop.f32.mrf.mxu0
        %v1936 = vpop.f32.mrf.mxu0
        %v1937 = vadd.f32 0.0, %v1936
        %v1938 = vpop.f32.mrf.mxu0
        %1939 = vmatprep.mubr.bf16.mxu0 0
        %1940 = vmatmul.mubr.bf16.gmra.mxu0 %v1837
        %v1941 = vpop.f32.mrf.mxu0
        %v1942 = vadd.f32 0.0, %v1941
        %v1943 = vpop.f32.mrf.mxu0
        %v1944 = vpop.f32.mrf.mxu0
        %v1945 = vadd.f32 0.0, %v1944
        %v1946 = vpop.f32.mrf.mxu0
        %1947 = vmatprep.mubr.bf16.mxu0 0
        %1948 = vmatmul.mubr.bf16.gmra.mxu0 %v1840
        %v1949 = vpop.f32.mrf.mxu0
        %v1950 = vadd.f32 0.0, %v1949
        %v1951 = vpop.f32.mrf.mxu0
        %v1952 = vpop.f32.mrf.mxu0
        %v1953 = vadd.f32 0.0, %v1952
        %v1954 = vpop.f32.mrf.mxu0
        %1955 = vmatprep.mubr.bf16.mxu0 0
        %1956 = vmatmul.mubr.bf16.gmra.mxu0 %v1843
        %v1957 = vpop.f32.mrf.mxu0
        %v1958 = vadd.f32 0.0, %v1957
        %v1959 = vpop.f32.mrf.mxu0
        %v1960 = vpop.f32.mrf.mxu0
        %v1961 = vadd.f32 0.0, %v1960
        %v1962 = vpop.f32.mrf.mxu0
        %1963 = vmatprep.mubr.bf16.mxu0 0
        %1964 = vmatmul.mubr.bf16.gmra.mxu0 %v1846
        %v1965 = vpop.f32.mrf.mxu0
        %v1966 = vadd.f32 0.0, %v1965
        %v1967 = vpop.f32.mrf.mxu0
        %v1968 = vpop.f32.mrf.mxu0
        %v1969 = vadd.f32 0.0, %v1968
        %v1970 = vpop.f32.mrf.mxu0
        %1971 = vmatprep.mubr.bf16.mxu0 0
        %1972 = vmatmul.mubr.bf16.gmra.mxu0 %v1849
        %v1973 = vpop.f32.mrf.mxu0
        %v1974 = vadd.f32 0.0, %v1973
        %v1975 = vpop.f32.mrf.mxu0
        %v1976 = vpop.f32.mrf.mxu0
        %v1977 = vadd.f32 0.0, %v1976
        %v1978 = vpop.f32.mrf.mxu0
        %1979 = vmatprep.mubr.bf16.mxu0 0
        %1980 = vmatmul.mubr.bf16.gmra.mxu0 %v1852
        %v1981 = vpop.f32.mrf.mxu0
        %v1982 = vadd.f32 0.0, %v1981
        %v1983 = vpop.f32.mrf.mxu0
        %v1984 = vpop.f32.mrf.mxu0
        %v1985 = vadd.f32 0.0, %v1984
        %v1986 = vpop.f32.mrf.mxu0
        %1987 = vmatprep.mubr.bf16.mxu0 0
        %1988 = vmatmul.mubr.bf16.gmra.mxu0 %v1855
        %v1989 = vpop.f32.mrf.mxu0
        %v1990 = vadd.f32 0.0, %v1989
        %v1991 = vpop.f32.mrf.mxu0
        %v1992 = vpop.f32.mrf.mxu0
        %v1993 = vadd.f32 0.0, %v1992
        %v1994 = vpop.f32.mrf.mxu0
        %1995 = vmatprep.mubr.bf16.mxu0 0
        %1996 = vmatmul.mubr.bf16.gmra.mxu0 %v1858
        %v1997 = vpop.f32.mrf.mxu0
        %v1998 = vadd.f32 0.0, %v1997
        %v1999 = vpop.f32.mrf.mxu0
        %v2000 = vpop.f32.mrf.mxu0
        %v2001 = vadd.f32 0.0, %v2000
        %v2002 = vpop.f32.mrf.mxu0
        %2003 = vmatprep.mubr.bf16.mxu0 0
        %2004 = vmatmul.mubr.bf16.gmra.mxu0 %v1861
        %v2005 = vpop.f32.mrf.mxu0
        %v2006 = vadd.f32 0.0, %v2005
        %v2007 = vpop.f32.mrf.mxu0
        %v2008 = vpop.f32.mrf.mxu0
        %v2009 = vadd.f32 0.0, %v2008
        %v2010 = vpop.f32.mrf.mxu0
        %2011 = vmatprep.mubr.bf16.mxu0 0
        %2012 = vmatmul.mubr.bf16.gmra.mxu0 %v1864
        %v2013 = vpop.f32.mrf.mxu0
        %v2014 = vadd.f32 0.0, %v2013
        %v2015 = vpop.f32.mrf.mxu0
        %v2016 = vpop.f32.mrf.mxu0
        %v2017 = vadd.f32 0.0, %v2016
        %v2018 = vpop.f32.mrf.mxu0
        %2019 = vmatprep.mubr.bf16.mxu0 0
        %2020 = vmatmul.mubr.bf16.gmra.mxu0 %v1867
        %v2021 = vpop.f32.mrf.mxu0
        %v2022 = vadd.f32 0.0, %v2021
        %v2023 = vpop.f32.mrf.mxu0
        %v2024 = vpop.f32.mrf.mxu0
        %v2025 = vadd.f32 0.0, %v2024
        %v2026 = vpop.f32.mrf.mxu0
        %2027 = vmatprep.mubr.bf16.mxu0 0
        %2028 = vmatmul.mubr.bf16.gmra.mxu0 %v1870
        %v2029 = vpop.f32.mrf.mxu0
        %v2030 = vadd.f32 0.0, %v2029
        %v2031 = vpop.f32.mrf.mxu0
        %v2032 = vpop.f32.mrf.mxu0
        %v2033 = vadd.f32 0.0, %v2032
        %v2034 = vpop.f32.mrf.mxu0
        %2035 = vdwg.mxu0
        %v2036 = vadd.f32 %v1677, %v1910
        %v2037 = vadd.f32 %v1678, %v1913
        %v2038 = vadd.f32 %v1679, %v1918
        %v2039 = vadd.f32 %v1680, %v1921
        %v2040 = vadd.f32 %v1681, %v1926
        %v2041 = vadd.f32 %v1682, %v1929
        %v2042 = vadd.f32 %v1683, %v1934
        %v2043 = vadd.f32 %v1684, %v1937
        %v2044 = vadd.f32 %v1685, %v1942
        %v2045 = vadd.f32 %v1686, %v1945
        %v2046 = vadd.f32 %v1687, %v1950
        %v2047 = vadd.f32 %v1688, %v1953
        %v2048 = vadd.f32 %v1689, %v1958
        %v2049 = vadd.f32 %v1690, %v1961
        %v2050 = vadd.f32 %v1691, %v1966
        %v2051 = vadd.f32 %v1692, %v1969
        %v2052 = vadd.f32 %v1693, %v1974
        %v2053 = vadd.f32 %v1694, %v1977
        %v2054 = vadd.f32 %v1695, %v1982
        %v2055 = vadd.f32 %v1696, %v1985
        %v2056 = vadd.f32 %v1697, %v1990
        %v2057 = vadd.f32 %v1698, %v1993
        %v2058 = vadd.f32 %v1699, %v1998
        %v2059 = vadd.f32 %v1700, %v2001
        %v2060 = vadd.f32 %v1701, %v2006
        %v2061 = vadd.f32 %v1702, %v2009
        %v2062 = vadd.f32 %v1703, %v2014
        %v2063 = vadd.f32 %v1704, %v2017
        %v2064 = vadd.f32 %v1705, %v2022
        %v2065 = vadd.f32 %v1706, %v2025
        %v2066 = vadd.f32 %v1707, %v2030
        %v2067 = vadd.f32 %v1708, %v2033
        %v2068 = vld [vmem:[%s1709] sm:$0xf]
        %v2069 = vld [vmem:[%s1709 + $0x4] sm:$0xf]
        %v2070 = vld [vmem:[%s1709 + $0x8] sm:$0x1]
        %v2071 = vld [vmem:[%s1709 + $0xc] sm:$0xf]
        %v2072 = vld [vmem:[%s1709 + $0x10] sm:$0xf]
        %v2073 = vld [vmem:[%s1709 + $0x14] sm:$0x1]
        %v2074 = vld [vmem:[%s1709 + $0x18] sm:$0xf]
        %v2075 = vld [vmem:[%s1709 + $0x1c] sm:$0xf]
        %v2076 = vld [vmem:[%s1709 + $0x20] sm:$0x1]
        %v2077 = vld [vmem:[%s1709 + $0x24] sm:$0xf]
        %v2078 = vld [vmem:[%s1709 + $0x28] sm:$0xf]
        %v2079 = vld [vmem:[%s1709 + $0x2c] sm:$0x1]
        %v2080 = vld [vmem:[%s1709 + $0x30] sm:$0xf]
        %v2081 = vld [vmem:[%s1709 + $0x34] sm:$0xf]
        %v2082 = vld [vmem:[%s1709 + $0x38] sm:$0x1]
        %v2083 = vld [vmem:[%s1709 + $0x3c] sm:$0xf]
        %v2084 = vld [vmem:[%s1709 + $0x40] sm:$0xf]
        %v2085 = vld [vmem:[%s1709 + $0x44] sm:$0x1]
        %v2086 = vld [vmem:[%s1709 + $0x48] sm:$0xf]
        %v2087 = vld [vmem:[%s1709 + $0x4c] sm:$0xf]
        %v2088 = vld [vmem:[%s1709 + $0x50] sm:$0x1]
        %v2089 = vld [vmem:[%s1709 + $0x54] sm:$0xf]
        %v2090 = vld [vmem:[%s1709 + $0x58] sm:$0xf]
        %v2091 = vld [vmem:[%s1709 + $0x5c] sm:$0x1]
        %v2092 = vld [vmem:[%s1709 + $0x60] sm:$0xf]
        %v2093 = vld [vmem:[%s1709 + $0x64] sm:$0xf]
        %v2094 = vld [vmem:[%s1709 + $0x68] sm:$0x1]
        %v2095 = vld [vmem:[%s1709 + $0x6c] sm:$0xf]
        %v2096 = vld [vmem:[%s1709 + $0x70] sm:$0xf]
        %v2097 = vld [vmem:[%s1709 + $0x74] sm:$0x1]
        %v2098 = vld [vmem:[%s1709 + $0x78] sm:$0xf]
        %v2099 = vld [vmem:[%s1709 + $0x7c] sm:$0xf]
        %v2100 = vld [vmem:[%s1709 + $0x80] sm:$0x1]
        %v2101 = vld [vmem:[%s1709 + $0x84] sm:$0xf]
        %v2102 = vld [vmem:[%s1709 + $0x88] sm:$0xf]
        %v2103 = vld [vmem:[%s1709 + $0x8c] sm:$0x1]
        %v2104 = vld [vmem:[%s1709 + $0x90] sm:$0xf]
        %v2105 = vld [vmem:[%s1709 + $0x94] sm:$0xf]
        %v2106 = vld [vmem:[%s1709 + $0x98] sm:$0x1]
        %v2107 = vld [vmem:[%s1709 + $0x9c] sm:$0xf]
        %v2108 = vld [vmem:[%s1709 + $0xa0] sm:$0xf]
        %v2109 = vld [vmem:[%s1709 + $0xa4] sm:$0x1]
        %v2110 = vld [vmem:[%s1709 + $0xa8] sm:$0xf]
        %v2111 = vld [vmem:[%s1709 + $0xac] sm:$0xf]
        %v2112 = vld [vmem:[%s1709 + $0xb0] sm:$0x1]
        %v2113 = vld [vmem:[%s1709 + $0xb4] sm:$0xf]
        %v2114 = vld [vmem:[%s1709 + $0xb8] sm:$0xf]
        %v2115 = vld [vmem:[%s1709 + $0xbc] sm:$0x1]
        %v2117 = vshrl.u32 %v2068, 16
        %v2119 = vrot.slane %v2117, 4
        %v2120 = vshll.u32 %v2068, 16
        %v2122 = vrot.slane %v2120, 5
        %v2123 = vor.u32 %v2119, %v2122
        %v2124 = vrot.slane %v2123, 4
        %v2126 = vshll.u32 %v2069, 16
        %v2128 = vrot.slane %v2126, 5
        %v2129 = vsel %vm311, %v2124, %v2128
        %v2130 = vshrl.u32 %v2069, 16
        %v2132 = vrot.slane %v2130, 4
        %v2133 = vor.u32 %v2132, %v2128
        %v2134 = vrot.slane %v2133, 4
        %v2136 = vshll.u32 %v2070, 16
        %v2138 = vrot.slane %v2136, 5
        %v2139 = vsel %vm311, %v2134, %v2138
        %v2141 = vshrl.u32 %v2071, 16
        %v2143 = vrot.slane %v2141, 4
        %v2144 = vshll.u32 %v2071, 16
        %v2146 = vrot.slane %v2144, 5
        %v2147 = vor.u32 %v2143, %v2146
        %v2148 = vrot.slane %v2147, 4
        %v2150 = vshll.u32 %v2072, 16
        %v2152 = vrot.slane %v2150, 5
        %v2153 = vsel %vm311, %v2148, %v2152
        %v2154 = vshrl.u32 %v2072, 16
        %v2156 = vrot.slane %v2154, 4
        %v2157 = vor.u32 %v2156, %v2152
        %v2158 = vrot.slane %v2157, 4
        %v2160 = vshll.u32 %v2073, 16
        %v2162 = vrot.slane %v2160, 5
        %v2163 = vsel %vm311, %v2158, %v2162
        %v2165 = vshrl.u32 %v2074, 16
        %v2167 = vrot.slane %v2165, 4
        %v2168 = vshll.u32 %v2074, 16
        %v2170 = vrot.slane %v2168, 5
        %v2171 = vor.u32 %v2167, %v2170
        %v2172 = vrot.slane %v2171, 4
        %v2174 = vshll.u32 %v2075, 16
        %v2176 = vrot.slane %v2174, 5
        %v2177 = vsel %vm311, %v2172, %v2176
        %v2178 = vshrl.u32 %v2075, 16
        %v2180 = vrot.slane %v2178, 4
        %v2181 = vor.u32 %v2180, %v2176
        %v2182 = vrot.slane %v2181, 4
        %v2184 = vshll.u32 %v2076, 16
        %v2186 = vrot.slane %v2184, 5
        %v2187 = vsel %vm311, %v2182, %v2186
        %v2189 = vshrl.u32 %v2077, 16
        %v2191 = vrot.slane %v2189, 4
        %v2192 = vshll.u32 %v2077, 16
        %v2194 = vrot.slane %v2192, 5
        %v2195 = vor.u32 %v2191, %v2194
        %v2196 = vrot.slane %v2195, 4
        %v2198 = vshll.u32 %v2078, 16
        %v2200 = vrot.slane %v2198, 5
        %v2201 = vsel %vm311, %v2196, %v2200
        %v2202 = vshrl.u32 %v2078, 16
        %v2204 = vrot.slane %v2202, 4
        %v2205 = vor.u32 %v2204, %v2200
        %v2206 = vrot.slane %v2205, 4
        %v2208 = vshll.u32 %v2079, 16
        %v2210 = vrot.slane %v2208, 5
        %v2211 = vsel %vm311, %v2206, %v2210
        %v2213 = vshrl.u32 %v2080, 16
        %v2215 = vrot.slane %v2213, 4
        %v2216 = vshll.u32 %v2080, 16
        %v2218 = vrot.slane %v2216, 5
        %v2219 = vor.u32 %v2215, %v2218
        %v2220 = vrot.slane %v2219, 4
        %v2222 = vshll.u32 %v2081, 16
        %v2224 = vrot.slane %v2222, 5
        %v2225 = vsel %vm311, %v2220, %v2224
        %v2226 = vshrl.u32 %v2081, 16
        %v2228 = vrot.slane %v2226, 4
        %v2229 = vor.u32 %v2228, %v2224
        %v2230 = vrot.slane %v2229, 4
        %v2232 = vshll.u32 %v2082, 16
        %v2234 = vrot.slane %v2232, 5
        %v2235 = vsel %vm311, %v2230, %v2234
        %v2237 = vshrl.u32 %v2083, 16
        %v2239 = vrot.slane %v2237, 4
        %v2240 = vshll.u32 %v2083, 16
        %v2242 = vrot.slane %v2240, 5
        %v2243 = vor.u32 %v2239, %v2242
        %v2244 = vrot.slane %v2243, 4
        %v2246 = vshll.u32 %v2084, 16
        %v2248 = vrot.slane %v2246, 5
        %v2249 = vsel %vm311, %v2244, %v2248
        %v2250 = vshrl.u32 %v2084, 16
        %v2252 = vrot.slane %v2250, 4
        %v2253 = vor.u32 %v2252, %v2248
        %v2254 = vrot.slane %v2253, 4
        %v2256 = vshll.u32 %v2085, 16
        %v2258 = vrot.slane %v2256, 5
        %v2259 = vsel %vm311, %v2254, %v2258
        %v2261 = vshrl.u32 %v2086, 16
        %v2263 = vrot.slane %v2261, 4
        %v2264 = vshll.u32 %v2086, 16
        %v2266 = vrot.slane %v2264, 5
        %v2267 = vor.u32 %v2263, %v2266
        %v2268 = vrot.slane %v2267, 4
        %v2270 = vshll.u32 %v2087, 16
        %v2272 = vrot.slane %v2270, 5
        %v2273 = vsel %vm311, %v2268, %v2272
        %v2274 = vshrl.u32 %v2087, 16
        %v2276 = vrot.slane %v2274, 4
        %v2277 = vor.u32 %v2276, %v2272
        %v2278 = vrot.slane %v2277, 4
        %v2280 = vshll.u32 %v2088, 16
        %v2282 = vrot.slane %v2280, 5
        %v2283 = vsel %vm311, %v2278, %v2282
        %v2285 = vshrl.u32 %v2089, 16
        %v2287 = vrot.slane %v2285, 4
        %v2288 = vshll.u32 %v2089, 16
        %v2290 = vrot.slane %v2288, 5
        %v2291 = vor.u32 %v2287, %v2290
        %v2292 = vrot.slane %v2291, 4
        %v2294 = vshll.u32 %v2090, 16
        %v2296 = vrot.slane %v2294, 5
        %v2297 = vsel %vm311, %v2292, %v2296
        %v2298 = vshrl.u32 %v2090, 16
        %v2300 = vrot.slane %v2298, 4
        %v2301 = vor.u32 %v2300, %v2296
        %v2302 = vrot.slane %v2301, 4
        %v2304 = vshll.u32 %v2091, 16
        %v2306 = vrot.slane %v2304, 5
        %v2307 = vsel %vm311, %v2302, %v2306
        %v2309 = vshrl.u32 %v2092, 16
        %v2311 = vrot.slane %v2309, 4
        %v2312 = vshll.u32 %v2092, 16
        %v2314 = vrot.slane %v2312, 5
        %v2315 = vor.u32 %v2311, %v2314
        %v2316 = vrot.slane %v2315, 4
        %v2318 = vshll.u32 %v2093, 16
        %v2320 = vrot.slane %v2318, 5
        %v2321 = vsel %vm311, %v2316, %v2320
        %v2322 = vshrl.u32 %v2093, 16
        %v2324 = vrot.slane %v2322, 4
        %v2325 = vor.u32 %v2324, %v2320
        %v2326 = vrot.slane %v2325, 4
        %v2328 = vshll.u32 %v2094, 16
        %v2330 = vrot.slane %v2328, 5
        %v2331 = vsel %vm311, %v2326, %v2330
        %v2333 = vshrl.u32 %v2095, 16
        %v2335 = vrot.slane %v2333, 4
        %v2336 = vshll.u32 %v2095, 16
        %v2338 = vrot.slane %v2336, 5
        %v2339 = vor.u32 %v2335, %v2338
        %v2340 = vrot.slane %v2339, 4
        %v2342 = vshll.u32 %v2096, 16
        %v2344 = vrot.slane %v2342, 5
        %v2345 = vsel %vm311, %v2340, %v2344
        %v2346 = vshrl.u32 %v2096, 16
        %v2348 = vrot.slane %v2346, 4
        %v2349 = vor.u32 %v2348, %v2344
        %v2350 = vrot.slane %v2349, 4
        %v2352 = vshll.u32 %v2097, 16
        %v2354 = vrot.slane %v2352, 5
        %v2355 = vsel %vm311, %v2350, %v2354
        %v2357 = vshrl.u32 %v2098, 16
        %v2359 = vrot.slane %v2357, 4
        %v2360 = vshll.u32 %v2098, 16
        %v2362 = vrot.slane %v2360, 5
        %v2363 = vor.u32 %v2359, %v2362
        %v2364 = vrot.slane %v2363, 4
        %v2366 = vshll.u32 %v2099, 16
        %v2368 = vrot.slane %v2366, 5
        %v2369 = vsel %vm311, %v2364, %v2368
        %v2370 = vshrl.u32 %v2099, 16
        %v2372 = vrot.slane %v2370, 4
        %v2373 = vor.u32 %v2372, %v2368
        %v2374 = vrot.slane %v2373, 4
        %v2376 = vshll.u32 %v2100, 16
        %v2378 = vrot.slane %v2376, 5
        %v2379 = vsel %vm311, %v2374, %v2378
        %v2381 = vshrl.u32 %v2101, 16
        %v2383 = vrot.slane %v2381, 4
        %v2384 = vshll.u32 %v2101, 16
        %v2386 = vrot.slane %v2384, 5
        %v2387 = vor.u32 %v2383, %v2386
        %v2388 = vrot.slane %v2387, 4
        %v2390 = vshll.u32 %v2102, 16
        %v2392 = vrot.slane %v2390, 5
        %v2393 = vsel %vm311, %v2388, %v2392
        %v2394 = vshrl.u32 %v2102, 16
        %v2396 = vrot.slane %v2394, 4
        %v2397 = vor.u32 %v2396, %v2392
        %v2398 = vrot.slane %v2397, 4
        %v2400 = vshll.u32 %v2103, 16
        %v2402 = vrot.slane %v2400, 5
        %v2403 = vsel %vm311, %v2398, %v2402
        %v2405 = vshrl.u32 %v2104, 16
        %v2407 = vrot.slane %v2405, 4
        %v2408 = vshll.u32 %v2104, 16
        %v2410 = vrot.slane %v2408, 5
        %v2411 = vor.u32 %v2407, %v2410
        %v2412 = vrot.slane %v2411, 4
        %v2414 = vshll.u32 %v2105, 16
        %v2416 = vrot.slane %v2414, 5
        %v2417 = vsel %vm311, %v2412, %v2416
        %v2418 = vshrl.u32 %v2105, 16
        %v2420 = vrot.slane %v2418, 4
        %v2421 = vor.u32 %v2420, %v2416
        %v2422 = vrot.slane %v2421, 4
        %v2424 = vshll.u32 %v2106, 16
        %v2426 = vrot.slane %v2424, 5
        %v2427 = vsel %vm311, %v2422, %v2426
        %v2429 = vshrl.u32 %v2107, 16
        %v2431 = vrot.slane %v2429, 4
        %v2432 = vshll.u32 %v2107, 16
        %v2434 = vrot.slane %v2432, 5
        %v2435 = vor.u32 %v2431, %v2434
        %v2436 = vrot.slane %v2435, 4
        %v2438 = vshll.u32 %v2108, 16
        %v2440 = vrot.slane %v2438, 5
        %v2441 = vsel %vm311, %v2436, %v2440
        %v2442 = vshrl.u32 %v2108, 16
        %v2444 = vrot.slane %v2442, 4
        %v2445 = vor.u32 %v2444, %v2440
        %v2446 = vrot.slane %v2445, 4
        %v2448 = vshll.u32 %v2109, 16
        %v2450 = vrot.slane %v2448, 5
        %v2451 = vsel %vm311, %v2446, %v2450
        %v2453 = vshrl.u32 %v2110, 16
        %v2455 = vrot.slane %v2453, 4
        %v2456 = vshll.u32 %v2110, 16
        %v2458 = vrot.slane %v2456, 5
        %v2459 = vor.u32 %v2455, %v2458
        %v2460 = vrot.slane %v2459, 4
        %v2462 = vshll.u32 %v2111, 16
        %v2464 = vrot.slane %v2462, 5
        %v2465 = vsel %vm311, %v2460, %v2464
        %v2466 = vshrl.u32 %v2111, 16
        %v2468 = vrot.slane %v2466, 4
        %v2469 = vor.u32 %v2468, %v2464
        %v2470 = vrot.slane %v2469, 4
        %v2472 = vshll.u32 %v2112, 16
        %v2474 = vrot.slane %v2472, 5
        %v2475 = vsel %vm311, %v2470, %v2474
        %v2477 = vshrl.u32 %v2113, 16
        %v2479 = vrot.slane %v2477, 4
        %v2480 = vshll.u32 %v2113, 16
        %v2482 = vrot.slane %v2480, 5
        %v2483 = vor.u32 %v2479, %v2482
        %v2484 = vrot.slane %v2483, 4
        %v2486 = vshll.u32 %v2114, 16
        %v2488 = vrot.slane %v2486, 5
        %v2489 = vsel %vm311, %v2484, %v2488
        %v2490 = vshrl.u32 %v2114, 16
        %v2492 = vrot.slane %v2490, 4
        %v2493 = vor.u32 %v2492, %v2488
        %v2494 = vrot.slane %v2493, 4
        %v2496 = vshll.u32 %v2115, 16
        %v2498 = vrot.slane %v2496, 5
        %v2499 = vsel %vm311, %v2494, %v2498
        %s2500 = scalar_lea.vmem %s1, 8
        %v2501 = vld [vmem:[%s2500] sm:$0x3]
        %v2502 = vunpack.c.l.b16 %v2129
        %v2503 = vunpack.c.l.b16 %v2139
        %v2504 = vunpack.c.l.b16 %v2153
        %v2505 = vunpack.c.l.b16 %v2163
        %v2506 = vunpack.c.l.b16 %v2177
        %v2507 = vunpack.c.l.b16 %v2187
        %v2508 = vunpack.c.l.b16 %v2201
        %v2509 = vunpack.c.l.b16 %v2211
        %v2510 = vunpack.c.l.b16 %v2225
        %v2511 = vunpack.c.l.b16 %v2235
        %v2512 = vunpack.c.l.b16 %v2249
        %v2513 = vunpack.c.l.b16 %v2259
        %v2514 = vunpack.c.l.b16 %v2273
        %v2515 = vunpack.c.l.b16 %v2283
        %v2516 = vunpack.c.l.b16 %v2297
        %v2517 = vunpack.c.l.b16 %v2307
        %v2518 = vunpack.c.l.b16 %v2321
        %v2519 = vunpack.c.l.b16 %v2331
        %v2520 = vunpack.c.l.b16 %v2345
        %v2521 = vunpack.c.l.b16 %v2355
        %v2522 = vunpack.c.l.b16 %v2369
        %v2523 = vunpack.c.l.b16 %v2379
        %v2524 = vunpack.c.l.b16 %v2393
        %v2525 = vunpack.c.l.b16 %v2403
        %v2526 = vunpack.c.l.b16 %v2417
        %v2527 = vunpack.c.l.b16 %v2427
        %v2528 = vunpack.c.l.b16 %v2441
        %v2529 = vunpack.c.l.b16 %v2451
        %v2530 = vunpack.c.l.b16 %v2465
        %v2531 = vunpack.c.l.b16 %v2475
        %v2532 = vunpack.c.l.b16 %v2489
        %v2533 = vunpack.c.l.b16 %v2499
        %v2534 = vpack.c.b16 %v2503, %v2502
        %v2535 = vpack.c.b16 %v2505, %v2504
        %v2536 = vpack.c.b16 %v2507, %v2506
        %v2537 = vpack.c.b16 %v2509, %v2508
        %v2538 = vpack.c.b16 %v2511, %v2510
        %v2539 = vpack.c.b16 %v2513, %v2512
        %v2540 = vpack.c.b16 %v2515, %v2514
        %v2541 = vpack.c.b16 %v2517, %v2516
        %v2542 = vpack.c.b16 %v2519, %v2518
        %v2543 = vpack.c.b16 %v2521, %v2520
        %v2544 = vpack.c.b16 %v2523, %v2522
        %v2545 = vpack.c.b16 %v2525, %v2524
        %v2546 = vpack.c.b16 %v2527, %v2526
        %v2547 = vpack.c.b16 %v2529, %v2528
        %v2548 = vpack.c.b16 %v2531, %v2530
        %v2549 = vpack.c.b16 %v2533, %v2532
        %v2551 = vsel %vm746, %v2534, 0
        %v2554 = vsel %vm746, %v2535, 0
        %v2557 = vsel %vm746, %v2536, 0
        %v2560 = vsel %vm746, %v2537, 0
        %v2563 = vsel %vm746, %v2538, 0
        %v2566 = vsel %vm746, %v2539, 0
        %v2569 = vsel %vm746, %v2540, 0
        %v2572 = vsel %vm746, %v2541, 0
        %v2575 = vsel %vm746, %v2542, 0
        %v2578 = vsel %vm746, %v2543, 0
        %v2581 = vsel %vm746, %v2544, 0
        %v2584 = vsel %vm746, %v2545, 0
        %v2587 = vsel %vm746, %v2546, 0
        %v2590 = vsel %vm746, %v2547, 0
        %v2593 = vsel %vm746, %v2548, 0
        %v2596 = vsel %vm746, %v2549, 0
        %v2599 = vsel %vm795, %v2501, 0
        %2601 = vmatprep.subr.bf16.mxu0 0
        %2602 = vmatpush1.bf16.msra.mxu0 0
        %2603 = vmatprep.subr.bf16.mxu0 0
        %2604 = vmatpush1.bf16.msra.mxu0 0
        %2605 = vmatprep.subr.bf16.mxu0 0
        %2606 = vmatpush1.bf16.msra.mxu0 0
        %2607 = vmatprep.subr.bf16.mxu0 0
        %2608 = vmatpush1.bf16.msra.mxu0 0
        %2609 = vmatprep.subr.bf16.mxu0 0
        %2610 = vmatpush1.bf16.msra.mxu0 0
        %2611 = vmatprep.subr.bf16.mxu0 0
        %2612 = vmatpush1.bf16.msra.mxu0 0
        %2613 = vmatprep.subr.bf16.mxu0 0
        %2614 = vmatpush1.bf16.msra.mxu0 0
        %2615 = vmatprep.subr.bf16.mxu0 0
        %2616 = vmatpush1.bf16.msra.mxu0 %v2599
        %2617 = vmatprep.subr.bf16.mxu0 0
        %2618 = vmatpush2.bf16.msra.mxu0 0
        %2619 = vmatprep.subr.bf16.mxu0 0
        %2620 = vmatpush2.bf16.msra.mxu0 0
        %2621 = vmatprep.subr.bf16.mxu0 0
        %2622 = vmatpush2.bf16.msra.mxu0 0
        %2623 = vmatprep.subr.bf16.mxu0 0
        %2624 = vmatpush2.bf16.msra.mxu0 0
        %2625 = vmatprep.subr.bf16.mxu0 0
        %2626 = vmatpush2.bf16.msra.mxu0 0
        %2627 = vmatprep.subr.bf16.mxu0 0
        %2628 = vmatpush2.bf16.msra.mxu0 0
        %2629 = vmatprep.subr.bf16.mxu0 0
        %2630 = vmatpush2.bf16.msra.mxu0 0
        %2631 = vmatprep.subr.bf16.mxu0 0
        %2632 = vmatpush2.bf16.msra.mxu0 0
        %2633 = vmatprep.mubr.bf16.mxu0 0
        %2634 = vmatmul.mubr.bf16.gmra.mxu0 %v2551
        %v2635 = vpop.f32.mrf.mxu0
        %v2636 = vadd.f32 0.0, %v2635
        %v2637 = vpop.f32.mrf.mxu0
        %v2638 = vpop.f32.mrf.mxu0
        %v2639 = vadd.f32 0.0, %v2638
        %v2640 = vpop.f32.mrf.mxu0
        %2641 = vmatprep.mubr.bf16.mxu0 0
        %2642 = vmatmul.mubr.bf16.gmra.mxu0 %v2554
        %v2643 = vpop.f32.mrf.mxu0
        %v2644 = vadd.f32 0.0, %v2643
        %v2645 = vpop.f32.mrf.mxu0
        %v2646 = vpop.f32.mrf.mxu0
        %v2647 = vadd.f32 0.0, %v2646
        %v2648 = vpop.f32.mrf.mxu0
        %2649 = vmatprep.mubr.bf16.mxu0 0
        %2650 = vmatmul.mubr.bf16.gmra.mxu0 %v2557
        %v2651 = vpop.f32.mrf.mxu0
        %v2652 = vadd.f32 0.0, %v2651
        %v2653 = vpop.f32.mrf.mxu0
        %v2654 = vpop.f32.mrf.mxu0
        %v2655 = vadd.f32 0.0, %v2654
        %v2656 = vpop.f32.mrf.mxu0
        %2657 = vmatprep.mubr.bf16.mxu0 0
        %2658 = vmatmul.mubr.bf16.gmra.mxu0 %v2560
        %v2659 = vpop.f32.mrf.mxu0
        %v2660 = vadd.f32 0.0, %v2659
        %v2661 = vpop.f32.mrf.mxu0
        %v2662 = vpop.f32.mrf.mxu0
        %v2663 = vadd.f32 0.0, %v2662
        %v2664 = vpop.f32.mrf.mxu0
        %2665 = vmatprep.mubr.bf16.mxu0 0
        %2666 = vmatmul.mubr.bf16.gmra.mxu0 %v2563
        %v2667 = vpop.f32.mrf.mxu0
        %v2668 = vadd.f32 0.0, %v2667
        %v2669 = vpop.f32.mrf.mxu0
        %v2670 = vpop.f32.mrf.mxu0
        %v2671 = vadd.f32 0.0, %v2670
        %v2672 = vpop.f32.mrf.mxu0
        %2673 = vmatprep.mubr.bf16.mxu0 0
        %2674 = vmatmul.mubr.bf16.gmra.mxu0 %v2566
        %v2675 = vpop.f32.mrf.mxu0
        %v2676 = vadd.f32 0.0, %v2675
        %v2677 = vpop.f32.mrf.mxu0
        %v2678 = vpop.f32.mrf.mxu0
        %v2679 = vadd.f32 0.0, %v2678
        %v2680 = vpop.f32.mrf.mxu0
        %2681 = vmatprep.mubr.bf16.mxu0 0
        %2682 = vmatmul.mubr.bf16.gmra.mxu0 %v2569
        %v2683 = vpop.f32.mrf.mxu0
        %v2684 = vadd.f32 0.0, %v2683
        %v2685 = vpop.f32.mrf.mxu0
        %v2686 = vpop.f32.mrf.mxu0
        %v2687 = vadd.f32 0.0, %v2686
        %v2688 = vpop.f32.mrf.mxu0
        %2689 = vmatprep.mubr.bf16.mxu0 0
        %2690 = vmatmul.mubr.bf16.gmra.mxu0 %v2572
        %v2691 = vpop.f32.mrf.mxu0
        %v2692 = vadd.f32 0.0, %v2691
        %v2693 = vpop.f32.mrf.mxu0
        %v2694 = vpop.f32.mrf.mxu0
        %v2695 = vadd.f32 0.0, %v2694
        %v2696 = vpop.f32.mrf.mxu0
        %2697 = vmatprep.mubr.bf16.mxu0 0
        %2698 = vmatmul.mubr.bf16.gmra.mxu0 %v2575
        %v2699 = vpop.f32.mrf.mxu0
        %v2700 = vadd.f32 0.0, %v2699
        %v2701 = vpop.f32.mrf.mxu0
        %v2702 = vpop.f32.mrf.mxu0
        %v2703 = vadd.f32 0.0, %v2702
        %v2704 = vpop.f32.mrf.mxu0
        %2705 = vmatprep.mubr.bf16.mxu0 0
        %2706 = vmatmul.mubr.bf16.gmra.mxu0 %v2578
        %v2707 = vpop.f32.mrf.mxu0
        %v2708 = vadd.f32 0.0, %v2707
        %v2709 = vpop.f32.mrf.mxu0
        %v2710 = vpop.f32.mrf.mxu0
        %v2711 = vadd.f32 0.0, %v2710
        %v2712 = vpop.f32.mrf.mxu0
        %2713 = vmatprep.mubr.bf16.mxu0 0
        %2714 = vmatmul.mubr.bf16.gmra.mxu0 %v2581
        %v2715 = vpop.f32.mrf.mxu0
        %v2716 = vadd.f32 0.0, %v2715
        %v2717 = vpop.f32.mrf.mxu0
        %v2718 = vpop.f32.mrf.mxu0
        %v2719 = vadd.f32 0.0, %v2718
        %v2720 = vpop.f32.mrf.mxu0
        %2721 = vmatprep.mubr.bf16.mxu0 0
        %2722 = vmatmul.mubr.bf16.gmra.mxu0 %v2584
        %v2723 = vpop.f32.mrf.mxu0
        %v2724 = vadd.f32 0.0, %v2723
        %v2725 = vpop.f32.mrf.mxu0
        %v2726 = vpop.f32.mrf.mxu0
        %v2727 = vadd.f32 0.0, %v2726
        %v2728 = vpop.f32.mrf.mxu0
        %2729 = vmatprep.mubr.bf16.mxu0 0
        %2730 = vmatmul.mubr.bf16.gmra.mxu0 %v2587
        %v2731 = vpop.f32.mrf.mxu0
        %v2732 = vadd.f32 0.0, %v2731
        %v2733 = vpop.f32.mrf.mxu0
        %v2734 = vpop.f32.mrf.mxu0
        %v2735 = vadd.f32 0.0, %v2734
        %v2736 = vpop.f32.mrf.mxu0
        %2737 = vmatprep.mubr.bf16.mxu0 0
        %2738 = vmatmul.mubr.bf16.gmra.mxu0 %v2590
        %v2739 = vpop.f32.mrf.mxu0
        %v2740 = vadd.f32 0.0, %v2739
        %v2741 = vpop.f32.mrf.mxu0
        %v2742 = vpop.f32.mrf.mxu0
        %v2743 = vadd.f32 0.0, %v2742
        %v2744 = vpop.f32.mrf.mxu0
        %2745 = vmatprep.mubr.bf16.mxu0 0
        %2746 = vmatmul.mubr.bf16.gmra.mxu0 %v2593
        %v2747 = vpop.f32.mrf.mxu0
        %v2748 = vadd.f32 0.0, %v2747
        %v2749 = vpop.f32.mrf.mxu0
        %v2750 = vpop.f32.mrf.mxu0
        %v2751 = vadd.f32 0.0, %v2750
        %v2752 = vpop.f32.mrf.mxu0
        %2753 = vmatprep.mubr.bf16.mxu0 0
        %2754 = vmatmul.mubr.bf16.gmra.mxu0 %v2596
        %v2755 = vpop.f32.mrf.mxu0
        %v2756 = vadd.f32 0.0, %v2755
        %v2757 = vpop.f32.mrf.mxu0
        %v2758 = vpop.f32.mrf.mxu0
        %v2759 = vadd.f32 0.0, %v2758
        %v2760 = vpop.f32.mrf.mxu0
        %2761 = vdwg.mxu0
        %v2762 = vadd.f32 %v2036, %v2636
        %v2763 = vadd.f32 %v2037, %v2639
        %v2764 = vadd.f32 %v2038, %v2644
        %v2765 = vadd.f32 %v2039, %v2647
        %v2766 = vadd.f32 %v2040, %v2652
        %v2767 = vadd.f32 %v2041, %v2655
        %v2768 = vadd.f32 %v2042, %v2660
        %v2769 = vadd.f32 %v2043, %v2663
        %v2770 = vadd.f32 %v2044, %v2668
        %v2771 = vadd.f32 %v2045, %v2671
        %v2772 = vadd.f32 %v2046, %v2676
        %v2773 = vadd.f32 %v2047, %v2679
        %v2774 = vadd.f32 %v2048, %v2684
        %v2775 = vadd.f32 %v2049, %v2687
        %v2776 = vadd.f32 %v2050, %v2692
        %v2777 = vadd.f32 %v2051, %v2695
        %v2778 = vadd.f32 %v2052, %v2700
        %v2779 = vadd.f32 %v2053, %v2703
        %v2780 = vadd.f32 %v2054, %v2708
        %v2781 = vadd.f32 %v2055, %v2711
        %v2782 = vadd.f32 %v2056, %v2716
        %v2783 = vadd.f32 %v2057, %v2719
        %v2784 = vadd.f32 %v2058, %v2724
        %v2785 = vadd.f32 %v2059, %v2727
        %v2786 = vadd.f32 %v2060, %v2732
        %v2787 = vadd.f32 %v2061, %v2735
        %v2788 = vadd.f32 %v2062, %v2740
        %v2789 = vadd.f32 %v2063, %v2743
        %v2790 = vadd.f32 %v2064, %v2748
        %v2791 = vadd.f32 %v2065, %v2751
        %v2792 = vadd.f32 %v2066, %v2756
        %v2793 = vadd.f32 %v2067, %v2759
        %v2794 = vld [vmem:[%s1709] sm:$0xe]
        %v2795 = vld [vmem:[%s1709 + $0xc] sm:$0xe]
        %v2796 = vld [vmem:[%s1709 + $0x18] sm:$0xe]
        %v2797 = vld [vmem:[%s1709 + $0x24] sm:$0xe]
        %v2798 = vld [vmem:[%s1709 + $0x30] sm:$0xe]
        %v2799 = vld [vmem:[%s1709 + $0x3c] sm:$0xe]
        %v2800 = vld [vmem:[%s1709 + $0x48] sm:$0xe]
        %v2801 = vld [vmem:[%s1709 + $0x54] sm:$0xe]
        %v2802 = vld [vmem:[%s1709 + $0x60] sm:$0xe]
        %v2803 = vld [vmem:[%s1709 + $0x6c] sm:$0xe]
        %v2804 = vld [vmem:[%s1709 + $0x78] sm:$0xe]
        %v2805 = vld [vmem:[%s1709 + $0x84] sm:$0xe]
        %v2806 = vld [vmem:[%s1709 + $0x90] sm:$0xe]
        %v2807 = vld [vmem:[%s1709 + $0x9c] sm:$0xe]
        %v2808 = vld [vmem:[%s1709 + $0xa8] sm:$0xe]
        %v2809 = vld [vmem:[%s1709 + $0xb4] sm:$0xe]
        %v2858 = vrot.slane %v2794, 5
        %v2859 = vrot.slane %v2858, 4
        %v2860 = vrot.slane %v2069, 5
        %v2861 = vsel %vm1302, %v2859, %v2860
        %v2862 = vrot.slane %v2860, 4
        %v2863 = vrot.slane %v2070, 5
        %v2864 = vsel %vm1302, %v2862, %v2863
        %v2865 = vrot.slane %v2795, 5
        %v2866 = vrot.slane %v2865, 4
        %v2867 = vrot.slane %v2072, 5
        %v2868 = vsel %vm1302, %v2866, %v2867
        %v2869 = vrot.slane %v2867, 4
        %v2870 = vrot.slane %v2073, 5
        %v2871 = vsel %vm1302, %v2869, %v2870
        %v2872 = vrot.slane %v2796, 5
        %v2873 = vrot.slane %v2872, 4
        %v2874 = vrot.slane %v2075, 5
        %v2875 = vsel %vm1302, %v2873, %v2874
        %v2876 = vrot.slane %v2874, 4
        %v2877 = vrot.slane %v2076, 5
        %v2878 = vsel %vm1302, %v2876, %v2877
        %v2879 = vrot.slane %v2797, 5
        %v2880 = vrot.slane %v2879, 4
        %v2881 = vrot.slane %v2078, 5
        %v2882 = vsel %vm1302, %v2880, %v2881
        %v2883 = vrot.slane %v2881, 4
        %v2884 = vrot.slane %v2079, 5
        %v2885 = vsel %vm1302, %v2883, %v2884
        %v2886 = vrot.slane %v2798, 5
        %v2887 = vrot.slane %v2886, 4
        %v2888 = vrot.slane %v2081, 5
        %v2889 = vsel %vm1302, %v2887, %v2888
        %v2890 = vrot.slane %v2888, 4
        %v2891 = vrot.slane %v2082, 5
        %v2892 = vsel %vm1302, %v2890, %v2891
        %v2893 = vrot.slane %v2799, 5
        %v2894 = vrot.slane %v2893, 4
        %v2895 = vrot.slane %v2084, 5
        %v2896 = vsel %vm1302, %v2894, %v2895
        %v2897 = vrot.slane %v2895, 4
        %v2898 = vrot.slane %v2085, 5
        %v2899 = vsel %vm1302, %v2897, %v2898
        %v2900 = vrot.slane %v2800, 5
        %v2901 = vrot.slane %v2900, 4
        %v2902 = vrot.slane %v2087, 5
        %v2903 = vsel %vm1302, %v2901, %v2902
        %v2904 = vrot.slane %v2902, 4
        %v2905 = vrot.slane %v2088, 5
        %v2906 = vsel %vm1302, %v2904, %v2905
        %v2907 = vrot.slane %v2801, 5
        %v2908 = vrot.slane %v2907, 4
        %v2909 = vrot.slane %v2090, 5
        %v2910 = vsel %vm1302, %v2908, %v2909
        %v2911 = vrot.slane %v2909, 4
        %v2912 = vrot.slane %v2091, 5
        %v2913 = vsel %vm1302, %v2911, %v2912
        %v2914 = vrot.slane %v2802, 5
        %v2915 = vrot.slane %v2914, 4
        %v2916 = vrot.slane %v2093, 5
        %v2917 = vsel %vm1302, %v2915, %v2916
        %v2918 = vrot.slane %v2916, 4
        %v2919 = vrot.slane %v2094, 5
        %v2920 = vsel %vm1302, %v2918, %v2919
        %v2921 = vrot.slane %v2803, 5
        %v2922 = vrot.slane %v2921, 4
        %v2923 = vrot.slane %v2096, 5
        %v2924 = vsel %vm1302, %v2922, %v2923
        %v2925 = vrot.slane %v2923, 4
        %v2926 = vrot.slane %v2097, 5
        %v2927 = vsel %vm1302, %v2925, %v2926
        %v2928 = vrot.slane %v2804, 5
        %v2929 = vrot.slane %v2928, 4
        %v2930 = vrot.slane %v2099, 5
        %v2931 = vsel %vm1302, %v2929, %v2930
        %v2932 = vrot.slane %v2930, 4
        %v2933 = vrot.slane %v2100, 5
        %v2934 = vsel %vm1302, %v2932, %v2933
        %v2935 = vrot.slane %v2805, 5
        %v2936 = vrot.slane %v2935, 4
        %v2937 = vrot.slane %v2102, 5
        %v2938 = vsel %vm1302, %v2936, %v2937
        %v2939 = vrot.slane %v2937, 4
        %v2940 = vrot.slane %v2103, 5
        %v2941 = vsel %vm1302, %v2939, %v2940
        %v2942 = vrot.slane %v2806, 5
        %v2943 = vrot.slane %v2942, 4
        %v2944 = vrot.slane %v2105, 5
        %v2945 = vsel %vm1302, %v2943, %v2944
        %v2946 = vrot.slane %v2944, 4
        %v2947 = vrot.slane %v2106, 5
        %v2948 = vsel %vm1302, %v2946, %v2947
        %v2949 = vrot.slane %v2807, 5
        %v2950 = vrot.slane %v2949, 4
        %v2951 = vrot.slane %v2108, 5
        %v2952 = vsel %vm1302, %v2950, %v2951
        %v2953 = vrot.slane %v2951, 4
        %v2954 = vrot.slane %v2109, 5
        %v2955 = vsel %vm1302, %v2953, %v2954
        %v2956 = vrot.slane %v2808, 5
        %v2957 = vrot.slane %v2956, 4
        %v2958 = vrot.slane %v2111, 5
        %v2959 = vsel %vm1302, %v2957, %v2958
        %v2960 = vrot.slane %v2958, 4
        %v2961 = vrot.slane %v2112, 5
        %v2962 = vsel %vm1302, %v2960, %v2961
        %v2963 = vrot.slane %v2809, 5
        %v2964 = vrot.slane %v2963, 4
        %v2965 = vrot.slane %v2114, 5
        %v2966 = vsel %vm1302, %v2964, %v2965
        %v2967 = vrot.slane %v2965, 4
        %v2968 = vrot.slane %v2115, 5
        %v2969 = vsel %vm1302, %v2967, %v2968
        %s2970 = scalar_lea.vmem %s1, 10
        %v2971 = vld [vmem:[%s2970] sm:$0x3]
        %v2972 = vunpack.c.l.b16 %v2861
        %v2973 = vunpack.c.l.b16 %v2864
        %v2974 = vunpack.c.l.b16 %v2868
        %v2975 = vunpack.c.l.b16 %v2871
        %v2976 = vunpack.c.l.b16 %v2875
        %v2977 = vunpack.c.l.b16 %v2878
        %v2978 = vunpack.c.l.b16 %v2882
        %v2979 = vunpack.c.l.b16 %v2885
        %v2980 = vunpack.c.l.b16 %v2889
        %v2981 = vunpack.c.l.b16 %v2892
        %v2982 = vunpack.c.l.b16 %v2896
        %v2983 = vunpack.c.l.b16 %v2899
        %v2984 = vunpack.c.l.b16 %v2903
        %v2985 = vunpack.c.l.b16 %v2906
        %v2986 = vunpack.c.l.b16 %v2910
        %v2987 = vunpack.c.l.b16 %v2913
        %v2988 = vunpack.c.l.b16 %v2917
        %v2989 = vunpack.c.l.b16 %v2920
        %v2990 = vunpack.c.l.b16 %v2924
        %v2991 = vunpack.c.l.b16 %v2927
        %v2992 = vunpack.c.l.b16 %v2931
        %v2993 = vunpack.c.l.b16 %v2934
        %v2994 = vunpack.c.l.b16 %v2938
        %v2995 = vunpack.c.l.b16 %v2941
        %v2996 = vunpack.c.l.b16 %v2945
        %v2997 = vunpack.c.l.b16 %v2948
        %v2998 = vunpack.c.l.b16 %v2952
        %v2999 = vunpack.c.l.b16 %v2955
        %v3000 = vunpack.c.l.b16 %v2959
        %v3001 = vunpack.c.l.b16 %v2962
        %v3002 = vunpack.c.l.b16 %v2966
        %v3003 = vunpack.c.l.b16 %v2969
        %v3004 = vpack.c.b16 %v2973, %v2972
        %v3005 = vpack.c.b16 %v2975, %v2974
        %v3006 = vpack.c.b16 %v2977, %v2976
        %v3007 = vpack.c.b16 %v2979, %v2978
        %v3008 = vpack.c.b16 %v2981, %v2980
        %v3009 = vpack.c.b16 %v2983, %v2982
        %v3010 = vpack.c.b16 %v2985, %v2984
        %v3011 = vpack.c.b16 %v2987, %v2986
        %v3012 = vpack.c.b16 %v2989, %v2988
        %v3013 = vpack.c.b16 %v2991, %v2990
        %v3014 = vpack.c.b16 %v2993, %v2992
        %v3015 = vpack.c.b16 %v2995, %v2994
        %v3016 = vpack.c.b16 %v2997, %v2996
        %v3017 = vpack.c.b16 %v2999, %v2998
        %v3018 = vpack.c.b16 %v3001, %v3000
        %v3019 = vpack.c.b16 %v3003, %v3002
        %v3021 = vsel %vm746, %v3004, 0
        %v3024 = vsel %vm746, %v3005, 0
        %v3027 = vsel %vm746, %v3006, 0
        %v3030 = vsel %vm746, %v3007, 0
        %v3033 = vsel %vm746, %v3008, 0
        %v3036 = vsel %vm746, %v3009, 0
        %v3039 = vsel %vm746, %v3010, 0
        %v3042 = vsel %vm746, %v3011, 0
        %v3045 = vsel %vm746, %v3012, 0
        %v3048 = vsel %vm746, %v3013, 0
        %v3051 = vsel %vm746, %v3014, 0
        %v3054 = vsel %vm746, %v3015, 0
        %v3057 = vsel %vm746, %v3016, 0
        %v3060 = vsel %vm746, %v3017, 0
        %v3063 = vsel %vm746, %v3018, 0
        %v3066 = vsel %vm746, %v3019, 0
        %v3069 = vsel %vm795, %v2971, 0
        %3071 = vmatprep.subr.bf16.mxu0 0
        %3072 = vmatpush1.bf16.msra.mxu0 0
        %3073 = vmatprep.subr.bf16.mxu0 0
        %3074 = vmatpush1.bf16.msra.mxu0 0
        %3075 = vmatprep.subr.bf16.mxu0 0
        %3076 = vmatpush1.bf16.msra.mxu0 0
        %3077 = vmatprep.subr.bf16.mxu0 0
        %3078 = vmatpush1.bf16.msra.mxu0 0
        %3079 = vmatprep.subr.bf16.mxu0 0
        %3080 = vmatpush1.bf16.msra.mxu0 0
        %3081 = vmatprep.subr.bf16.mxu0 0
        %3082 = vmatpush1.bf16.msra.mxu0 0
        %3083 = vmatprep.subr.bf16.mxu0 0
        %3084 = vmatpush1.bf16.msra.mxu0 0
        %3085 = vmatprep.subr.bf16.mxu0 0
        %3086 = vmatpush1.bf16.msra.mxu0 %v3069
        %3087 = vmatprep.subr.bf16.mxu0 0
        %3088 = vmatpush2.bf16.msra.mxu0 0
        %3089 = vmatprep.subr.bf16.mxu0 0
        %3090 = vmatpush2.bf16.msra.mxu0 0
        %3091 = vmatprep.subr.bf16.mxu0 0
        %3092 = vmatpush2.bf16.msra.mxu0 0
        %3093 = vmatprep.subr.bf16.mxu0 0
        %3094 = vmatpush2.bf16.msra.mxu0 0
        %3095 = vmatprep.subr.bf16.mxu0 0
        %3096 = vmatpush2.bf16.msra.mxu0 0
        %3097 = vmatprep.subr.bf16.mxu0 0
        %3098 = vmatpush2.bf16.msra.mxu0 0
        %3099 = vmatprep.subr.bf16.mxu0 0
        %3100 = vmatpush2.bf16.msra.mxu0 0
        %3101 = vmatprep.subr.bf16.mxu0 0
        %3102 = vmatpush2.bf16.msra.mxu0 0
        %3103 = vmatprep.mubr.bf16.mxu0 0
        %3104 = vmatmul.mubr.bf16.gmra.mxu0 %v3021
        %v3105 = vpop.f32.mrf.mxu0
        %v3106 = vadd.f32 0.0, %v3105
        %v3107 = vpop.f32.mrf.mxu0
        %v3108 = vpop.f32.mrf.mxu0
        %v3109 = vadd.f32 0.0, %v3108
        %v3110 = vpop.f32.mrf.mxu0
        %3111 = vmatprep.mubr.bf16.mxu0 0
        %3112 = vmatmul.mubr.bf16.gmra.mxu0 %v3024
        %v3113 = vpop.f32.mrf.mxu0
        %v3114 = vadd.f32 0.0, %v3113
        %v3115 = vpop.f32.mrf.mxu0
        %v3116 = vpop.f32.mrf.mxu0
        %v3117 = vadd.f32 0.0, %v3116
        %v3118 = vpop.f32.mrf.mxu0
        %3119 = vmatprep.mubr.bf16.mxu0 0
        %3120 = vmatmul.mubr.bf16.gmra.mxu0 %v3027
        %v3121 = vpop.f32.mrf.mxu0
        %v3122 = vadd.f32 0.0, %v3121
        %v3123 = vpop.f32.mrf.mxu0
        %v3124 = vpop.f32.mrf.mxu0
        %v3125 = vadd.f32 0.0, %v3124
        %v3126 = vpop.f32.mrf.mxu0
        %3127 = vmatprep.mubr.bf16.mxu0 0
        %3128 = vmatmul.mubr.bf16.gmra.mxu0 %v3030
        %v3129 = vpop.f32.mrf.mxu0
        %v3130 = vadd.f32 0.0, %v3129
        %v3131 = vpop.f32.mrf.mxu0
        %v3132 = vpop.f32.mrf.mxu0
        %v3133 = vadd.f32 0.0, %v3132
        %v3134 = vpop.f32.mrf.mxu0
        %3135 = vmatprep.mubr.bf16.mxu0 0
        %3136 = vmatmul.mubr.bf16.gmra.mxu0 %v3033
        %v3137 = vpop.f32.mrf.mxu0
        %v3138 = vadd.f32 0.0, %v3137
        %v3139 = vpop.f32.mrf.mxu0
        %v3140 = vpop.f32.mrf.mxu0
        %v3141 = vadd.f32 0.0, %v3140
        %v3142 = vpop.f32.mrf.mxu0
        %3143 = vmatprep.mubr.bf16.mxu0 0
        %3144 = vmatmul.mubr.bf16.gmra.mxu0 %v3036
        %v3145 = vpop.f32.mrf.mxu0
        %v3146 = vadd.f32 0.0, %v3145
        %v3147 = vpop.f32.mrf.mxu0
        %v3148 = vpop.f32.mrf.mxu0
        %v3149 = vadd.f32 0.0, %v3148
        %v3150 = vpop.f32.mrf.mxu0
        %3151 = vmatprep.mubr.bf16.mxu0 0
        %3152 = vmatmul.mubr.bf16.gmra.mxu0 %v3039
        %v3153 = vpop.f32.mrf.mxu0
        %v3154 = vadd.f32 0.0, %v3153
        %v3155 = vpop.f32.mrf.mxu0
        %v3156 = vpop.f32.mrf.mxu0
        %v3157 = vadd.f32 0.0, %v3156
        %v3158 = vpop.f32.mrf.mxu0
        %3159 = vmatprep.mubr.bf16.mxu0 0
        %3160 = vmatmul.mubr.bf16.gmra.mxu0 %v3042
        %v3161 = vpop.f32.mrf.mxu0
        %v3162 = vadd.f32 0.0, %v3161
        %v3163 = vpop.f32.mrf.mxu0
        %v3164 = vpop.f32.mrf.mxu0
        %v3165 = vadd.f32 0.0, %v3164
        %v3166 = vpop.f32.mrf.mxu0
        %3167 = vmatprep.mubr.bf16.mxu0 0
        %3168 = vmatmul.mubr.bf16.gmra.mxu0 %v3045
        %v3169 = vpop.f32.mrf.mxu0
        %v3170 = vadd.f32 0.0, %v3169
        %v3171 = vpop.f32.mrf.mxu0
        %v3172 = vpop.f32.mrf.mxu0
        %v3173 = vadd.f32 0.0, %v3172
        %v3174 = vpop.f32.mrf.mxu0
        %3175 = vmatprep.mubr.bf16.mxu0 0
        %3176 = vmatmul.mubr.bf16.gmra.mxu0 %v3048
        %v3177 = vpop.f32.mrf.mxu0
        %v3178 = vadd.f32 0.0, %v3177
        %v3179 = vpop.f32.mrf.mxu0
        %v3180 = vpop.f32.mrf.mxu0
        %v3181 = vadd.f32 0.0, %v3180
        %v3182 = vpop.f32.mrf.mxu0
        %3183 = vmatprep.mubr.bf16.mxu0 0
        %3184 = vmatmul.mubr.bf16.gmra.mxu0 %v3051
        %v3185 = vpop.f32.mrf.mxu0
        %v3186 = vadd.f32 0.0, %v3185
        %v3187 = vpop.f32.mrf.mxu0
        %v3188 = vpop.f32.mrf.mxu0
        %v3189 = vadd.f32 0.0, %v3188
        %v3190 = vpop.f32.mrf.mxu0
        %3191 = vmatprep.mubr.bf16.mxu0 0
        %3192 = vmatmul.mubr.bf16.gmra.mxu0 %v3054
        %v3193 = vpop.f32.mrf.mxu0
        %v3194 = vadd.f32 0.0, %v3193
        %v3195 = vpop.f32.mrf.mxu0
        %v3196 = vpop.f32.mrf.mxu0
        %v3197 = vadd.f32 0.0, %v3196
        %v3198 = vpop.f32.mrf.mxu0
        %3199 = vmatprep.mubr.bf16.mxu0 0
        %3200 = vmatmul.mubr.bf16.gmra.mxu0 %v3057
        %v3201 = vpop.f32.mrf.mxu0
        %v3202 = vadd.f32 0.0, %v3201
        %v3203 = vpop.f32.mrf.mxu0
        %v3204 = vpop.f32.mrf.mxu0
        %v3205 = vadd.f32 0.0, %v3204
        %v3206 = vpop.f32.mrf.mxu0
        %3207 = vmatprep.mubr.bf16.mxu0 0
        %3208 = vmatmul.mubr.bf16.gmra.mxu0 %v3060
        %v3209 = vpop.f32.mrf.mxu0
        %v3210 = vadd.f32 0.0, %v3209
        %v3211 = vpop.f32.mrf.mxu0
        %v3212 = vpop.f32.mrf.mxu0
        %v3213 = vadd.f32 0.0, %v3212
        %v3214 = vpop.f32.mrf.mxu0
        %3215 = vmatprep.mubr.bf16.mxu0 0
        %3216 = vmatmul.mubr.bf16.gmra.mxu0 %v3063
        %v3217 = vpop.f32.mrf.mxu0
        %v3218 = vadd.f32 0.0, %v3217
        %v3219 = vpop.f32.mrf.mxu0
        %v3220 = vpop.f32.mrf.mxu0
        %v3221 = vadd.f32 0.0, %v3220
        %v3222 = vpop.f32.mrf.mxu0
        %3223 = vmatprep.mubr.bf16.mxu0 0
        %3224 = vmatmul.mubr.bf16.gmra.mxu0 %v3066
        %v3225 = vpop.f32.mrf.mxu0
        %v3226 = vadd.f32 0.0, %v3225
        %v3227 = vpop.f32.mrf.mxu0
        %v3228 = vpop.f32.mrf.mxu0
        %v3229 = vadd.f32 0.0, %v3228
        %v3230 = vpop.f32.mrf.mxu0
        %3231 = vdwg.mxu0
        %v3232 = vadd.f32 %v2762, %v3106
        %v3233 = vadd.f32 %v2763, %v3109
        %v3234 = vadd.f32 %v2764, %v3114
        %v3235 = vadd.f32 %v2765, %v3117
        %v3236 = vadd.f32 %v2766, %v3122
        %v3237 = vadd.f32 %v2767, %v3125
        %v3238 = vadd.f32 %v2768, %v3130
        %v3239 = vadd.f32 %v2769, %v3133
        %v3240 = vadd.f32 %v2770, %v3138
        %v3241 = vadd.f32 %v2771, %v3141
        %v3242 = vadd.f32 %v2772, %v3146
        %v3243 = vadd.f32 %v2773, %v3149
        %v3244 = vadd.f32 %v2774, %v3154
        %v3245 = vadd.f32 %v2775, %v3157
        %v3246 = vadd.f32 %v2776, %v3162
        %v3247 = vadd.f32 %v2777, %v3165
        %v3248 = vadd.f32 %v2778, %v3170
        %v3249 = vadd.f32 %v2779, %v3173
        %v3250 = vadd.f32 %v2780, %v3178
        %v3251 = vadd.f32 %v2781, %v3181
        %v3252 = vadd.f32 %v2782, %v3186
        %v3253 = vadd.f32 %v2783, %v3189
        %v3254 = vadd.f32 %v2784, %v3194
        %v3255 = vadd.f32 %v2785, %v3197
        %v3256 = vadd.f32 %v2786, %v3202
        %v3257 = vadd.f32 %v2787, %v3205
        %v3258 = vadd.f32 %v2788, %v3210
        %v3259 = vadd.f32 %v2789, %v3213
        %v3260 = vadd.f32 %v2790, %v3218
        %v3261 = vadd.f32 %v2791, %v3221
        %v3262 = vadd.f32 %v2792, %v3226
        %v3263 = vadd.f32 %v2793, %v3229
        %s3264 = scalar_lea.vmem %s258, 24
        %v3265 = vld [vmem:[%s3264] sm:$0xf]
        %v3266 = vld [vmem:[%s3264 + $0x4] sm:$0xf]
        %v3267 = vld [vmem:[%s3264 + $0xc] sm:$0xf]
        %v3268 = vld [vmem:[%s3264 + $0x10] sm:$0xf]
        %v3269 = vld [vmem:[%s3264 + $0x18] sm:$0xf]
        %v3270 = vld [vmem:[%s3264 + $0x1c] sm:$0xf]
        %v3271 = vld [vmem:[%s3264 + $0x24] sm:$0xf]
        %v3272 = vld [vmem:[%s3264 + $0x28] sm:$0xf]
        %v3273 = vld [vmem:[%s3264 + $0x30] sm:$0xf]
        %v3274 = vld [vmem:[%s3264 + $0x34] sm:$0xf]
        %v3275 = vld [vmem:[%s3264 + $0x3c] sm:$0xf]
        %v3276 = vld [vmem:[%s3264 + $0x40] sm:$0xf]
        %v3277 = vld [vmem:[%s3264 + $0x48] sm:$0xf]
        %v3278 = vld [vmem:[%s3264 + $0x4c] sm:$0xf]
        %v3279 = vld [vmem:[%s3264 + $0x54] sm:$0xf]
        %v3280 = vld [vmem:[%s3264 + $0x58] sm:$0xf]
        %v3281 = vld [vmem:[%s3264 + $0x60] sm:$0xf]
        %v3282 = vld [vmem:[%s3264 + $0x64] sm:$0xf]
        %v3283 = vld [vmem:[%s3264 + $0x6c] sm:$0xf]
        %v3284 = vld [vmem:[%s3264 + $0x70] sm:$0xf]
        %v3285 = vld [vmem:[%s3264 + $0x78] sm:$0xf]
        %v3286 = vld [vmem:[%s3264 + $0x7c] sm:$0xf]
        %v3287 = vld [vmem:[%s3264 + $0x84] sm:$0xf]
        %v3288 = vld [vmem:[%s3264 + $0x88] sm:$0xf]
        %v3289 = vld [vmem:[%s3264 + $0x90] sm:$0xf]
        %v3290 = vld [vmem:[%s3264 + $0x94] sm:$0xf]
        %v3291 = vld [vmem:[%s3264 + $0x9c] sm:$0xf]
        %v3292 = vld [vmem:[%s3264 + $0xa0] sm:$0xf]
        %v3293 = vld [vmem:[%s3264 + $0xa8] sm:$0xf]
        %v3294 = vld [vmem:[%s3264 + $0xac] sm:$0xf]
        %v3295 = vld [vmem:[%s3264 + $0xb4] sm:$0xf]
        %v3296 = vld [vmem:[%s3264 + $0xb8] sm:$0xf]
        %s3297 = scalar_lea.vmem %s1, 12
        %v3298 = vld [vmem:[%s3297] sm:$0x3]
        %v3331 = vunpack.c.l.b16 %v3265
        %v3332 = vunpack.c.l.b16 %v3266
        %v3333 = vunpack.c.l.b16 %v3267
        %v3334 = vunpack.c.l.b16 %v3268
        %v3335 = vunpack.c.l.b16 %v3269
        %v3336 = vunpack.c.l.b16 %v3270
        %v3337 = vunpack.c.l.b16 %v3271
        %v3338 = vunpack.c.l.b16 %v3272
        %v3339 = vunpack.c.l.b16 %v3273
        %v3340 = vunpack.c.l.b16 %v3274
        %v3341 = vunpack.c.l.b16 %v3275
        %v3342 = vunpack.c.l.b16 %v3276
        %v3343 = vunpack.c.l.b16 %v3277
        %v3344 = vunpack.c.l.b16 %v3278
        %v3345 = vunpack.c.l.b16 %v3279
        %v3346 = vunpack.c.l.b16 %v3280
        %v3347 = vunpack.c.l.b16 %v3281
        %v3348 = vunpack.c.l.b16 %v3282
        %v3349 = vunpack.c.l.b16 %v3283
        %v3350 = vunpack.c.l.b16 %v3284
        %v3351 = vunpack.c.l.b16 %v3285
        %v3352 = vunpack.c.l.b16 %v3286
        %v3353 = vunpack.c.l.b16 %v3287
        %v3354 = vunpack.c.l.b16 %v3288
        %v3355 = vunpack.c.l.b16 %v3289
        %v3356 = vunpack.c.l.b16 %v3290
        %v3357 = vunpack.c.l.b16 %v3291
        %v3358 = vunpack.c.l.b16 %v3292
        %v3359 = vunpack.c.l.b16 %v3293
        %v3360 = vunpack.c.l.b16 %v3294
        %v3361 = vunpack.c.l.b16 %v3295
        %v3362 = vunpack.c.l.b16 %v3296
        %v3363 = vpack.c.b16 %v3332, %v3331
        %v3364 = vpack.c.b16 %v3334, %v3333
        %v3365 = vpack.c.b16 %v3336, %v3335
        %v3366 = vpack.c.b16 %v3338, %v3337
        %v3367 = vpack.c.b16 %v3340, %v3339
        %v3368 = vpack.c.b16 %v3342, %v3341
        %v3369 = vpack.c.b16 %v3344, %v3343
        %v3370 = vpack.c.b16 %v3346, %v3345
        %v3371 = vpack.c.b16 %v3348, %v3347
        %v3372 = vpack.c.b16 %v3350, %v3349
        %v3373 = vpack.c.b16 %v3352, %v3351
        %v3374 = vpack.c.b16 %v3354, %v3353
        %v3375 = vpack.c.b16 %v3356, %v3355
        %v3376 = vpack.c.b16 %v3358, %v3357
        %v3377 = vpack.c.b16 %v3360, %v3359
        %v3378 = vpack.c.b16 %v3362, %v3361
        %v3380 = vsel %vm746, %v3363, 0
        %v3383 = vsel %vm746, %v3364, 0
        %v3386 = vsel %vm746, %v3365, 0
        %v3389 = vsel %vm746, %v3366, 0
        %v3392 = vsel %vm746, %v3367, 0
        %v3395 = vsel %vm746, %v3368, 0
        %v3398 = vsel %vm746, %v3369, 0
        %v3401 = vsel %vm746, %v3370, 0
        %v3404 = vsel %vm746, %v3371, 0
        %v3407 = vsel %vm746, %v3372, 0
        %v3410 = vsel %vm746, %v3373, 0
        %v3413 = vsel %vm746, %v3374, 0
        %v3416 = vsel %vm746, %v3375, 0
        %v3419 = vsel %vm746, %v3376, 0
        %v3422 = vsel %vm746, %v3377, 0
        %v3425 = vsel %vm746, %v3378, 0
        %v3428 = vsel %vm795, %v3298, 0
        %3430 = vmatprep.subr.bf16.mxu0 0
        %3431 = vmatpush1.bf16.msra.mxu0 0
        %3432 = vmatprep.subr.bf16.mxu0 0
        %3433 = vmatpush1.bf16.msra.mxu0 0
        %3434 = vmatprep.subr.bf16.mxu0 0
        %3435 = vmatpush1.bf16.msra.mxu0 0
        %3436 = vmatprep.subr.bf16.mxu0 0
        %3437 = vmatpush1.bf16.msra.mxu0 0
        %3438 = vmatprep.subr.bf16.mxu0 0
        %3439 = vmatpush1.bf16.msra.mxu0 0
        %3440 = vmatprep.subr.bf16.mxu0 0
        %3441 = vmatpush1.bf16.msra.mxu0 0
        %3442 = vmatprep.subr.bf16.mxu0 0
        %3443 = vmatpush1.bf16.msra.mxu0 0
        %3444 = vmatprep.subr.bf16.mxu0 0
        %3445 = vmatpush1.bf16.msra.mxu0 %v3428
        %3446 = vmatprep.subr.bf16.mxu0 0
        %3447 = vmatpush2.bf16.msra.mxu0 0
        %3448 = vmatprep.subr.bf16.mxu0 0
        %3449 = vmatpush2.bf16.msra.mxu0 0
        %3450 = vmatprep.subr.bf16.mxu0 0
        %3451 = vmatpush2.bf16.msra.mxu0 0
        %3452 = vmatprep.subr.bf16.mxu0 0
        %3453 = vmatpush2.bf16.msra.mxu0 0
        %3454 = vmatprep.subr.bf16.mxu0 0
        %3455 = vmatpush2.bf16.msra.mxu0 0
        %3456 = vmatprep.subr.bf16.mxu0 0
        %3457 = vmatpush2.bf16.msra.mxu0 0
        %3458 = vmatprep.subr.bf16.mxu0 0
        %3459 = vmatpush2.bf16.msra.mxu0 0
        %3460 = vmatprep.subr.bf16.mxu0 0
        %3461 = vmatpush2.bf16.msra.mxu0 0
        %3462 = vmatprep.mubr.bf16.mxu0 0
        %3463 = vmatmul.mubr.bf16.gmra.mxu0 %v3380
        %v3464 = vpop.f32.mrf.mxu0
        %v3465 = vadd.f32 0.0, %v3464
        %v3466 = vpop.f32.mrf.mxu0
        %v3467 = vpop.f32.mrf.mxu0
        %v3468 = vadd.f32 0.0, %v3467
        %v3469 = vpop.f32.mrf.mxu0
        %3470 = vmatprep.mubr.bf16.mxu0 0
        %3471 = vmatmul.mubr.bf16.gmra.mxu0 %v3383
        %v3472 = vpop.f32.mrf.mxu0
        %v3473 = vadd.f32 0.0, %v3472
        %v3474 = vpop.f32.mrf.mxu0
        %v3475 = vpop.f32.mrf.mxu0
        %v3476 = vadd.f32 0.0, %v3475
        %v3477 = vpop.f32.mrf.mxu0
        %3478 = vmatprep.mubr.bf16.mxu0 0
        %3479 = vmatmul.mubr.bf16.gmra.mxu0 %v3386
        %v3480 = vpop.f32.mrf.mxu0
        %v3481 = vadd.f32 0.0, %v3480
        %v3482 = vpop.f32.mrf.mxu0
        %v3483 = vpop.f32.mrf.mxu0
        %v3484 = vadd.f32 0.0, %v3483
        %v3485 = vpop.f32.mrf.mxu0
        %3486 = vmatprep.mubr.bf16.mxu0 0
        %3487 = vmatmul.mubr.bf16.gmra.mxu0 %v3389
        %v3488 = vpop.f32.mrf.mxu0
        %v3489 = vadd.f32 0.0, %v3488
        %v3490 = vpop.f32.mrf.mxu0
        %v3491 = vpop.f32.mrf.mxu0
        %v3492 = vadd.f32 0.0, %v3491
        %v3493 = vpop.f32.mrf.mxu0
        %3494 = vmatprep.mubr.bf16.mxu0 0
        %3495 = vmatmul.mubr.bf16.gmra.mxu0 %v3392
        %v3496 = vpop.f32.mrf.mxu0
        %v3497 = vadd.f32 0.0, %v3496
        %v3498 = vpop.f32.mrf.mxu0
        %v3499 = vpop.f32.mrf.mxu0
        %v3500 = vadd.f32 0.0, %v3499
        %v3501 = vpop.f32.mrf.mxu0
        %3502 = vmatprep.mubr.bf16.mxu0 0
        %3503 = vmatmul.mubr.bf16.gmra.mxu0 %v3395
        %v3504 = vpop.f32.mrf.mxu0
        %v3505 = vadd.f32 0.0, %v3504
        %v3506 = vpop.f32.mrf.mxu0
        %v3507 = vpop.f32.mrf.mxu0
        %v3508 = vadd.f32 0.0, %v3507
        %v3509 = vpop.f32.mrf.mxu0
        %3510 = vmatprep.mubr.bf16.mxu0 0
        %3511 = vmatmul.mubr.bf16.gmra.mxu0 %v3398
        %v3512 = vpop.f32.mrf.mxu0
        %v3513 = vadd.f32 0.0, %v3512
        %v3514 = vpop.f32.mrf.mxu0
        %v3515 = vpop.f32.mrf.mxu0
        %v3516 = vadd.f32 0.0, %v3515
        %v3517 = vpop.f32.mrf.mxu0
        %3518 = vmatprep.mubr.bf16.mxu0 0
        %3519 = vmatmul.mubr.bf16.gmra.mxu0 %v3401
        %v3520 = vpop.f32.mrf.mxu0
        %v3521 = vadd.f32 0.0, %v3520
        %v3522 = vpop.f32.mrf.mxu0
        %v3523 = vpop.f32.mrf.mxu0
        %v3524 = vadd.f32 0.0, %v3523
        %v3525 = vpop.f32.mrf.mxu0
        %3526 = vmatprep.mubr.bf16.mxu0 0
        %3527 = vmatmul.mubr.bf16.gmra.mxu0 %v3404
        %v3528 = vpop.f32.mrf.mxu0
        %v3529 = vadd.f32 0.0, %v3528
        %v3530 = vpop.f32.mrf.mxu0
        %v3531 = vpop.f32.mrf.mxu0
        %v3532 = vadd.f32 0.0, %v3531
        %v3533 = vpop.f32.mrf.mxu0
        %3534 = vmatprep.mubr.bf16.mxu0 0
        %3535 = vmatmul.mubr.bf16.gmra.mxu0 %v3407
        %v3536 = vpop.f32.mrf.mxu0
        %v3537 = vadd.f32 0.0, %v3536
        %v3538 = vpop.f32.mrf.mxu0
        %v3539 = vpop.f32.mrf.mxu0
        %v3540 = vadd.f32 0.0, %v3539
        %v3541 = vpop.f32.mrf.mxu0
        %3542 = vmatprep.mubr.bf16.mxu0 0
        %3543 = vmatmul.mubr.bf16.gmra.mxu0 %v3410
        %v3544 = vpop.f32.mrf.mxu0
        %v3545 = vadd.f32 0.0, %v3544
        %v3546 = vpop.f32.mrf.mxu0
        %v3547 = vpop.f32.mrf.mxu0
        %v3548 = vadd.f32 0.0, %v3547
        %v3549 = vpop.f32.mrf.mxu0
        %3550 = vmatprep.mubr.bf16.mxu0 0
        %3551 = vmatmul.mubr.bf16.gmra.mxu0 %v3413
        %v3552 = vpop.f32.mrf.mxu0
        %v3553 = vadd.f32 0.0, %v3552
        %v3554 = vpop.f32.mrf.mxu0
        %v3555 = vpop.f32.mrf.mxu0
        %v3556 = vadd.f32 0.0, %v3555
        %v3557 = vpop.f32.mrf.mxu0
        %3558 = vmatprep.mubr.bf16.mxu0 0
        %3559 = vmatmul.mubr.bf16.gmra.mxu0 %v3416
        %v3560 = vpop.f32.mrf.mxu0
        %v3561 = vadd.f32 0.0, %v3560
        %v3562 = vpop.f32.mrf.mxu0
        %v3563 = vpop.f32.mrf.mxu0
        %v3564 = vadd.f32 0.0, %v3563
        %v3565 = vpop.f32.mrf.mxu0
        %3566 = vmatprep.mubr.bf16.mxu0 0
        %3567 = vmatmul.mubr.bf16.gmra.mxu0 %v3419
        %v3568 = vpop.f32.mrf.mxu0
        %v3569 = vadd.f32 0.0, %v3568
        %v3570 = vpop.f32.mrf.mxu0
        %v3571 = vpop.f32.mrf.mxu0
        %v3572 = vadd.f32 0.0, %v3571
        %v3573 = vpop.f32.mrf.mxu0
        %3574 = vmatprep.mubr.bf16.mxu0 0
        %3575 = vmatmul.mubr.bf16.gmra.mxu0 %v3422
        %v3576 = vpop.f32.mrf.mxu0
        %v3577 = vadd.f32 0.0, %v3576
        %v3578 = vpop.f32.mrf.mxu0
        %v3579 = vpop.f32.mrf.mxu0
        %v3580 = vadd.f32 0.0, %v3579
        %v3581 = vpop.f32.mrf.mxu0
        %3582 = vmatprep.mubr.bf16.mxu0 0
        %3583 = vmatmul.mubr.bf16.gmra.mxu0 %v3425
        %v3584 = vpop.f32.mrf.mxu0
        %v3585 = vadd.f32 0.0, %v3584
        %v3586 = vpop.f32.mrf.mxu0
        %v3587 = vpop.f32.mrf.mxu0
        %v3588 = vadd.f32 0.0, %v3587
        %v3589 = vpop.f32.mrf.mxu0
        %3590 = vdwg.mxu0
        %v3591 = vadd.f32 %v3232, %v3465
        %v3592 = vadd.f32 %v3233, %v3468
        %v3593 = vadd.f32 %v3234, %v3473
        %v3594 = vadd.f32 %v3235, %v3476
        %v3595 = vadd.f32 %v3236, %v3481
        %v3596 = vadd.f32 %v3237, %v3484
        %v3597 = vadd.f32 %v3238, %v3489
        %v3598 = vadd.f32 %v3239, %v3492
        %v3599 = vadd.f32 %v3240, %v3497
        %v3600 = vadd.f32 %v3241, %v3500
        %v3601 = vadd.f32 %v3242, %v3505
        %v3602 = vadd.f32 %v3243, %v3508
        %v3603 = vadd.f32 %v3244, %v3513
        %v3604 = vadd.f32 %v3245, %v3516
        %v3605 = vadd.f32 %v3246, %v3521
        %v3606 = vadd.f32 %v3247, %v3524
        %v3607 = vadd.f32 %v3248, %v3529
        %v3608 = vadd.f32 %v3249, %v3532
        %v3609 = vadd.f32 %v3250, %v3537
        %v3610 = vadd.f32 %v3251, %v3540
        %v3611 = vadd.f32 %v3252, %v3545
        %v3612 = vadd.f32 %v3253, %v3548
        %v3613 = vadd.f32 %v3254, %v3553
        %v3614 = vadd.f32 %v3255, %v3556
        %v3615 = vadd.f32 %v3256, %v3561
        %v3616 = vadd.f32 %v3257, %v3564
        %v3617 = vadd.f32 %v3258, %v3569
        %v3618 = vadd.f32 %v3259, %v3572
        %v3619 = vadd.f32 %v3260, %v3577
        %v3620 = vadd.f32 %v3261, %v3580
        %v3621 = vadd.f32 %v3262, %v3585
        %v3622 = vadd.f32 %v3263, %v3588
        %v3623 = vld [vmem:[%s3264] sm:$0xf]
        %v3624 = vld [vmem:[%s3264 + $0x4] sm:$0xf]
        %v3625 = vld [vmem:[%s3264 + $0x8] sm:$0x1]
        %v3626 = vld [vmem:[%s3264 + $0xc] sm:$0xf]
        %v3627 = vld [vmem:[%s3264 + $0x10] sm:$0xf]
        %v3628 = vld [vmem:[%s3264 + $0x14] sm:$0x1]
        %v3629 = vld [vmem:[%s3264 + $0x18] sm:$0xf]
        %v3630 = vld [vmem:[%s3264 + $0x1c] sm:$0xf]
        %v3631 = vld [vmem:[%s3264 + $0x20] sm:$0x1]
        %v3632 = vld [vmem:[%s3264 + $0x24] sm:$0xf]
        %v3633 = vld [vmem:[%s3264 + $0x28] sm:$0xf]
        %v3634 = vld [vmem:[%s3264 + $0x2c] sm:$0x1]
        %v3635 = vld [vmem:[%s3264 + $0x30] sm:$0xf]
        %v3636 = vld [vmem:[%s3264 + $0x34] sm:$0xf]
        %v3637 = vld [vmem:[%s3264 + $0x38] sm:$0x1]
        %v3638 = vld [vmem:[%s3264 + $0x3c] sm:$0xf]
        %v3639 = vld [vmem:[%s3264 + $0x40] sm:$0xf]
        %v3640 = vld [vmem:[%s3264 + $0x44] sm:$0x1]
        %v3641 = vld [vmem:[%s3264 + $0x48] sm:$0xf]
        %v3642 = vld [vmem:[%s3264 + $0x4c] sm:$0xf]
        %v3643 = vld [vmem:[%s3264 + $0x50] sm:$0x1]
        %v3644 = vld [vmem:[%s3264 + $0x54] sm:$0xf]
        %v3645 = vld [vmem:[%s3264 + $0x58] sm:$0xf]
        %v3646 = vld [vmem:[%s3264 + $0x5c] sm:$0x1]
        %v3647 = vld [vmem:[%s3264 + $0x60] sm:$0xf]
        %v3648 = vld [vmem:[%s3264 + $0x64] sm:$0xf]
        %v3649 = vld [vmem:[%s3264 + $0x68] sm:$0x1]
        %v3650 = vld [vmem:[%s3264 + $0x6c] sm:$0xf]
        %v3651 = vld [vmem:[%s3264 + $0x70] sm:$0xf]
        %v3652 = vld [vmem:[%s3264 + $0x74] sm:$0x1]
        %v3653 = vld [vmem:[%s3264 + $0x78] sm:$0xf]
        %v3654 = vld [vmem:[%s3264 + $0x7c] sm:$0xf]
        %v3655 = vld [vmem:[%s3264 + $0x80] sm:$0x1]
        %v3656 = vld [vmem:[%s3264 + $0x84] sm:$0xf]
        %v3657 = vld [vmem:[%s3264 + $0x88] sm:$0xf]
        %v3658 = vld [vmem:[%s3264 + $0x8c] sm:$0x1]
        %v3659 = vld [vmem:[%s3264 + $0x90] sm:$0xf]
        %v3660 = vld [vmem:[%s3264 + $0x94] sm:$0xf]
        %v3661 = vld [vmem:[%s3264 + $0x98] sm:$0x1]
        %v3662 = vld [vmem:[%s3264 + $0x9c] sm:$0xf]
        %v3663 = vld [vmem:[%s3264 + $0xa0] sm:$0xf]
        %v3664 = vld [vmem:[%s3264 + $0xa4] sm:$0x1]
        %v3665 = vld [vmem:[%s3264 + $0xa8] sm:$0xf]
        %v3666 = vld [vmem:[%s3264 + $0xac] sm:$0xf]
        %v3667 = vld [vmem:[%s3264 + $0xb0] sm:$0x1]
        %v3668 = vld [vmem:[%s3264 + $0xb4] sm:$0xf]
        %v3669 = vld [vmem:[%s3264 + $0xb8] sm:$0xf]
        %v3670 = vld [vmem:[%s3264 + $0xbc] sm:$0x1]
        %v3672 = vshrl.u32 %v3623, 16
        %v3674 = vrot.slane %v3672, 4
        %v3675 = vshll.u32 %v3623, 16
        %v3677 = vrot.slane %v3675, 5
        %v3678 = vor.u32 %v3674, %v3677
        %v3679 = vrot.slane %v3678, 4
        %v3681 = vshll.u32 %v3624, 16
        %v3683 = vrot.slane %v3681, 5
        %v3684 = vsel %vm311, %v3679, %v3683
        %v3685 = vshrl.u32 %v3624, 16
        %v3687 = vrot.slane %v3685, 4
        %v3688 = vor.u32 %v3687, %v3683
        %v3689 = vrot.slane %v3688, 4
        %v3691 = vshll.u32 %v3625, 16
        %v3693 = vrot.slane %v3691, 5
        %v3694 = vsel %vm311, %v3689, %v3693
        %v3696 = vshrl.u32 %v3626, 16
        %v3698 = vrot.slane %v3696, 4
        %v3699 = vshll.u32 %v3626, 16
        %v3701 = vrot.slane %v3699, 5
        %v3702 = vor.u32 %v3698, %v3701
        %v3703 = vrot.slane %v3702, 4
        %v3705 = vshll.u32 %v3627, 16
        %v3707 = vrot.slane %v3705, 5
        %v3708 = vsel %vm311, %v3703, %v3707
        %v3709 = vshrl.u32 %v3627, 16
        %v3711 = vrot.slane %v3709, 4
        %v3712 = vor.u32 %v3711, %v3707
        %v3713 = vrot.slane %v3712, 4
        %v3715 = vshll.u32 %v3628, 16
        %v3717 = vrot.slane %v3715, 5
        %v3718 = vsel %vm311, %v3713, %v3717
        %v3720 = vshrl.u32 %v3629, 16
        %v3722 = vrot.slane %v3720, 4
        %v3723 = vshll.u32 %v3629, 16
        %v3725 = vrot.slane %v3723, 5
        %v3726 = vor.u32 %v3722, %v3725
        %v3727 = vrot.slane %v3726, 4
        %v3729 = vshll.u32 %v3630, 16
        %v3731 = vrot.slane %v3729, 5
        %v3732 = vsel %vm311, %v3727, %v3731
        %v3733 = vshrl.u32 %v3630, 16
        %v3735 = vrot.slane %v3733, 4
        %v3736 = vor.u32 %v3735, %v3731
        %v3737 = vrot.slane %v3736, 4
        %v3739 = vshll.u32 %v3631, 16
        %v3741 = vrot.slane %v3739, 5
        %v3742 = vsel %vm311, %v3737, %v3741
        %v3744 = vshrl.u32 %v3632, 16
        %v3746 = vrot.slane %v3744, 4
        %v3747 = vshll.u32 %v3632, 16
        %v3749 = vrot.slane %v3747, 5
        %v3750 = vor.u32 %v3746, %v3749
        %v3751 = vrot.slane %v3750, 4
        %v3753 = vshll.u32 %v3633, 16
        %v3755 = vrot.slane %v3753, 5
        %v3756 = vsel %vm311, %v3751, %v3755
        %v3757 = vshrl.u32 %v3633, 16
        %v3759 = vrot.slane %v3757, 4
        %v3760 = vor.u32 %v3759, %v3755
        %v3761 = vrot.slane %v3760, 4
        %v3763 = vshll.u32 %v3634, 16
        %v3765 = vrot.slane %v3763, 5
        %v3766 = vsel %vm311, %v3761, %v3765
        %v3768 = vshrl.u32 %v3635, 16
        %v3770 = vrot.slane %v3768, 4
        %v3771 = vshll.u32 %v3635, 16
        %v3773 = vrot.slane %v3771, 5
        %v3774 = vor.u32 %v3770, %v3773
        %v3775 = vrot.slane %v3774, 4
        %v3777 = vshll.u32 %v3636, 16
        %v3779 = vrot.slane %v3777, 5
        %v3780 = vsel %vm311, %v3775, %v3779
        %v3781 = vshrl.u32 %v3636, 16
        %v3783 = vrot.slane %v3781, 4
        %v3784 = vor.u32 %v3783, %v3779
        %v3785 = vrot.slane %v3784, 4
        %v3787 = vshll.u32 %v3637, 16
        %v3789 = vrot.slane %v3787, 5
        %v3790 = vsel %vm311, %v3785, %v3789
        %v3792 = vshrl.u32 %v3638, 16
        %v3794 = vrot.slane %v3792, 4
        %v3795 = vshll.u32 %v3638, 16
        %v3797 = vrot.slane %v3795, 5
        %v3798 = vor.u32 %v3794, %v3797
        %v3799 = vrot.slane %v3798, 4
        %v3801 = vshll.u32 %v3639, 16
        %v3803 = vrot.slane %v3801, 5
        %v3804 = vsel %vm311, %v3799, %v3803
        %v3805 = vshrl.u32 %v3639, 16
        %v3807 = vrot.slane %v3805, 4
        %v3808 = vor.u32 %v3807, %v3803
        %v3809 = vrot.slane %v3808, 4
        %v3811 = vshll.u32 %v3640, 16
        %v3813 = vrot.slane %v3811, 5
        %v3814 = vsel %vm311, %v3809, %v3813
        %v3816 = vshrl.u32 %v3641, 16
        %v3818 = vrot.slane %v3816, 4
        %v3819 = vshll.u32 %v3641, 16
        %v3821 = vrot.slane %v3819, 5
        %v3822 = vor.u32 %v3818, %v3821
        %v3823 = vrot.slane %v3822, 4
        %v3825 = vshll.u32 %v3642, 16
        %v3827 = vrot.slane %v3825, 5
        %v3828 = vsel %vm311, %v3823, %v3827
        %v3829 = vshrl.u32 %v3642, 16
        %v3831 = vrot.slane %v3829, 4
        %v3832 = vor.u32 %v3831, %v3827
        %v3833 = vrot.slane %v3832, 4
        %v3835 = vshll.u32 %v3643, 16
        %v3837 = vrot.slane %v3835, 5
        %v3838 = vsel %vm311, %v3833, %v3837
        %v3840 = vshrl.u32 %v3644, 16
        %v3842 = vrot.slane %v3840, 4
        %v3843 = vshll.u32 %v3644, 16
        %v3845 = vrot.slane %v3843, 5
        %v3846 = vor.u32 %v3842, %v3845
        %v3847 = vrot.slane %v3846, 4
        %v3849 = vshll.u32 %v3645, 16
        %v3851 = vrot.slane %v3849, 5
        %v3852 = vsel %vm311, %v3847, %v3851
        %v3853 = vshrl.u32 %v3645, 16
        %v3855 = vrot.slane %v3853, 4
        %v3856 = vor.u32 %v3855, %v3851
        %v3857 = vrot.slane %v3856, 4
        %v3859 = vshll.u32 %v3646, 16
        %v3861 = vrot.slane %v3859, 5
        %v3862 = vsel %vm311, %v3857, %v3861
        %v3864 = vshrl.u32 %v3647, 16
        %v3866 = vrot.slane %v3864, 4
        %v3867 = vshll.u32 %v3647, 16
        %v3869 = vrot.slane %v3867, 5
        %v3870 = vor.u32 %v3866, %v3869
        %v3871 = vrot.slane %v3870, 4
        %v3873 = vshll.u32 %v3648, 16
        %v3875 = vrot.slane %v3873, 5
        %v3876 = vsel %vm311, %v3871, %v3875
        %v3877 = vshrl.u32 %v3648, 16
        %v3879 = vrot.slane %v3877, 4
        %v3880 = vor.u32 %v3879, %v3875
        %v3881 = vrot.slane %v3880, 4
        %v3883 = vshll.u32 %v3649, 16
        %v3885 = vrot.slane %v3883, 5
        %v3886 = vsel %vm311, %v3881, %v3885
        %v3888 = vshrl.u32 %v3650, 16
        %v3890 = vrot.slane %v3888, 4
        %v3891 = vshll.u32 %v3650, 16
        %v3893 = vrot.slane %v3891, 5
        %v3894 = vor.u32 %v3890, %v3893
        %v3895 = vrot.slane %v3894, 4
        %v3897 = vshll.u32 %v3651, 16
        %v3899 = vrot.slane %v3897, 5
        %v3900 = vsel %vm311, %v3895, %v3899
        %v3901 = vshrl.u32 %v3651, 16
        %v3903 = vrot.slane %v3901, 4
        %v3904 = vor.u32 %v3903, %v3899
        %v3905 = vrot.slane %v3904, 4
        %v3907 = vshll.u32 %v3652, 16
        %v3909 = vrot.slane %v3907, 5
        %v3910 = vsel %vm311, %v3905, %v3909
        %v3912 = vshrl.u32 %v3653, 16
        %v3914 = vrot.slane %v3912, 4
        %v3915 = vshll.u32 %v3653, 16
        %v3917 = vrot.slane %v3915, 5
        %v3918 = vor.u32 %v3914, %v3917
        %v3919 = vrot.slane %v3918, 4
        %v3921 = vshll.u32 %v3654, 16
        %v3923 = vrot.slane %v3921, 5
        %v3924 = vsel %vm311, %v3919, %v3923
        %v3925 = vshrl.u32 %v3654, 16
        %v3927 = vrot.slane %v3925, 4
        %v3928 = vor.u32 %v3927, %v3923
        %v3929 = vrot.slane %v3928, 4
        %v3931 = vshll.u32 %v3655, 16
        %v3933 = vrot.slane %v3931, 5
        %v3934 = vsel %vm311, %v3929, %v3933
        %v3936 = vshrl.u32 %v3656, 16
        %v3938 = vrot.slane %v3936, 4
        %v3939 = vshll.u32 %v3656, 16
        %v3941 = vrot.slane %v3939, 5
        %v3942 = vor.u32 %v3938, %v3941
        %v3943 = vrot.slane %v3942, 4
        %v3945 = vshll.u32 %v3657, 16
        %v3947 = vrot.slane %v3945, 5
        %v3948 = vsel %vm311, %v3943, %v3947
        %v3949 = vshrl.u32 %v3657, 16
        %v3951 = vrot.slane %v3949, 4
        %v3952 = vor.u32 %v3951, %v3947
        %v3953 = vrot.slane %v3952, 4
        %v3955 = vshll.u32 %v3658, 16
        %v3957 = vrot.slane %v3955, 5
        %v3958 = vsel %vm311, %v3953, %v3957
        %v3960 = vshrl.u32 %v3659, 16
        %v3962 = vrot.slane %v3960, 4
        %v3963 = vshll.u32 %v3659, 16
        %v3965 = vrot.slane %v3963, 5
        %v3966 = vor.u32 %v3962, %v3965
        %v3967 = vrot.slane %v3966, 4
        %v3969 = vshll.u32 %v3660, 16
        %v3971 = vrot.slane %v3969, 5
        %v3972 = vsel %vm311, %v3967, %v3971
        %v3973 = vshrl.u32 %v3660, 16
        %v3975 = vrot.slane %v3973, 4
        %v3976 = vor.u32 %v3975, %v3971
        %v3977 = vrot.slane %v3976, 4
        %v3979 = vshll.u32 %v3661, 16
        %v3981 = vrot.slane %v3979, 5
        %v3982 = vsel %vm311, %v3977, %v3981
        %v3984 = vshrl.u32 %v3662, 16
        %v3986 = vrot.slane %v3984, 4
        %v3987 = vshll.u32 %v3662, 16
        %v3989 = vrot.slane %v3987, 5
        %v3990 = vor.u32 %v3986, %v3989
        %v3991 = vrot.slane %v3990, 4
        %v3993 = vshll.u32 %v3663, 16
        %v3995 = vrot.slane %v3993, 5
        %v3996 = vsel %vm311, %v3991, %v3995
        %v3997 = vshrl.u32 %v3663, 16
        %v3999 = vrot.slane %v3997, 4
        %v4000 = vor.u32 %v3999, %v3995
        %v4001 = vrot.slane %v4000, 4
        %v4003 = vshll.u32 %v3664, 16
        %v4005 = vrot.slane %v4003, 5
        %v4006 = vsel %vm311, %v4001, %v4005
        %v4008 = vshrl.u32 %v3665, 16
        %v4010 = vrot.slane %v4008, 4
        %v4011 = vshll.u32 %v3665, 16
        %v4013 = vrot.slane %v4011, 5
        %v4014 = vor.u32 %v4010, %v4013
        %v4015 = vrot.slane %v4014, 4
        %v4017 = vshll.u32 %v3666, 16
        %v4019 = vrot.slane %v4017, 5
        %v4020 = vsel %vm311, %v4015, %v4019
        %v4021 = vshrl.u32 %v3666, 16
        %v4023 = vrot.slane %v4021, 4
        %v4024 = vor.u32 %v4023, %v4019
        %v4025 = vrot.slane %v4024, 4
        %v4027 = vshll.u32 %v3667, 16
        %v4029 = vrot.slane %v4027, 5
        %v4030 = vsel %vm311, %v4025, %v4029
        %v4032 = vshrl.u32 %v3668, 16
        %v4034 = vrot.slane %v4032, 4
        %v4035 = vshll.u32 %v3668, 16
        %v4037 = vrot.slane %v4035, 5
        %v4038 = vor.u32 %v4034, %v4037
        %v4039 = vrot.slane %v4038, 4
        %v4041 = vshll.u32 %v3669, 16
        %v4043 = vrot.slane %v4041, 5
        %v4044 = vsel %vm311, %v4039, %v4043
        %v4045 = vshrl.u32 %v3669, 16
        %v4047 = vrot.slane %v4045, 4
        %v4048 = vor.u32 %v4047, %v4043
        %v4049 = vrot.slane %v4048, 4
        %v4051 = vshll.u32 %v3670, 16
        %v4053 = vrot.slane %v4051, 5
        %v4054 = vsel %vm311, %v4049, %v4053
        %s4055 = scalar_lea.vmem %s1, 14
        %v4056 = vld [vmem:[%s4055] sm:$0x3]
        %v4057 = vunpack.c.l.b16 %v3684
        %v4058 = vunpack.c.l.b16 %v3694
        %v4059 = vunpack.c.l.b16 %v3708
        %v4060 = vunpack.c.l.b16 %v3718
        %v4061 = vunpack.c.l.b16 %v3732
        %v4062 = vunpack.c.l.b16 %v3742
        %v4063 = vunpack.c.l.b16 %v3756
        %v4064 = vunpack.c.l.b16 %v3766
        %v4065 = vunpack.c.l.b16 %v3780
        %v4066 = vunpack.c.l.b16 %v3790
        %v4067 = vunpack.c.l.b16 %v3804
        %v4068 = vunpack.c.l.b16 %v3814
        %v4069 = vunpack.c.l.b16 %v3828
        %v4070 = vunpack.c.l.b16 %v3838
        %v4071 = vunpack.c.l.b16 %v3852
        %v4072 = vunpack.c.l.b16 %v3862
        %v4073 = vunpack.c.l.b16 %v3876
        %v4074 = vunpack.c.l.b16 %v3886
        %v4075 = vunpack.c.l.b16 %v3900
        %v4076 = vunpack.c.l.b16 %v3910
        %v4077 = vunpack.c.l.b16 %v3924
        %v4078 = vunpack.c.l.b16 %v3934
        %v4079 = vunpack.c.l.b16 %v3948
        %v4080 = vunpack.c.l.b16 %v3958
        %v4081 = vunpack.c.l.b16 %v3972
        %v4082 = vunpack.c.l.b16 %v3982
        %v4083 = vunpack.c.l.b16 %v3996
        %v4084 = vunpack.c.l.b16 %v4006
        %v4085 = vunpack.c.l.b16 %v4020
        %v4086 = vunpack.c.l.b16 %v4030
        %v4087 = vunpack.c.l.b16 %v4044
        %v4088 = vunpack.c.l.b16 %v4054
        %v4089 = vpack.c.b16 %v4058, %v4057
        %v4090 = vpack.c.b16 %v4060, %v4059
        %v4091 = vpack.c.b16 %v4062, %v4061
        %v4092 = vpack.c.b16 %v4064, %v4063
        %v4093 = vpack.c.b16 %v4066, %v4065
        %v4094 = vpack.c.b16 %v4068, %v4067
        %v4095 = vpack.c.b16 %v4070, %v4069
        %v4096 = vpack.c.b16 %v4072, %v4071
        %v4097 = vpack.c.b16 %v4074, %v4073
        %v4098 = vpack.c.b16 %v4076, %v4075
        %v4099 = vpack.c.b16 %v4078, %v4077
        %v4100 = vpack.c.b16 %v4080, %v4079
        %v4101 = vpack.c.b16 %v4082, %v4081
        %v4102 = vpack.c.b16 %v4084, %v4083
        %v4103 = vpack.c.b16 %v4086, %v4085
        %v4104 = vpack.c.b16 %v4088, %v4087
        %v4106 = vsel %vm746, %v4089, 0
        %v4109 = vsel %vm746, %v4090, 0
        %v4112 = vsel %vm746, %v4091, 0
        %v4115 = vsel %vm746, %v4092, 0
        %v4118 = vsel %vm746, %v4093, 0
        %v4121 = vsel %vm746, %v4094, 0
        %v4124 = vsel %vm746, %v4095, 0
        %v4127 = vsel %vm746, %v4096, 0
        %v4130 = vsel %vm746, %v4097, 0
        %v4133 = vsel %vm746, %v4098, 0
        %v4136 = vsel %vm746, %v4099, 0
        %v4139 = vsel %vm746, %v4100, 0
        %v4142 = vsel %vm746, %v4101, 0
        %v4145 = vsel %vm746, %v4102, 0
        %v4148 = vsel %vm746, %v4103, 0
        %v4151 = vsel %vm746, %v4104, 0
        %v4154 = vsel %vm795, %v4056, 0
        %4156 = vmatprep.subr.bf16.mxu0 0
        %4157 = vmatpush1.bf16.msra.mxu0 0
        %4158 = vmatprep.subr.bf16.mxu0 0
        %4159 = vmatpush1.bf16.msra.mxu0 0
        %4160 = vmatprep.subr.bf16.mxu0 0
        %4161 = vmatpush1.bf16.msra.mxu0 0
        %4162 = vmatprep.subr.bf16.mxu0 0
        %4163 = vmatpush1.bf16.msra.mxu0 0
        %4164 = vmatprep.subr.bf16.mxu0 0
        %4165 = vmatpush1.bf16.msra.mxu0 0
        %4166 = vmatprep.subr.bf16.mxu0 0
        %4167 = vmatpush1.bf16.msra.mxu0 0
        %4168 = vmatprep.subr.bf16.mxu0 0
        %4169 = vmatpush1.bf16.msra.mxu0 0
        %4170 = vmatprep.subr.bf16.mxu0 0
        %4171 = vmatpush1.bf16.msra.mxu0 %v4154
        %4172 = vmatprep.subr.bf16.mxu0 0
        %4173 = vmatpush2.bf16.msra.mxu0 0
        %4174 = vmatprep.subr.bf16.mxu0 0
        %4175 = vmatpush2.bf16.msra.mxu0 0
        %4176 = vmatprep.subr.bf16.mxu0 0
        %4177 = vmatpush2.bf16.msra.mxu0 0
        %4178 = vmatprep.subr.bf16.mxu0 0
        %4179 = vmatpush2.bf16.msra.mxu0 0
        %4180 = vmatprep.subr.bf16.mxu0 0
        %4181 = vmatpush2.bf16.msra.mxu0 0
        %4182 = vmatprep.subr.bf16.mxu0 0
        %4183 = vmatpush2.bf16.msra.mxu0 0
        %4184 = vmatprep.subr.bf16.mxu0 0
        %4185 = vmatpush2.bf16.msra.mxu0 0
        %4186 = vmatprep.subr.bf16.mxu0 0
        %4187 = vmatpush2.bf16.msra.mxu0 0
        %4188 = vmatprep.mubr.bf16.mxu0 0
        %4189 = vmatmul.mubr.bf16.gmra.mxu0 %v4106
        %v4190 = vpop.f32.mrf.mxu0
        %v4191 = vadd.f32 0.0, %v4190
        %v4192 = vpop.f32.mrf.mxu0
        %v4193 = vpop.f32.mrf.mxu0
        %v4194 = vadd.f32 0.0, %v4193
        %v4195 = vpop.f32.mrf.mxu0
        %4196 = vmatprep.mubr.bf16.mxu0 0
        %4197 = vmatmul.mubr.bf16.gmra.mxu0 %v4109
        %v4198 = vpop.f32.mrf.mxu0
        %v4199 = vadd.f32 0.0, %v4198
        %v4200 = vpop.f32.mrf.mxu0
        %v4201 = vpop.f32.mrf.mxu0
        %v4202 = vadd.f32 0.0, %v4201
        %v4203 = vpop.f32.mrf.mxu0
        %4204 = vmatprep.mubr.bf16.mxu0 0
        %4205 = vmatmul.mubr.bf16.gmra.mxu0 %v4112
        %v4206 = vpop.f32.mrf.mxu0
        %v4207 = vadd.f32 0.0, %v4206
        %v4208 = vpop.f32.mrf.mxu0
        %v4209 = vpop.f32.mrf.mxu0
        %v4210 = vadd.f32 0.0, %v4209
        %v4211 = vpop.f32.mrf.mxu0
        %4212 = vmatprep.mubr.bf16.mxu0 0
        %4213 = vmatmul.mubr.bf16.gmra.mxu0 %v4115
        %v4214 = vpop.f32.mrf.mxu0
        %v4215 = vadd.f32 0.0, %v4214
        %v4216 = vpop.f32.mrf.mxu0
        %v4217 = vpop.f32.mrf.mxu0
        %v4218 = vadd.f32 0.0, %v4217
        %v4219 = vpop.f32.mrf.mxu0
        %4220 = vmatprep.mubr.bf16.mxu0 0
        %4221 = vmatmul.mubr.bf16.gmra.mxu0 %v4118
        %v4222 = vpop.f32.mrf.mxu0
        %v4223 = vadd.f32 0.0, %v4222
        %v4224 = vpop.f32.mrf.mxu0
        %v4225 = vpop.f32.mrf.mxu0
        %v4226 = vadd.f32 0.0, %v4225
        %v4227 = vpop.f32.mrf.mxu0
        %4228 = vmatprep.mubr.bf16.mxu0 0
        %4229 = vmatmul.mubr.bf16.gmra.mxu0 %v4121
        %v4230 = vpop.f32.mrf.mxu0
        %v4231 = vadd.f32 0.0, %v4230
        %v4232 = vpop.f32.mrf.mxu0
        %v4233 = vpop.f32.mrf.mxu0
        %v4234 = vadd.f32 0.0, %v4233
        %v4235 = vpop.f32.mrf.mxu0
        %4236 = vmatprep.mubr.bf16.mxu0 0
        %4237 = vmatmul.mubr.bf16.gmra.mxu0 %v4124
        %v4238 = vpop.f32.mrf.mxu0
        %v4239 = vadd.f32 0.0, %v4238
        %v4240 = vpop.f32.mrf.mxu0
        %v4241 = vpop.f32.mrf.mxu0
        %v4242 = vadd.f32 0.0, %v4241
        %v4243 = vpop.f32.mrf.mxu0
        %4244 = vmatprep.mubr.bf16.mxu0 0
        %4245 = vmatmul.mubr.bf16.gmra.mxu0 %v4127
        %v4246 = vpop.f32.mrf.mxu0
        %v4247 = vadd.f32 0.0, %v4246
        %v4248 = vpop.f32.mrf.mxu0
        %v4249 = vpop.f32.mrf.mxu0
        %v4250 = vadd.f32 0.0, %v4249
        %v4251 = vpop.f32.mrf.mxu0
        %4252 = vmatprep.mubr.bf16.mxu0 0
        %4253 = vmatmul.mubr.bf16.gmra.mxu0 %v4130
        %v4254 = vpop.f32.mrf.mxu0
        %v4255 = vadd.f32 0.0, %v4254
        %v4256 = vpop.f32.mrf.mxu0
        %v4257 = vpop.f32.mrf.mxu0
        %v4258 = vadd.f32 0.0, %v4257
        %v4259 = vpop.f32.mrf.mxu0
        %4260 = vmatprep.mubr.bf16.mxu0 0
        %4261 = vmatmul.mubr.bf16.gmra.mxu0 %v4133
        %v4262 = vpop.f32.mrf.mxu0
        %v4263 = vadd.f32 0.0, %v4262
        %v4264 = vpop.f32.mrf.mxu0
        %v4265 = vpop.f32.mrf.mxu0
        %v4266 = vadd.f32 0.0, %v4265
        %v4267 = vpop.f32.mrf.mxu0
        %4268 = vmatprep.mubr.bf16.mxu0 0
        %4269 = vmatmul.mubr.bf16.gmra.mxu0 %v4136
        %v4270 = vpop.f32.mrf.mxu0
        %v4271 = vadd.f32 0.0, %v4270
        %v4272 = vpop.f32.mrf.mxu0
        %v4273 = vpop.f32.mrf.mxu0
        %v4274 = vadd.f32 0.0, %v4273
        %v4275 = vpop.f32.mrf.mxu0
        %4276 = vmatprep.mubr.bf16.mxu0 0
        %4277 = vmatmul.mubr.bf16.gmra.mxu0 %v4139
        %v4278 = vpop.f32.mrf.mxu0
        %v4279 = vadd.f32 0.0, %v4278
        %v4280 = vpop.f32.mrf.mxu0
        %v4281 = vpop.f32.mrf.mxu0
        %v4282 = vadd.f32 0.0, %v4281
        %v4283 = vpop.f32.mrf.mxu0
        %4284 = vmatprep.mubr.bf16.mxu0 0
        %4285 = vmatmul.mubr.bf16.gmra.mxu0 %v4142
        %v4286 = vpop.f32.mrf.mxu0
        %v4287 = vadd.f32 0.0, %v4286
        %v4288 = vpop.f32.mrf.mxu0
        %v4289 = vpop.f32.mrf.mxu0
        %v4290 = vadd.f32 0.0, %v4289
        %v4291 = vpop.f32.mrf.mxu0
        %4292 = vmatprep.mubr.bf16.mxu0 0
        %4293 = vmatmul.mubr.bf16.gmra.mxu0 %v4145
        %v4294 = vpop.f32.mrf.mxu0
        %v4295 = vadd.f32 0.0, %v4294
        %v4296 = vpop.f32.mrf.mxu0
        %v4297 = vpop.f32.mrf.mxu0
        %v4298 = vadd.f32 0.0, %v4297
        %v4299 = vpop.f32.mrf.mxu0
        %4300 = vmatprep.mubr.bf16.mxu0 0
        %4301 = vmatmul.mubr.bf16.gmra.mxu0 %v4148
        %v4302 = vpop.f32.mrf.mxu0
        %v4303 = vadd.f32 0.0, %v4302
        %v4304 = vpop.f32.mrf.mxu0
        %v4305 = vpop.f32.mrf.mxu0
        %v4306 = vadd.f32 0.0, %v4305
        %v4307 = vpop.f32.mrf.mxu0
        %4308 = vmatprep.mubr.bf16.mxu0 0
        %4309 = vmatmul.mubr.bf16.gmra.mxu0 %v4151
        %v4310 = vpop.f32.mrf.mxu0
        %v4311 = vadd.f32 0.0, %v4310
        %v4312 = vpop.f32.mrf.mxu0
        %v4313 = vpop.f32.mrf.mxu0
        %v4314 = vadd.f32 0.0, %v4313
        %v4315 = vpop.f32.mrf.mxu0
        %4316 = vdwg.mxu0
        %v4317 = vadd.f32 %v3591, %v4191
        %v4318 = vadd.f32 %v3592, %v4194
        %v4319 = vadd.f32 %v3593, %v4199
        %v4320 = vadd.f32 %v3594, %v4202
        %v4321 = vadd.f32 %v3595, %v4207
        %v4322 = vadd.f32 %v3596, %v4210
        %v4323 = vadd.f32 %v3597, %v4215
        %v4324 = vadd.f32 %v3598, %v4218
        %v4325 = vadd.f32 %v3599, %v4223
        %v4326 = vadd.f32 %v3600, %v4226
        %v4327 = vadd.f32 %v3601, %v4231
        %v4328 = vadd.f32 %v3602, %v4234
        %v4329 = vadd.f32 %v3603, %v4239
        %v4330 = vadd.f32 %v3604, %v4242
        %v4331 = vadd.f32 %v3605, %v4247
        %v4332 = vadd.f32 %v3606, %v4250
        %v4333 = vadd.f32 %v3607, %v4255
        %v4334 = vadd.f32 %v3608, %v4258
        %v4335 = vadd.f32 %v3609, %v4263
        %v4336 = vadd.f32 %v3610, %v4266
        %v4337 = vadd.f32 %v3611, %v4271
        %v4338 = vadd.f32 %v3612, %v4274
        %v4339 = vadd.f32 %v3613, %v4279
        %v4340 = vadd.f32 %v3614, %v4282
        %v4341 = vadd.f32 %v3615, %v4287
        %v4342 = vadd.f32 %v3616, %v4290
        %v4343 = vadd.f32 %v3617, %v4295
        %v4344 = vadd.f32 %v3618, %v4298
        %v4345 = vadd.f32 %v3619, %v4303
        %v4346 = vadd.f32 %v3620, %v4306
        %v4347 = vadd.f32 %v3621, %v4311
        %v4348 = vadd.f32 %v3622, %v4314
        %v4349 = vld [vmem:[%s3264] sm:$0xe]
        %v4350 = vld [vmem:[%s3264 + $0xc] sm:$0xe]
        %v4351 = vld [vmem:[%s3264 + $0x18] sm:$0xe]
        %v4352 = vld [vmem:[%s3264 + $0x24] sm:$0xe]
        %v4353 = vld [vmem:[%s3264 + $0x30] sm:$0xe]
        %v4354 = vld [vmem:[%s3264 + $0x3c] sm:$0xe]
        %v4355 = vld [vmem:[%s3264 + $0x48] sm:$0xe]
        %v4356 = vld [vmem:[%s3264 + $0x54] sm:$0xe]
        %v4357 = vld [vmem:[%s3264 + $0x60] sm:$0xe]
        %v4358 = vld [vmem:[%s3264 + $0x6c] sm:$0xe]
        %v4359 = vld [vmem:[%s3264 + $0x78] sm:$0xe]
        %v4360 = vld [vmem:[%s3264 + $0x84] sm:$0xe]
        %v4361 = vld [vmem:[%s3264 + $0x90] sm:$0xe]
        %v4362 = vld [vmem:[%s3264 + $0x9c] sm:$0xe]
        %v4363 = vld [vmem:[%s3264 + $0xa8] sm:$0xe]
        %v4364 = vld [vmem:[%s3264 + $0xb4] sm:$0xe]
        %v4413 = vrot.slane %v4349, 5
        %v4414 = vrot.slane %v4413, 4
        %v4415 = vrot.slane %v3624, 5
        %v4416 = vsel %vm1302, %v4414, %v4415
        %v4417 = vrot.slane %v4415, 4
        %v4418 = vrot.slane %v3625, 5
        %v4419 = vsel %vm1302, %v4417, %v4418
        %v4420 = vrot.slane %v4350, 5
        %v4421 = vrot.slane %v4420, 4
        %v4422 = vrot.slane %v3627, 5
        %v4423 = vsel %vm1302, %v4421, %v4422
        %v4424 = vrot.slane %v4422, 4
        %v4425 = vrot.slane %v3628, 5
        %v4426 = vsel %vm1302, %v4424, %v4425
        %v4427 = vrot.slane %v4351, 5
        %v4428 = vrot.slane %v4427, 4
        %v4429 = vrot.slane %v3630, 5
        %v4430 = vsel %vm1302, %v4428, %v4429
        %v4431 = vrot.slane %v4429, 4
        %v4432 = vrot.slane %v3631, 5
        %v4433 = vsel %vm1302, %v4431, %v4432
        %v4434 = vrot.slane %v4352, 5
        %v4435 = vrot.slane %v4434, 4
        %v4436 = vrot.slane %v3633, 5
        %v4437 = vsel %vm1302, %v4435, %v4436
        %v4438 = vrot.slane %v4436, 4
        %v4439 = vrot.slane %v3634, 5
        %v4440 = vsel %vm1302, %v4438, %v4439
        %v4441 = vrot.slane %v4353, 5
        %v4442 = vrot.slane %v4441, 4
        %v4443 = vrot.slane %v3636, 5
        %v4444 = vsel %vm1302, %v4442, %v4443
        %v4445 = vrot.slane %v4443, 4
        %v4446 = vrot.slane %v3637, 5
        %v4447 = vsel %vm1302, %v4445, %v4446
        %v4448 = vrot.slane %v4354, 5
        %v4449 = vrot.slane %v4448, 4
        %v4450 = vrot.slane %v3639, 5
        %v4451 = vsel %vm1302, %v4449, %v4450
        %v4452 = vrot.slane %v4450, 4
        %v4453 = vrot.slane %v3640, 5
        %v4454 = vsel %vm1302, %v4452, %v4453
        %v4455 = vrot.slane %v4355, 5
        %v4456 = vrot.slane %v4455, 4
        %v4457 = vrot.slane %v3642, 5
        %v4458 = vsel %vm1302, %v4456, %v4457
        %v4459 = vrot.slane %v4457, 4
        %v4460 = vrot.slane %v3643, 5
        %v4461 = vsel %vm1302, %v4459, %v4460
        %v4462 = vrot.slane %v4356, 5
        %v4463 = vrot.slane %v4462, 4
        %v4464 = vrot.slane %v3645, 5
        %v4465 = vsel %vm1302, %v4463, %v4464
        %v4466 = vrot.slane %v4464, 4
        %v4467 = vrot.slane %v3646, 5
        %v4468 = vsel %vm1302, %v4466, %v4467
        %v4469 = vrot.slane %v4357, 5
        %v4470 = vrot.slane %v4469, 4
        %v4471 = vrot.slane %v3648, 5
        %v4472 = vsel %vm1302, %v4470, %v4471
        %v4473 = vrot.slane %v4471, 4
        %v4474 = vrot.slane %v3649, 5
        %v4475 = vsel %vm1302, %v4473, %v4474
        %v4476 = vrot.slane %v4358, 5
        %v4477 = vrot.slane %v4476, 4
        %v4478 = vrot.slane %v3651, 5
        %v4479 = vsel %vm1302, %v4477, %v4478
        %v4480 = vrot.slane %v4478, 4
        %v4481 = vrot.slane %v3652, 5
        %v4482 = vsel %vm1302, %v4480, %v4481
        %v4483 = vrot.slane %v4359, 5
        %v4484 = vrot.slane %v4483, 4
        %v4485 = vrot.slane %v3654, 5
        %v4486 = vsel %vm1302, %v4484, %v4485
        %v4487 = vrot.slane %v4485, 4
        %v4488 = vrot.slane %v3655, 5
        %v4489 = vsel %vm1302, %v4487, %v4488
        %v4490 = vrot.slane %v4360, 5
        %v4491 = vrot.slane %v4490, 4
        %v4492 = vrot.slane %v3657, 5
        %v4493 = vsel %vm1302, %v4491, %v4492
        %v4494 = vrot.slane %v4492, 4
        %v4495 = vrot.slane %v3658, 5
        %v4496 = vsel %vm1302, %v4494, %v4495
        %v4497 = vrot.slane %v4361, 5
        %v4498 = vrot.slane %v4497, 4
        %v4499 = vrot.slane %v3660, 5
        %v4500 = vsel %vm1302, %v4498, %v4499
        %v4501 = vrot.slane %v4499, 4
        %v4502 = vrot.slane %v3661, 5
        %v4503 = vsel %vm1302, %v4501, %v4502
        %v4504 = vrot.slane %v4362, 5
        %v4505 = vrot.slane %v4504, 4
        %v4506 = vrot.slane %v3663, 5
        %v4507 = vsel %vm1302, %v4505, %v4506
        %v4508 = vrot.slane %v4506, 4
        %v4509 = vrot.slane %v3664, 5
        %v4510 = vsel %vm1302, %v4508, %v4509
        %v4511 = vrot.slane %v4363, 5
        %v4512 = vrot.slane %v4511, 4
        %v4513 = vrot.slane %v3666, 5
        %v4514 = vsel %vm1302, %v4512, %v4513
        %v4515 = vrot.slane %v4513, 4
        %v4516 = vrot.slane %v3667, 5
        %v4517 = vsel %vm1302, %v4515, %v4516
        %v4518 = vrot.slane %v4364, 5
        %v4519 = vrot.slane %v4518, 4
        %v4520 = vrot.slane %v3669, 5
        %v4521 = vsel %vm1302, %v4519, %v4520
        %v4522 = vrot.slane %v4520, 4
        %v4523 = vrot.slane %v3670, 5
        %v4524 = vsel %vm1302, %v4522, %v4523
        %s4525 = scalar_lea.vmem %s1, 16
        %v4526 = vld [vmem:[%s4525] sm:$0x3]
        %v4527 = vunpack.c.l.b16 %v4416
        %v4528 = vunpack.c.l.b16 %v4419
        %v4529 = vunpack.c.l.b16 %v4423
        %v4530 = vunpack.c.l.b16 %v4426
        %v4531 = vunpack.c.l.b16 %v4430
        %v4532 = vunpack.c.l.b16 %v4433
        %v4533 = vunpack.c.l.b16 %v4437
        %v4534 = vunpack.c.l.b16 %v4440
        %v4535 = vunpack.c.l.b16 %v4444
        %v4536 = vunpack.c.l.b16 %v4447
        %v4537 = vunpack.c.l.b16 %v4451
        %v4538 = vunpack.c.l.b16 %v4454
        %v4539 = vunpack.c.l.b16 %v4458
        %v4540 = vunpack.c.l.b16 %v4461
        %v4541 = vunpack.c.l.b16 %v4465
        %v4542 = vunpack.c.l.b16 %v4468
        %v4543 = vunpack.c.l.b16 %v4472
        %v4544 = vunpack.c.l.b16 %v4475
        %v4545 = vunpack.c.l.b16 %v4479
        %v4546 = vunpack.c.l.b16 %v4482
        %v4547 = vunpack.c.l.b16 %v4486
        %v4548 = vunpack.c.l.b16 %v4489
        %v4549 = vunpack.c.l.b16 %v4493
        %v4550 = vunpack.c.l.b16 %v4496
        %v4551 = vunpack.c.l.b16 %v4500
        %v4552 = vunpack.c.l.b16 %v4503
        %v4553 = vunpack.c.l.b16 %v4507
        %v4554 = vunpack.c.l.b16 %v4510
        %v4555 = vunpack.c.l.b16 %v4514
        %v4556 = vunpack.c.l.b16 %v4517
        %v4557 = vunpack.c.l.b16 %v4521
        %v4558 = vunpack.c.l.b16 %v4524
        %v4559 = vpack.c.b16 %v4528, %v4527
        %v4560 = vpack.c.b16 %v4530, %v4529
        %v4561 = vpack.c.b16 %v4532, %v4531
        %v4562 = vpack.c.b16 %v4534, %v4533
        %v4563 = vpack.c.b16 %v4536, %v4535
        %v4564 = vpack.c.b16 %v4538, %v4537
        %v4565 = vpack.c.b16 %v4540, %v4539
        %v4566 = vpack.c.b16 %v4542, %v4541
        %v4567 = vpack.c.b16 %v4544, %v4543
        %v4568 = vpack.c.b16 %v4546, %v4545
        %v4569 = vpack.c.b16 %v4548, %v4547
        %v4570 = vpack.c.b16 %v4550, %v4549
        %v4571 = vpack.c.b16 %v4552, %v4551
        %v4572 = vpack.c.b16 %v4554, %v4553
        %v4573 = vpack.c.b16 %v4556, %v4555
        %v4574 = vpack.c.b16 %v4558, %v4557
        %v4576 = vsel %vm746, %v4559, 0
        %v4579 = vsel %vm746, %v4560, 0
        %v4582 = vsel %vm746, %v4561, 0
        %v4585 = vsel %vm746, %v4562, 0
        %v4588 = vsel %vm746, %v4563, 0
        %v4591 = vsel %vm746, %v4564, 0
        %v4594 = vsel %vm746, %v4565, 0
        %v4597 = vsel %vm746, %v4566, 0
        %v4600 = vsel %vm746, %v4567, 0
        %v4603 = vsel %vm746, %v4568, 0
        %v4606 = vsel %vm746, %v4569, 0
        %v4609 = vsel %vm746, %v4570, 0
        %v4612 = vsel %vm746, %v4571, 0
        %v4615 = vsel %vm746, %v4572, 0
        %v4618 = vsel %vm746, %v4573, 0
        %v4621 = vsel %vm746, %v4574, 0
        %v4624 = vsel %vm795, %v4526, 0
        %4626 = vmatprep.subr.bf16.mxu0 0
        %4627 = vmatpush1.bf16.msra.mxu0 0
        %4628 = vmatprep.subr.bf16.mxu0 0
        %4629 = vmatpush1.bf16.msra.mxu0 0
        %4630 = vmatprep.subr.bf16.mxu0 0
        %4631 = vmatpush1.bf16.msra.mxu0 0
        %4632 = vmatprep.subr.bf16.mxu0 0
        %4633 = vmatpush1.bf16.msra.mxu0 0
        %4634 = vmatprep.subr.bf16.mxu0 0
        %4635 = vmatpush1.bf16.msra.mxu0 0
        %4636 = vmatprep.subr.bf16.mxu0 0
        %4637 = vmatpush1.bf16.msra.mxu0 0
        %4638 = vmatprep.subr.bf16.mxu0 0
        %4639 = vmatpush1.bf16.msra.mxu0 0
        %4640 = vmatprep.subr.bf16.mxu0 0
        %4641 = vmatpush1.bf16.msra.mxu0 %v4624
        %4642 = vmatprep.subr.bf16.mxu0 0
        %4643 = vmatpush2.bf16.msra.mxu0 0
        %4644 = vmatprep.subr.bf16.mxu0 0
        %4645 = vmatpush2.bf16.msra.mxu0 0
        %4646 = vmatprep.subr.bf16.mxu0 0
        %4647 = vmatpush2.bf16.msra.mxu0 0
        %4648 = vmatprep.subr.bf16.mxu0 0
        %4649 = vmatpush2.bf16.msra.mxu0 0
        %4650 = vmatprep.subr.bf16.mxu0 0
        %4651 = vmatpush2.bf16.msra.mxu0 0
        %4652 = vmatprep.subr.bf16.mxu0 0
        %4653 = vmatpush2.bf16.msra.mxu0 0
        %4654 = vmatprep.subr.bf16.mxu0 0
        %4655 = vmatpush2.bf16.msra.mxu0 0
        %4656 = vmatprep.subr.bf16.mxu0 0
        %4657 = vmatpush2.bf16.msra.mxu0 0
        %4658 = vmatprep.mubr.bf16.mxu0 0
        %4659 = vmatmul.mubr.bf16.gmra.mxu0 %v4576
        %v4660 = vpop.f32.mrf.mxu0
        %v4661 = vadd.f32 0.0, %v4660
        %v4662 = vpop.f32.mrf.mxu0
        %v4663 = vpop.f32.mrf.mxu0
        %v4664 = vadd.f32 0.0, %v4663
        %v4665 = vpop.f32.mrf.mxu0
        %4666 = vmatprep.mubr.bf16.mxu0 0
        %4667 = vmatmul.mubr.bf16.gmra.mxu0 %v4579
        %v4668 = vpop.f32.mrf.mxu0
        %v4669 = vadd.f32 0.0, %v4668
        %v4670 = vpop.f32.mrf.mxu0
        %v4671 = vpop.f32.mrf.mxu0
        %v4672 = vadd.f32 0.0, %v4671
        %v4673 = vpop.f32.mrf.mxu0
        %4674 = vmatprep.mubr.bf16.mxu0 0
        %4675 = vmatmul.mubr.bf16.gmra.mxu0 %v4582
        %v4676 = vpop.f32.mrf.mxu0
        %v4677 = vadd.f32 0.0, %v4676
        %v4678 = vpop.f32.mrf.mxu0
        %v4679 = vpop.f32.mrf.mxu0
        %v4680 = vadd.f32 0.0, %v4679
        %v4681 = vpop.f32.mrf.mxu0
        %4682 = vmatprep.mubr.bf16.mxu0 0
        %4683 = vmatmul.mubr.bf16.gmra.mxu0 %v4585
        %v4684 = vpop.f32.mrf.mxu0
        %v4685 = vadd.f32 0.0, %v4684
        %v4686 = vpop.f32.mrf.mxu0
        %v4687 = vpop.f32.mrf.mxu0
        %v4688 = vadd.f32 0.0, %v4687
        %v4689 = vpop.f32.mrf.mxu0
        %4690 = vmatprep.mubr.bf16.mxu0 0
        %4691 = vmatmul.mubr.bf16.gmra.mxu0 %v4588
        %v4692 = vpop.f32.mrf.mxu0
        %v4693 = vadd.f32 0.0, %v4692
        %v4694 = vpop.f32.mrf.mxu0
        %v4695 = vpop.f32.mrf.mxu0
        %v4696 = vadd.f32 0.0, %v4695
        %v4697 = vpop.f32.mrf.mxu0
        %4698 = vmatprep.mubr.bf16.mxu0 0
        %4699 = vmatmul.mubr.bf16.gmra.mxu0 %v4591
        %v4700 = vpop.f32.mrf.mxu0
        %v4701 = vadd.f32 0.0, %v4700
        %v4702 = vpop.f32.mrf.mxu0
        %v4703 = vpop.f32.mrf.mxu0
        %v4704 = vadd.f32 0.0, %v4703
        %v4705 = vpop.f32.mrf.mxu0
        %4706 = vmatprep.mubr.bf16.mxu0 0
        %4707 = vmatmul.mubr.bf16.gmra.mxu0 %v4594
        %v4708 = vpop.f32.mrf.mxu0
        %v4709 = vadd.f32 0.0, %v4708
        %v4710 = vpop.f32.mrf.mxu0
        %v4711 = vpop.f32.mrf.mxu0
        %v4712 = vadd.f32 0.0, %v4711
        %v4713 = vpop.f32.mrf.mxu0
        %4714 = vmatprep.mubr.bf16.mxu0 0
        %4715 = vmatmul.mubr.bf16.gmra.mxu0 %v4597
        %v4716 = vpop.f32.mrf.mxu0
        %v4717 = vadd.f32 0.0, %v4716
        %v4718 = vpop.f32.mrf.mxu0
        %v4719 = vpop.f32.mrf.mxu0
        %v4720 = vadd.f32 0.0, %v4719
        %v4721 = vpop.f32.mrf.mxu0
        %4722 = vmatprep.mubr.bf16.mxu0 0
        %4723 = vmatmul.mubr.bf16.gmra.mxu0 %v4600
        %v4724 = vpop.f32.mrf.mxu0
        %v4725 = vadd.f32 0.0, %v4724
        %v4726 = vpop.f32.mrf.mxu0
        %v4727 = vpop.f32.mrf.mxu0
        %v4728 = vadd.f32 0.0, %v4727
        %v4729 = vpop.f32.mrf.mxu0
        %4730 = vmatprep.mubr.bf16.mxu0 0
        %4731 = vmatmul.mubr.bf16.gmra.mxu0 %v4603
        %v4732 = vpop.f32.mrf.mxu0
        %v4733 = vadd.f32 0.0, %v4732
        %v4734 = vpop.f32.mrf.mxu0
        %v4735 = vpop.f32.mrf.mxu0
        %v4736 = vadd.f32 0.0, %v4735
        %v4737 = vpop.f32.mrf.mxu0
        %4738 = vmatprep.mubr.bf16.mxu0 0
        %4739 = vmatmul.mubr.bf16.gmra.mxu0 %v4606
        %v4740 = vpop.f32.mrf.mxu0
        %v4741 = vadd.f32 0.0, %v4740
        %v4742 = vpop.f32.mrf.mxu0
        %v4743 = vpop.f32.mrf.mxu0
        %v4744 = vadd.f32 0.0, %v4743
        %v4745 = vpop.f32.mrf.mxu0
        %4746 = vmatprep.mubr.bf16.mxu0 0
        %4747 = vmatmul.mubr.bf16.gmra.mxu0 %v4609
        %v4748 = vpop.f32.mrf.mxu0
        %v4749 = vadd.f32 0.0, %v4748
        %v4750 = vpop.f32.mrf.mxu0
        %v4751 = vpop.f32.mrf.mxu0
        %v4752 = vadd.f32 0.0, %v4751
        %v4753 = vpop.f32.mrf.mxu0
        %4754 = vmatprep.mubr.bf16.mxu0 0
        %4755 = vmatmul.mubr.bf16.gmra.mxu0 %v4612
        %v4756 = vpop.f32.mrf.mxu0
        %v4757 = vadd.f32 0.0, %v4756
        %v4758 = vpop.f32.mrf.mxu0
        %v4759 = vpop.f32.mrf.mxu0
        %v4760 = vadd.f32 0.0, %v4759
        %v4761 = vpop.f32.mrf.mxu0
        %4762 = vmatprep.mubr.bf16.mxu0 0
        %4763 = vmatmul.mubr.bf16.gmra.mxu0 %v4615
        %v4764 = vpop.f32.mrf.mxu0
        %v4765 = vadd.f32 0.0, %v4764
        %v4766 = vpop.f32.mrf.mxu0
        %v4767 = vpop.f32.mrf.mxu0
        %v4768 = vadd.f32 0.0, %v4767
        %v4769 = vpop.f32.mrf.mxu0
        %4770 = vmatprep.mubr.bf16.mxu0 0
        %4771 = vmatmul.mubr.bf16.gmra.mxu0 %v4618
        %v4772 = vpop.f32.mrf.mxu0
        %v4773 = vadd.f32 0.0, %v4772
        %v4774 = vpop.f32.mrf.mxu0
        %v4775 = vpop.f32.mrf.mxu0
        %v4776 = vadd.f32 0.0, %v4775
        %v4777 = vpop.f32.mrf.mxu0
        %4778 = vmatprep.mubr.bf16.mxu0 0
        %4779 = vmatmul.mubr.bf16.gmra.mxu0 %v4621
        %v4780 = vpop.f32.mrf.mxu0
        %v4781 = vadd.f32 0.0, %v4780
        %v4782 = vpop.f32.mrf.mxu0
        %v4783 = vpop.f32.mrf.mxu0
        %v4784 = vadd.f32 0.0, %v4783
        %v4785 = vpop.f32.mrf.mxu0
        %4786 = vdwg.mxu0
        %v4787 = vadd.f32 %v4317, %v4661
        %v4788 = vadd.f32 %v4318, %v4664
        %v4789 = vadd.f32 %v4319, %v4669
        %v4790 = vadd.f32 %v4320, %v4672
        %v4791 = vadd.f32 %v4321, %v4677
        %v4792 = vadd.f32 %v4322, %v4680
        %v4793 = vadd.f32 %v4323, %v4685
        %v4794 = vadd.f32 %v4324, %v4688
        %v4795 = vadd.f32 %v4325, %v4693
        %v4796 = vadd.f32 %v4326, %v4696
        %v4797 = vadd.f32 %v4327, %v4701
        %v4798 = vadd.f32 %v4328, %v4704
        %v4799 = vadd.f32 %v4329, %v4709
        %v4800 = vadd.f32 %v4330, %v4712
        %v4801 = vadd.f32 %v4331, %v4717
        %v4802 = vadd.f32 %v4332, %v4720
        %v4803 = vadd.f32 %v4333, %v4725
        %v4804 = vadd.f32 %v4334, %v4728
        %v4805 = vadd.f32 %v4335, %v4733
        %v4806 = vadd.f32 %v4336, %v4736
        %v4807 = vadd.f32 %v4337, %v4741
        %v4808 = vadd.f32 %v4338, %v4744
        %v4809 = vadd.f32 %v4339, %v4749
        %v4810 = vadd.f32 %v4340, %v4752
        %v4811 = vadd.f32 %v4341, %v4757
        %v4812 = vadd.f32 %v4342, %v4760
        %v4813 = vadd.f32 %v4343, %v4765
        %v4814 = vadd.f32 %v4344, %v4768
        %v4815 = vadd.f32 %v4345, %v4773
        %v4816 = vadd.f32 %v4346, %v4776
        %v4817 = vadd.f32 %v4347, %v4781
        %v4818 = vadd.f32 %v4348, %v4784
        %v4819 = vld [vmem:[%s2] sm:$0x1]
        %v4821 = vlaneseq
        %v4822 = vshrl.u32 %v4821, 7
        %v4823 = vsub.s32 0, %v4822
        %v4824 = vrot.slane %v4819, %v4823
        %v4826 = vadd.f32 %v4787, %v4824
        %v4827 = vadd.f32 %v4788, %v4824
        %v4828 = vadd.f32 %v4789, %v4824
        %v4829 = vadd.f32 %v4790, %v4824
        %v4830 = vadd.f32 %v4791, %v4824
        %v4831 = vadd.f32 %v4792, %v4824
        %v4832 = vadd.f32 %v4793, %v4824
        %v4833 = vadd.f32 %v4794, %v4824
        %v4834 = vadd.f32 %v4795, %v4824
        %v4835 = vadd.f32 %v4796, %v4824
        %v4836 = vadd.f32 %v4797, %v4824
        %v4837 = vadd.f32 %v4798, %v4824
        %v4838 = vadd.f32 %v4799, %v4824
        %v4839 = vadd.f32 %v4800, %v4824
        %v4840 = vadd.f32 %v4801, %v4824
        %v4841 = vadd.f32 %v4802, %v4824
        %v4842 = vadd.f32 %v4803, %v4824
        %v4843 = vadd.f32 %v4804, %v4824
        %v4844 = vadd.f32 %v4805, %v4824
        %v4845 = vadd.f32 %v4806, %v4824
        %v4846 = vadd.f32 %v4807, %v4824
        %v4847 = vadd.f32 %v4808, %v4824
        %v4848 = vadd.f32 %v4809, %v4824
        %v4849 = vadd.f32 %v4810, %v4824
        %v4850 = vadd.f32 %v4811, %v4824
        %v4851 = vadd.f32 %v4812, %v4824
        %v4852 = vadd.f32 %v4813, %v4824
        %v4853 = vadd.f32 %v4814, %v4824
        %v4854 = vadd.f32 %v4815, %v4824
        %v4855 = vadd.f32 %v4816, %v4824
        %v4856 = vadd.f32 %v4817, %v4824
        %v4857 = vadd.f32 %v4818, %v4824
        %v4858 = vmax.f32 %v4826, 0.0
        %v4859 = vmax.f32 %v4827, 0.0
        %v4860 = vmax.f32 %v4828, 0.0
        %v4861 = vmax.f32 %v4829, 0.0
        %v4862 = vmax.f32 %v4830, 0.0
        %v4863 = vmax.f32 %v4831, 0.0
        %v4864 = vmax.f32 %v4832, 0.0
        %v4865 = vmax.f32 %v4833, 0.0
        %v4866 = vmax.f32 %v4834, 0.0
        %v4867 = vmax.f32 %v4835, 0.0
        %v4868 = vmax.f32 %v4836, 0.0
        %v4869 = vmax.f32 %v4837, 0.0
        %v4870 = vmax.f32 %v4838, 0.0
        %v4871 = vmax.f32 %v4839, 0.0
        %v4872 = vmax.f32 %v4840, 0.0
        %v4873 = vmax.f32 %v4841, 0.0
        %v4874 = vmax.f32 %v4842, 0.0
        %v4875 = vmax.f32 %v4843, 0.0
        %v4876 = vmax.f32 %v4844, 0.0
        %v4877 = vmax.f32 %v4845, 0.0
        %v4878 = vmax.f32 %v4846, 0.0
        %v4879 = vmax.f32 %v4847, 0.0
        %v4880 = vmax.f32 %v4848, 0.0
        %v4881 = vmax.f32 %v4849, 0.0
        %v4882 = vmax.f32 %v4850, 0.0
        %v4883 = vmax.f32 %v4851, 0.0
        %v4884 = vmax.f32 %v4852, 0.0
        %v4885 = vmax.f32 %v4853, 0.0
        %v4886 = vmax.f32 %v4854, 0.0
        %v4887 = vmax.f32 %v4855, 0.0
        %v4888 = vmax.f32 %v4856, 0.0
        %v4889 = vmax.f32 %v4857, 0.0
        %v4890 = vadd.f32 %v4858, %v4859
        %v4891 = vadd.f32 %v4890, %v4860
        %v4892 = vadd.f32 %v4891, %v4861
        %v4893 = vadd.f32 %v4892, %v4862
        %v4894 = vadd.f32 %v4893, %v4863
        %v4895 = vadd.f32 %v4894, %v4864
        %v4896 = vadd.f32 %v4895, %v4865
        %v4897 = vadd.f32 %v4896, %v4866
        %v4898 = vadd.f32 %v4897, %v4867
        %v4899 = vadd.f32 %v4898, %v4868
        %v4900 = vadd.f32 %v4899, %v4869
        %v4901 = vadd.f32 %v4900, %v4870
        %v4902 = vadd.f32 %v4901, %v4871
        %v4903 = vadd.f32 %v4902, %v4872
        %v4904 = vadd.f32 %v4903, %v4873
        %v4905 = vadd.f32 %v4904, %v4874
        %v4906 = vadd.f32 %v4905, %v4875
        %v4907 = vadd.f32 %v4906, %v4876
        %v4908 = vadd.f32 %v4907, %v4877
        %v4909 = vadd.f32 %v4908, %v4878
        %v4910 = vadd.f32 %v4909, %v4879
        %v4911 = vadd.f32 %v4910, %v4880
        %v4912 = vadd.f32 %v4911, %v4881
        %v4913 = vadd.f32 %v4912, %v4882
        %v4914 = vadd.f32 %v4913, %v4883
        %v4915 = vadd.f32 %v4914, %v4884
        %v4916 = vadd.f32 %v4915, %v4885
        %v4917 = vadd.f32 %v4916, %v4886
        %v4918 = vadd.f32 %v4917, %v4887
        %v4919 = vadd.f32 %v4918, %v4888
        %v4920 = vadd.f32 %v4919, %v4889
        %v4921 = vrot.slane %v4920, 4
        %v4922 = vadd.f32 %v4920, %v4921
        %v4923 = vrot.slane %v4922, 2
        %v4924 = vadd.f32 %v4922, %v4923
        %v4925 = vrot.slane %v4924, 1
        %v4926 = vadd.f32 %v4924, %v4925
        %v4927 = vmul.f32 %v4926, 0.00390625
        %v4928 = vld [vmem:[%s3] sm:$0xff]
        %v4929 = vld [vmem:[%s3 + $0x8] sm:$0xff]
        %v4930 = vld [vmem:[%s3 + $0x10] sm:$0xff]
        %v4931 = vld [vmem:[%s3 + $0x18] sm:$0xff]
        %v4932 = vld [vmem:[%s3 + $0x20] sm:$0xff]
        %v4933 = vld [vmem:[%s3 + $0x28] sm:$0xff]
        %v4934 = vld [vmem:[%s3 + $0x30] sm:$0xff]
        %v4935 = vld [vmem:[%s3 + $0x38] sm:$0xff]
        %v4936 = vld [vmem:[%s3 + $0x40] sm:$0xff]
        %v4937 = vld [vmem:[%s3 + $0x48] sm:$0xff]
        %v4938 = vld [vmem:[%s3 + $0x50] sm:$0xff]
        %v4939 = vld [vmem:[%s3 + $0x58] sm:$0xff]
        %v4940 = vld [vmem:[%s3 + $0x60] sm:$0xff]
        %v4941 = vld [vmem:[%s3 + $0x68] sm:$0xff]
        %v4942 = vld [vmem:[%s3 + $0x70] sm:$0xff]
        %v4943 = vld [vmem:[%s3 + $0x78] sm:$0xff]
        %v4944 = vld [vmem:[%s4] sm:$0x1]
        %4945 = vmatprep.subr.mxu0 0.0
        %4946 = vmatpush1.msra.mxu0 %v4943
        %4947 = vmatprep.subr.mxu0 0.0
        %4948 = vmatpush1.msra.mxu0 %v4942
        %4949 = vmatprep.subr.mxu0 0.0
        %4950 = vmatpush1.msra.mxu0 %v4941
        %4951 = vmatprep.subr.mxu0 0.0
        %4952 = vmatpush1.msra.mxu0 %v4940
        %4953 = vmatprep.subr.mxu0 0.0
        %4954 = vmatpush1.msra.mxu0 %v4939
        %4955 = vmatprep.subr.mxu0 0.0
        %4956 = vmatpush1.msra.mxu0 %v4938
        %4957 = vmatprep.subr.mxu0 0.0
        %4958 = vmatpush1.msra.mxu0 %v4937
        %4959 = vmatprep.subr.mxu0 0.0
        %4960 = vmatpush1.msra.mxu0 %v4936
        %4961 = vmatprep.subr.mxu0 0.0
        %4962 = vmatpush1.msra.mxu0 %v4935
        %4963 = vmatprep.subr.mxu0 0.0
        %4964 = vmatpush1.msra.mxu0 %v4934
        %4965 = vmatprep.subr.mxu0 0.0
        %4966 = vmatpush1.msra.mxu0 %v4933
        %4967 = vmatprep.subr.mxu0 0.0
        %4968 = vmatpush1.msra.mxu0 %v4932
        %4969 = vmatprep.subr.mxu0 0.0
        %4970 = vmatpush1.msra.mxu0 %v4931
        %4971 = vmatprep.subr.mxu0 0.0
        %4972 = vmatpush1.msra.mxu0 %v4930
        %4973 = vmatprep.subr.mxu0 0.0
        %4974 = vmatpush1.msra.mxu0 %v4929
        %4975 = vmatprep.subr.mxu0 0.0
        %4976 = vmatpush1.msra.mxu0 %v4928
        %4977 = vmatprep.subr.mxu0 0.0
        %4978 = vmatpush2.msra.mxu0 0.0
        %4979 = vmatprep.subr.mxu0 0.0
        %4980 = vmatpush2.msra.mxu0 0.0
        %4981 = vmatprep.subr.mxu0 0.0
        %4982 = vmatpush2.msra.mxu0 0.0
        %4983 = vmatprep.subr.mxu0 0.0
        %4984 = vmatpush2.msra.mxu0 0.0
        %4985 = vmatprep.subr.mxu0 0.0
        %4986 = vmatpush2.msra.mxu0 0.0
        %4987 = vmatprep.subr.mxu0 0.0
        %4988 = vmatpush2.msra.mxu0 0.0
        %4989 = vmatprep.subr.mxu0 0.0
        %4990 = vmatpush2.msra.mxu0 0.0
        %4991 = vmatprep.subr.mxu0 0.0
        %4992 = vmatpush2.msra.mxu0 0.0
        %4993 = vmatprep.subr.mxu0 0.0
        %4994 = vmatpush2.msra.mxu0 0.0
        %4995 = vmatprep.subr.mxu0 0.0
        %4996 = vmatpush2.msra.mxu0 0.0
        %4997 = vmatprep.subr.mxu0 0.0
        %4998 = vmatpush2.msra.mxu0 0.0
        %4999 = vmatprep.subr.mxu0 0.0
        %5000 = vmatpush2.msra.mxu0 0.0
        %5001 = vmatprep.subr.mxu0 0.0
        %5002 = vmatpush2.msra.mxu0 0.0
        %5003 = vmatprep.subr.mxu0 0.0
        %5004 = vmatpush2.msra.mxu0 0.0
        %5005 = vmatprep.subr.mxu0 0.0
        %5006 = vmatpush2.msra.mxu0 0.0
        %5007 = vmatprep.subr.mxu0 0.0
        %5008 = vmatpush2.msra.mxu0 0.0
        %5009 = vmatprep.mubr.f32.mxu0 0.0
        %5010 = vmatmul.mubr.f32.gmra.mxu0 %v4927
        %v5011 = vpop.f32.mrf.mxu0
        %v5012 = vadd.f32 %v4944, %v5011
        %v5013 = vpop.f32.mrf.mxu0
        %5014 = vdwg.mxu0
        %5015 = vst [vmem:[%s253] sm:$0x1] %v4927
        %5016 = vst [vmem:[%s247] sm:$0x1] %v5012
        %s5017 = sand.u32 %s142, 1
        %s5018 = scalar_lea.sflag [#allocation3], %s5017
        %s5019 = sand.u32 %s142, 1
        %s5020 = scalar_lea.vmem [#allocation2], %s5019
        %s5021 = sand.u32 %s168, 1
        %s5022 = scalar_lea.sflag [#allocation5], %s5021
        %s5023 = sand.u32 %s168, 1
        %s5024 = scalar_lea.vmem [#allocation4], %s5023
        // Predicated region
        $region41: #{_feat_classifier_impl.1} parent=39 // pred_check
          %p5025 = pneg %p152
        $region42: #{_feat_classifier_impl.1} parent=39 // pred_check_branch
          %5027 = sbr.rel (%p5025) target = $region44
        $region43: #{_feat_classifier_impl.1} parent=39 // pred_region
          %s5029 = ssub.s32 16, 16
          %5030 = vsyncadd %s5018, %s5029
          %s5031 = smul.addr %s24, 16
          %s5032 = scalar_lea.hbm %s5, %s5031
          %s5034 = sshll.u32 %s5020, 4
          %s5035 = int_to_ptr.vmem [resolvable:$true] %s5034
          %5037 = dma.vmem_to_hbm [thread:$0]  %s5035, 16, %s5032, %s5018
        $region44: #{_feat_classifier_impl.1} parent=39 // pred_fallthru
          _
        // Predicated region
        $region45: #{_feat_classifier_impl.1} parent=39 // pred_check
          %p5038 = pneg %p178
        $region46: #{_feat_classifier_impl.1} parent=39 // pred_check_branch
          %5040 = sbr.rel (%p5038) target = $region48
        $region47: #{_feat_classifier_impl.1} parent=39 // pred_region
          %s5042 = ssub.s32 16, 16
          %5043 = vsyncadd %s5022, %s5042
          %s5044 = smul.addr %s24, 16
          %s5045 = scalar_lea.hbm %s6, %s5044
          %s5047 = sshll.u32 %s5024, 4
          %s5048 = int_to_ptr.vmem [resolvable:$true] %s5047
          %5050 = dma.vmem_to_hbm [thread:$0]  %s5048, 16, %s5045, %s5022
        $region48: #{_feat_classifier_impl.1} parent=39 // pred_fallthru
          _
      $region40: #{_feat_classifier_impl.1} parent=5 // pred_fallthru
        _
      %p5051 = scmp.le.s32.totalorder 2, %s19
      // Predicated region
      $region49: #{_feat_classifier_impl.1} parent=5 // pred_check
        %p5052 = pneg %p5051
      $region50: #{_feat_classifier_impl.1} parent=5 // pred_check_branch
        %5054 = sbr.rel (%p5052) target = $region52
      $region51: #{_feat_classifier_impl.1} parent=5 // pred_region
        %s5055 = ssub.s32 %s19, 2
        // Predicated region
        $region53: #{_feat_classifier_impl.1} parent=51 // pred_check
          %p5056 = pneg %p158
        $region54: #{_feat_classifier_impl.1} parent=51 // pred_check_branch
          %5058 = sbr.rel (%p5056) target = $region56
        $region55: #{_feat_classifier_impl.1} parent=51 // pred_region
          %s5059 = sand.u32 %s143, 1
          %s5060 = scalar_lea.sflag [#allocation3], %s5059
          %s5061 = sand.u32 %s143, 1
          %s5062 = scalar_lea.vmem [#allocation2], %s5061
          %5063 = dma.done %s5060, 16
        $region56: #{_feat_classifier_impl.1} parent=51 // pred_fallthru
          _
        // Predicated region
        $region57: #{_feat_classifier_impl.1} parent=51 // pred_check
          %p5064 = pneg %p184
        $region58: #{_feat_classifier_impl.1} parent=51 // pred_check_branch
          %5066 = sbr.rel (%p5064) target = $region60
        $region59: #{_feat_classifier_impl.1} parent=51 // pred_region
          %s5067 = sand.u32 %s169, 1
          %s5068 = scalar_lea.sflag [#allocation5], %s5067
          %s5069 = sand.u32 %s169, 1
          %s5070 = scalar_lea.vmem [#allocation4], %s5069
          %5071 = dma.done %s5068, 16
        $region60: #{_feat_classifier_impl.1} parent=51 // pred_fallthru
          _
      $region52: #{_feat_classifier_impl.1} parent=5 // pred_fallthru
        _
    $region6: #{_feat_classifier_impl.1} parent=1 // loop_footer
      %s23 = sadd.s32 1, %s19
    $region7: #{_feat_classifier_impl.1} parent=1 // loop_footer_branch
      %18 = sbr.rel target = $region3
    $region8: #{_feat_classifier_impl.1} parent=1 // loop_exit
      _
    %5072 = vsyncpa [#allocation3], 1
    %s5073 = scalar_lea.sflag [#allocation3], 1
    %5074 = vsyncpa %s5073, 1
    %5075 = vsyncpa [#allocation5], 1
    %s5076 = scalar_lea.sflag [#allocation5], 1
    %5077 = vsyncpa %s5076, 1

</llo_original>
